<compile_context>
chip_gen: v7x
topology: tpu7x:2x2x1
jax: 0.10.0
libtpu: 0.0.40
codegen_flags: <defaults>
</compile_context>

<pallas_src>
import functools

import jax
import jax.numpy as jnp
from jax import lax
from jax.experimental import pallas as pl
from jax.experimental.pallas import tpu as pltpu


# ---------------------------------------------------------------------------
# Fused kernel: pass 0 = reduce + temporal blocks + pooled sums,
#               pass 1 = attention + merged restore conv.
# ---------------------------------------------------------------------------
def _cptm_kernel(x_ref, wred_ref, bred_ref, wcnv_ref, bcnv_ref,
                 fcw_ref, fcb_ref, fcsw_ref, fcsb_ref, wrst_ref, brst_ref,
                 o_ref,
                 fea_scr, pro_scr, sums_scr, weff_scr,
                 *, T, Cc, branchs, p_tile, P, inv_pool, ragged):
    pass_id = pl.program_id(1)
    j = pl.program_id(2)

    # ------------------ pass 0: reduce + temporal + pooled sums -------------
    @pl.when(pass_id == 0)
    def _pass0():
        @pl.when(j == 0)
        def _():
            sums_scr[...] = jnp.zeros_like(sums_scr)

        # 1x1 reduce conv + folded BN + ReLU, written straight into fea scratch
        wred = wred_ref[...]                              # (Cc, C)  bf16
        bred = bred_ref[...]                              # (Cc, 1)  f32
        for t in range(T):
            r = jnp.dot(wred, x_ref[0, t].astype(jnp.bfloat16),
                        preferred_element_type=jnp.float32)
            fea_scr[t * Cc:(t + 1) * Cc, :] = (
                jnp.maximum(r + bred, 0.0).astype(jnp.bfloat16))

        # progressive temporal blocks: block-banded (T*Cc, T*Cc) matmuls
        pooled = jnp.zeros((Cc, p_tile), jnp.float32)
        for i in range(branchs):
            y = jnp.dot(wcnv_ref[i], fea_scr[...],
                        preferred_element_type=jnp.float32)   # (T*Cc, p)
            y = jnp.maximum(y + bcnv_ref[i], 0.0)
            yb = y.astype(jnp.bfloat16)
            fea_scr[...] = yb                              # input of next branch
            for t in range(T):
                # frame-major / branch-contiguous layout -> one K=branchs*Cc
                # restore matmul per frame in pass 1
                pro_scr[j, t, i * Cc:(i + 1) * Cc, :] = yb[t * Cc:(t + 1) * Cc, :]
                pooled = pooled + y[t * Cc:(t + 1) * Cc, :]

        if ragged:                                         # mask padded lanes
            lane = lax.broadcasted_iota(jnp.int32, (Cc, p_tile), 1)
            pooled = jnp.where((lane + j * p_tile) < P, pooled, 0.0)
        sums_scr[...] += jnp.sum(pooled, axis=1, keepdims=True)   # (Cc, 1)

    # ------------------ pass 1: attention (once) + merged restore -----------
    @pl.when(pass_id == 1)
    def _pass1():
        @pl.when(j == 0)
        def _():
            # reference: fea_U = sum_i pro_i / branchs ; fea_s = avgpool(fea_U)
            s_col = sums_scr[...] * inv_pool               # (Cc, 1)
            # tiny column -> row conversion without a hardware transpose
            eye = (lax.broadcasted_iota(jnp.int32, (Cc, Cc), 0) ==
                   lax.broadcasted_iota(jnp.int32, (Cc, Cc), 1))
            fea_s = jnp.sum(jnp.where(eye, s_col, 0.0), axis=0, keepdims=True)
            h = jnp.dot(fea_s, fcw_ref[...], preferred_element_type=jnp.float32)
            h = jnp.maximum(h + fcb_ref[...], 0.0)         # (1, d)
            fcsb = fcsb_ref[...]                           # (branchs, Cc)
            rows = [jnp.dot(h, fcsw_ref[i], preferred_element_type=jnp.float32)
                    + fcsb[i:i + 1, :] for i in range(branchs)]
            att = jnp.concatenate(rows, axis=0)            # (branchs, Cc)
            att = jnp.exp(att - jnp.max(att, axis=0, keepdims=True))
            att = att * pl.reciprocal(jnp.sum(att, axis=0, keepdims=True),
                                      approx=True)
            # fold per-channel attention into one merged restore matrix:
            #   Wrst @ (sum_i a_i*pro_i) == [Wrst*a_0 | Wrst*a_1 | ...] @ [pro]
            wrst = wrst_ref[...].astype(jnp.float32)       # (C, Cc)
            weff_scr[...] = jnp.concatenate(
                [(wrst * att[i:i + 1, :]).astype(jnp.bfloat16)
                 for i in range(branchs)], axis=1)         # (C, branchs*Cc)

        brst = brst_ref[...]                               # (C, 1)
        weff = weff_scr[...]                               # (C, branchs*Cc)
        for t in range(T):
            o = jnp.dot(weff, pro_scr[j, t],
                        preferred_element_type=jnp.float32)    # (C, p)
            o_ref[0, t] = jnp.maximum(o + brst, 0.0).astype(o_ref.dtype)


# ---------------------------------------------------------------------------
# Wrapper (NCHW in, NCHW out) — no transposes, only free reshapes.
# ---------------------------------------------------------------------------
def _round_up(x, m):
    return ((x + m - 1) // m) * m


def cptm_bottleneck_forward(x, params, *, segments, out_dtype=jnp.bfloat16,
                            p_tile_cap=1024):
    N, C, H, W = x.shape
    T = segments
    assert N % T == 0, "batch must be a multiple of `segments`"
    B = N // T
    P = H * W
    Cc = params["w_red"].shape[0]
    branchs = params["conv_big"].shape[0]
    d = params["fc_w"].shape[1]
    TC = T * Cc

    # spatial tile: always a multiple of 128 (lane-dense), bounded by the cap
    p_tile_cap = max(128, (p_tile_cap // 128) * 128)
    p_tile = min(p_tile_cap, _round_up(P, 128))
    n_pt = pl.cdiv(P, p_tile)
    ragged = (P % p_tile) != 0
    inv_pool = 1.0 / float(branchs * T * P)   # /branchs matches `fea_U/branchs`

    x4 = x.reshape(B, T, C, P)                # free reshape, no data movement

    # per-video branch features stay resident in VMEM (no HBM round trip)
    # TODO(synk): spill `pro` to HBM (two-pass, two-pallas_call variant) when
    #   n_pt * T * branchs * Cc * p_tile * 2 bytes exceeds the VMEM budget.
    # TODO(synk): recompute the tiny attention MLP per tile so the spatial axis
    #   can be marked "parallel" for v7x's 2 TensorCores.

    cparams = pltpu.CompilerParams(
        dimension_semantics=("parallel", "arbitrary", "arbitrary"),
        vmem_limit_bytes=48 * 1024 * 1024,    # headroom on v7x's 64 MiB VMEM
    )

    kernel = functools.partial(_cptm_kernel, T=T, Cc=Cc, branchs=branchs,
                               p_tile=p_tile, P=P, inv_pool=inv_pool,
                               ragged=ragged)

    out4 = pl.pallas_call(
        kernel,
        out_shape=jax.ShapeDtypeStruct((B, T, C, P), out_dtype),
        grid_spec=pltpu.PrefetchScalarGridSpec(
            num_scalar_prefetch=0,
            grid=(B, 2, n_pt),
            in_specs=[
                # x only needed in pass 0; pin to the last tile in pass 1 so no
                # extra DMAs are issued.
                pl.BlockSpec((1, T, C, p_tile),
                             lambda b, p, j: (b, 0, 0,
                                              j * (1 - p) + (n_pt - 1) * p)),
                pl.BlockSpec((Cc, C), lambda b, p, j: (0, 0)),
                pl.BlockSpec((Cc, 1), lambda b, p, j: (0, 0)),
                pl.BlockSpec((branchs, TC, TC), lambda b, p, j: (0, 0, 0)),
                pl.BlockSpec((branchs, TC, 1), lambda b, p, j: (0, 0, 0)),
                pl.BlockSpec((Cc, d), lambda b, p, j: (0, 0)),
                pl.BlockSpec((1, d), lambda b, p, j: (0, 0)),
                pl.BlockSpec((branchs, d, Cc), lambda b, p, j: (0, 0, 0)),
                pl.BlockSpec((branchs, Cc), lambda b, p, j: (0, 0)),
                pl.BlockSpec((C, Cc), lambda b, p, j: (0, 0)),
                pl.BlockSpec((C, 1), lambda b, p, j: (0, 0)),
            ],
            # output block index is constant during pass 0 (never written) and
            # sweeps the spatial tiles during pass 1 (written, then flushed).
            out_specs=pl.BlockSpec((1, T, C, p_tile),
                                   lambda b, p, j: (b, 0, 0, j * p)),
            scratch_shapes=[
                pltpu.VMEM((TC, p_tile), jnp.bfloat16),                    # fea
                pltpu.VMEM((n_pt, T, branchs * Cc, p_tile), jnp.bfloat16), # pro
                pltpu.VMEM((Cc, 1), jnp.float32),                          # sums
                pltpu.VMEM((C, branchs * Cc), jnp.bfloat16),               # weff
            ],
        ),
        compiler_params=cparams,
    )(x4, params["w_red"], params["b_red"], params["conv_big"],
      params["conv_shift"], params["fc_w"], params["fc_b"], params["fcs_w"],
      params["fcs_b"], params["w_rst"], params["b_rst"])

    return out4.reshape(N, C, H, W)


# ---------------------------------------------------------------------------
# Parameter folding (PyTorch-layout raw params -> kernel-ready arrays).
# ---------------------------------------------------------------------------
def prepare_params(raw, *, segments, gamma=1.0, eps=1e-5):
    T = segments

    def fold(bn):
        g, b, m, v = bn
        s = g / jnp.sqrt(v + eps)
        return s, b - m * s

    Cc, C = raw["reduce_w"].shape
    branchs = len(raw["conv_w"])
    TC = T * Cc

    # reduce 1x1 conv + BN
    s_re, sh_re = fold(raw["bn_re"])
    w_red = (s_re[:, None] * raw["reduce_w"]).astype(jnp.bfloat16)       # (Cc, C)
    b_red = sh_re[:, None].astype(jnp.float32)                           # (Cc, 1)

    # Conv3d(3,1,1) + BN3d per branch -> block-banded (T*Cc, T*Cc) matrices
    bigs, shifts = [], []
    for i in range(branchs):
        s3, sh3 = fold(raw["bn3"][i])
        wc = s3[:, None, None] * raw["conv_w"][i]                        # (Cc,Cc,3)
        big = jnp.zeros((TC, TC), jnp.float32)
        for t in range(T):
            for k in range(3):
                src = t + k - 1                       # cross-correlation, pad=1
                if 0 <= src < T:
                    big = big.at[t * Cc:(t + 1) * Cc,
                                 src * Cc:(src + 1) * Cc].set(wc[:, :, k])
        bigs.append(big.astype(jnp.bfloat16))
        shifts.append(jnp.tile(sh3, T)[:, None])
    conv_big = jnp.stack(bigs, axis=0)                                   # (br,TC,TC)
    conv_shift = jnp.stack(shifts, axis=0).astype(jnp.float32)           # (br,TC,1)

    # squeeze FC + BN1d (row-vector form)
    s1, sh1 = fold(raw["bn1"])
    fc_w = (raw["fc_w"].T * s1[None, :]).astype(jnp.float32)             # (Cc, d)
    fc_b = (raw["fc_b"] * s1 + sh1)[None, :].astype(jnp.float32)         # (1, d)

    # excitation FCs (softmax gamma folded in)
    fcs_w = jnp.stack([gamma * w.T for w in raw["fcs_w"]], 0).astype(jnp.float32)
    fcs_b = jnp.stack([gamma * b for b in raw["fcs_b"]], 0).astype(jnp.float32)

    # restore 1x1 conv + BN
    s_rs, sh_rs = fold(raw["bn_rst"])
    w_rst = (s_rs[:, None] * raw["restore_w"]).astype(jnp.bfloat16)      # (C, Cc)
    b_rst = sh_rs[:, None].astype(jnp.float32)                           # (C, 1)

    return dict(w_red=w_red, b_red=b_red, conv_big=conv_big,
                conv_shift=conv_shift, fc_w=fc_w, fc_b=fc_b,
                fcs_w=fcs_w, fcs_b=fcs_b, w_rst=w_rst, b_rst=b_rst)


# ---------------------------------------------------------------------------
# Pure-JAX reference (PyTorch semantics, inference-mode BN) for verification.
# ---------------------------------------------------------------------------
def _reference_forward(x, raw, *, segments, gamma, eps=1e-5):
    x = x.astype(jnp.float32)
    N, C, H, W = x.shape
    T = segments
    B = N // T

    def bn(y, p, axis):
        g, b, m, v = [a.astype(jnp.float32) for a in p]
        shp = [1] * y.ndim
        shp[axis] = -1
        return (y - m.reshape(shp)) * (g / jnp.sqrt(v + eps)).reshape(shp) \
            + b.reshape(shp)

    y = jnp.einsum("oc,nchw->nohw", raw["reduce_w"], x)
    y = jax.nn.relu(bn(y, raw["bn_re"], 1))
    Cc = y.shape[1]
    y = y.reshape(B, T, Cc, H, W).transpose(0, 2, 1, 3, 4)   # (B,Cc,T,H,W)

    nb = len(raw["conv_w"])
    fea, pros = y, []
    for i in range(nb):
        w = raw["conv_w"][i]                                 # (Co, Ci, 3)
        pad = jnp.pad(fea, ((0, 0), (0, 0), (1, 1), (0, 0), (0, 0)))
        out = sum(jnp.einsum("oi,bithw->bothw", w[:, :, k], pad[:, :, k:k + T])
                  for k in range(3))
        fea = jax.nn.relu(bn(out, raw["bn3"][i], 1))
        pros.append(fea)
    pro = jnp.stack(pros, axis=1)                            # (B,nb,Cc,T,H,W)

    fea_U = jnp.sum(pro, axis=1) / nb
    fea_s = jnp.mean(fea_U, axis=(2, 3, 4))                  # (B, Cc)
    h = fea_s @ raw["fc_w"].T + raw["fc_b"]
    h = jax.nn.relu(bn(h, raw["bn1"], 1))
    att = jnp.stack([h @ raw["fcs_w"][i].T + raw["fcs_b"][i] for i in range(nb)], 1)
    att = jax.nn.softmax(gamma * att, axis=1)                # (B, nb, Cc)
    fea_v = jnp.sum(pro * att[:, :, :, None, None, None], axis=1)
    fea_v = fea_v.transpose(0, 2, 1, 3, 4).reshape(N, Cc, H, W)

    out = jnp.einsum("oc,nchw->nohw", raw["restore_w"], fea_v)
    return jax.nn.relu(bn(out, raw["bn_rst"], 1))


# ---------------------------------------------------------------------------
# Demo
# ---------------------------------------------------------------------------
if __name__ == "__main__":
    # CPTM_Bottleneck(channels=64, percent=0.25, gamma=1, segments=8)
    #   -> Cc = 16, d = max(Cc/16, 32) = 32, branchs = 3
    C = 64
    percent = 0.25
    segments = 8
    gamma = 1.0
    branchs = 3
    Cc = int(C * percent)
    d = max(int(Cc / 16), 32)

    B, H, W = 2, 16, 16          # 2 videos x 8 frames, 16x16 spatial
    N = B * segments

    key = jax.random.PRNGKey(0)
    ki = iter(jax.random.split(key, 64))

    def nrm(shape, s=0.1):
        return s * jax.random.normal(next(ki), shape, jnp.float32)

    def bn_p(n):
        g = 1.0 + 0.1 * jax.random.normal(next(ki), (n,), jnp.float32)
        b = 0.1 * jax.random.normal(next(ki), (n,), jnp.float32)
        m = 0.1 * jax.random.normal(next(ki), (n,), jnp.float32)
        v = 1.0 + 0.1 * jnp.abs(jax.random.normal(next(ki), (n,), jnp.float32))
        return g, b, m, v

    # PyTorch-layout raw parameters
    raw = {
        "reduce_w": nrm((Cc, C)),                      # Conv2d 1x1 (Cout, Cin)
        "bn_re": bn_p(Cc),
        "conv_w": [nrm((Cc, Cc, 3)) for _ in range(branchs)],   # Conv3d (Co,Ci,kT)
        "bn3": [bn_p(Cc) for _ in range(branchs)],
        "fc_w": nrm((d, Cc)), "fc_b": nrm((d,)),       # nn.Linear(Cc, d)
        "bn1": bn_p(d),
        "fcs_w": [nrm((Cc, d)) for _ in range(branchs)],        # nn.Linear(d, Cc)
        "fcs_b": [nrm((Cc,)) for _ in range(branchs)],
        "restore_w": nrm((C, Cc)),                     # Conv2d 1x1 (Cout, Cin)
        "bn_rst": bn_p(C),
    }
    # TODO(synk): training-mode BatchNorm (batch statistics) is not reproduced;
    # all BN layers are folded inference-mode scale/shift.
    params = prepare_params(raw, segments=segments, gamma=gamma)

    x = jax.random.normal(next(ki), (N, C, H, W), jnp.float32)
    # the upstream producer is assumed to emit bf16 activations (halves the
    # kernel's HBM read traffic); quantize once here for the demo.
    x_bf16 = x.astype(jnp.bfloat16)

    fwd = jax.jit(functools.partial(cptm_bottleneck_forward,
                                    segments=segments, p_tile_cap=128))
    out = jax.block_until_ready(fwd(x_bf16, params))

    assert out.shape == (N, C, H, W), out.shape
    assert bool(jnp.all(jnp.isfinite(out)))

    ref = _reference_forward(x_bf16.astype(jnp.float32), raw,
                             segments=segments, gamma=gamma)
    err = float(jnp.max(jnp.abs(out.astype(jnp.float32) - ref)) /
                (jnp.max(jnp.abs(ref)) + 1e-6))
    assert err < 0.1, f"mismatch vs reference: rel-to-max err = {err:.4f}"
    print("KERNEL_OK")
</pallas_src>

<mosaic_0001>
module attributes {stable_mosaic.version = 11 : i64} {
  func.func @_cptm_kernel(%arg0: i32, %arg1: i32, %arg2: i32, %arg3: memref<1x8x64x128xbf16, #tpu.memory_space<vmem>>, %arg4: memref<16x64xbf16, #tpu.memory_space<vmem>>, %arg5: memref<16x1xf32, #tpu.memory_space<vmem>>, %arg6: memref<3x128x128xbf16, #tpu.memory_space<vmem>>, %arg7: memref<3x128x1xf32, #tpu.memory_space<vmem>>, %arg8: memref<16x32xf32, #tpu.memory_space<vmem>>, %arg9: memref<1x32xf32, #tpu.memory_space<vmem>>, %arg10: memref<3x32x16xf32, #tpu.memory_space<vmem>>, %arg11: memref<3x16xf32, #tpu.memory_space<vmem>>, %arg12: memref<64x16xbf16, #tpu.memory_space<vmem>>, %arg13: memref<64x1xf32, #tpu.memory_space<vmem>>, %arg14: memref<1x8x64x128xbf16, #tpu.memory_space<vmem>>, %arg15: memref<128x128xbf16, #tpu.memory_space<vmem>>, %arg16: memref<2x8x48x128xbf16, #tpu.memory_space<vmem>>, %arg17: memref<16x1xf32, #tpu.memory_space<vmem>>, %arg18: memref<64x48xbf16, #tpu.memory_space<vmem>>) attributes {dimension_semantics = [#tpu.dimension_semantics<parallel>, #tpu.dimension_semantics<arbitrary>, #tpu.dimension_semantics<arbitrary>], iteration_bounds = array<i64: 2, 2, 2>, scalar_prefetch = 0 : i64, scratch_operands = 4 : i64, tpu.core_type = #tpu.core_type<tc>, window_params = [{transform_indices = @transform_0, window_bounds = array<i64: 1, 8, 64, 128>}, {pipeline_mode = #tpu.pipeline_mode<synchronous>, transform_indices = @transform_1, window_bounds = array<i64: 16, 64>}, {pipeline_mode = #tpu.pipeline_mode<synchronous>, transform_indices = @transform_2, window_bounds = array<i64: 16, 1>}, {pipeline_mode = #tpu.pipeline_mode<synchronous>, transform_indices = @transform_3, window_bounds = array<i64: 3, 128, 128>}, {pipeline_mode = #tpu.pipeline_mode<synchronous>, transform_indices = @transform_4, window_bounds = array<i64: 3, 128, 1>}, {pipeline_mode = #tpu.pipeline_mode<synchronous>, transform_indices = @transform_5, window_bounds = array<i64: 16, 32>}, {pipeline_mode = #tpu.pipeline_mode<synchronous>, transform_indices = @transform_6, window_bounds = array<i64: 1, 32>}, {pipeline_mode = #tpu.pipeline_mode<synchronous>, transform_indices = @transform_7, window_bounds = array<i64: 3, 32, 16>}, {pipeline_mode = #tpu.pipeline_mode<synchronous>, transform_indices = @transform_8, window_bounds = array<i64: 3, 16>}, {pipeline_mode = #tpu.pipeline_mode<synchronous>, transform_indices = @transform_9, window_bounds = array<i64: 64, 16>}, {pipeline_mode = #tpu.pipeline_mode<synchronous>, transform_indices = @transform_10, window_bounds = array<i64: 64, 1>}, {transform_indices = @transform_11, window_bounds = array<i64: 1, 8, 64, 128>}]} {
    %c0_i32 = arith.constant 0 : i32
    %0 = arith.cmpi eq, %arg1, %c0_i32 : i32
    %1 = arith.extui %0 : i1 to i32
    %c0_i32_0 = arith.constant 0 : i32
    %2 = arith.cmpi ne, %1, %c0_i32_0 : i32
    scf.if %2 {
      %c0_i32_2 = arith.constant 0 : i32
      %6 = arith.cmpi eq, %arg2, %c0_i32_2 : i32
      %7 = arith.extui %6 : i1 to i32
      %c0_i32_3 = arith.constant 0 : i32
      %8 = arith.cmpi ne, %7, %c0_i32_3 : i32
      scf.if %8 {
        %cst_170 = arith.constant 0.000000e+00 : f32
        %293 = vector.broadcast %cst_170 : f32 to vector<16x1xf32>
        %c0_171 = arith.constant 0 : index
        %c0_172 = arith.constant 0 : index
        %294 = vector.load %arg17[%c0_171, %c0_172] : memref<16x1xf32, #tpu.memory_space<vmem>>, vector<16x1xf32>
        tpu.vector_store %arg17[%c0_171, %c0_172], %293 {strides = array<i32>} : memref<16x1xf32, #tpu.memory_space<vmem>>, vector<16x1xf32>,
      } else {
      }
      %c0 = arith.constant 0 : index
      %c0_4 = arith.constant 0 : index
      %9 = vector.load %arg4[%c0, %c0_4] : memref<16x64xbf16, #tpu.memory_space<vmem>>, vector<16x64xbf16>
      %c0_5 = arith.constant 0 : index
      %c0_6 = arith.constant 0 : index
      %10 = vector.load %arg5[%c0_5, %c0_6] : memref<16x1xf32, #tpu.memory_space<vmem>>, vector<16x1xf32>
      %c0_7 = arith.constant 0 : index
      %c0_8 = arith.constant 0 : index
      %c0_9 = arith.constant 0 : index
      %c0_10 = arith.constant 0 : index
      %11 = vector.load %arg3[%c0_7, %c0_8, %c0_9, %c0_10] : memref<1x8x64x128xbf16, #tpu.memory_space<vmem>>, vector<1x1x64x128xbf16>
      %12 = vector.shape_cast %11 : vector<1x1x64x128xbf16> to vector<64x128xbf16>
      %cst = arith.constant dense<0.000000e+00> : vector<16x128xf32>
      %13 = tpu.matmul %9, %12, %cst {dimension_numbers = #tpu.dot_dimension_numbers<[1], [0], [0], [1], [0, 0, 1, 1], [], []>} : vector<16x64xbf16>, vector<64x128xbf16>, vector<16x128xf32> -> vector<16x128xf32>
      %14 = vector.broadcast %10 : vector<16x1xf32> to vector<16x128xf32>
      %15 = arith.addf %13, %14 : vector<16x128xf32>
      %cst_11 = arith.constant 0.000000e+00 : f32
      %16 = vector.broadcast %cst_11 : f32 to vector<16x128xf32>
      %17 = arith.maximumf %15, %16 : vector<16x128xf32>
      %18 = arith.truncf %17 : vector<16x128xf32> to vector<16x128xbf16>
      %c0_12 = arith.constant 0 : index
      %c0_13 = arith.constant 0 : index
      %19 = vector.load %arg15[%c0_12, %c0_13] : memref<128x128xbf16, #tpu.memory_space<vmem>>, vector<16x128xbf16>
      tpu.vector_store %arg15[%c0_12, %c0_13], %18 {strides = array<i32>} : memref<128x128xbf16, #tpu.memory_space<vmem>>, vector<16x128xbf16>,
      %c0_14 = arith.constant 0 : index
      %c1 = arith.constant 1 : index
      %c0_15 = arith.constant 0 : index
      %c0_16 = arith.constant 0 : index
      %20 = vector.load %arg3[%c0_14, %c1, %c0_15, %c0_16] : memref<1x8x64x128xbf16, #tpu.memory_space<vmem>>, vector<1x1x64x128xbf16>
      %21 = vector.shape_cast %20 : vector<1x1x64x128xbf16> to vector<64x128xbf16>
      %cst_17 = arith.constant dense<0.000000e+00> : vector<16x128xf32>
      %22 = tpu.matmul %9, %21, %cst_17 {dimension_numbers = #tpu.dot_dimension_numbers<[1], [0], [0], [1], [0, 0, 1, 1], [], []>} : vector<16x64xbf16>, vector<64x128xbf16>, vector<16x128xf32> -> vector<16x128xf32>
      %23 = vector.broadcast %10 : vector<16x1xf32> to vector<16x128xf32>
      %24 = arith.addf %22, %23 : vector<16x128xf32>
      %cst_18 = arith.constant 0.000000e+00 : f32
      %25 = vector.broadcast %cst_18 : f32 to vector<16x128xf32>
      %26 = arith.maximumf %24, %25 : vector<16x128xf32>
      %27 = arith.truncf %26 : vector<16x128xf32> to vector<16x128xbf16>
      %c16 = arith.constant 16 : index
      %c0_19 = arith.constant 0 : index
      %28 = vector.load %arg15[%c16, %c0_19] : memref<128x128xbf16, #tpu.memory_space<vmem>>, vector<16x128xbf16>
      tpu.vector_store %arg15[%c16, %c0_19], %27 {strides = array<i32>} : memref<128x128xbf16, #tpu.memory_space<vmem>>, vector<16x128xbf16>,
      %c0_20 = arith.constant 0 : index
      %c2 = arith.constant 2 : index
      %c0_21 = arith.constant 0 : index
      %c0_22 = arith.constant 0 : index
      %29 = vector.load %arg3[%c0_20, %c2, %c0_21, %c0_22] : memref<1x8x64x128xbf16, #tpu.memory_space<vmem>>, vector<1x1x64x128xbf16>
      %30 = vector.shape_cast %29 : vector<1x1x64x128xbf16> to vector<64x128xbf16>
      %cst_23 = arith.constant dense<0.000000e+00> : vector<16x128xf32>
      %31 = tpu.matmul %9, %30, %cst_23 {dimension_numbers = #tpu.dot_dimension_numbers<[1], [0], [0], [1], [0, 0, 1, 1], [], []>} : vector<16x64xbf16>, vector<64x128xbf16>, vector<16x128xf32> -> vector<16x128xf32>
      %32 = vector.broadcast %10 : vector<16x1xf32> to vector<16x128xf32>
      %33 = arith.addf %31, %32 : vector<16x128xf32>
      %cst_24 = arith.constant 0.000000e+00 : f32
      %34 = vector.broadcast %cst_24 : f32 to vector<16x128xf32>
      %35 = arith.maximumf %33, %34 : vector<16x128xf32>
      %36 = arith.truncf %35 : vector<16x128xf32> to vector<16x128xbf16>
      %c32 = arith.constant 32 : index
      %c0_25 = arith.constant 0 : index
      %37 = vector.load %arg15[%c32, %c0_25] : memref<128x128xbf16, #tpu.memory_space<vmem>>, vector<16x128xbf16>
      tpu.vector_store %arg15[%c32, %c0_25], %36 {strides = array<i32>} : memref<128x128xbf16, #tpu.memory_space<vmem>>, vector<16x128xbf16>,
      %c0_26 = arith.constant 0 : index
      %c3 = arith.constant 3 : index
      %c0_27 = arith.constant 0 : index
      %c0_28 = arith.constant 0 : index
      %38 = vector.load %arg3[%c0_26, %c3, %c0_27, %c0_28] : memref<1x8x64x128xbf16, #tpu.memory_space<vmem>>, vector<1x1x64x128xbf16>
      %39 = vector.shape_cast %38 : vector<1x1x64x128xbf16> to vector<64x128xbf16>
      %cst_29 = arith.constant dense<0.000000e+00> : vector<16x128xf32>
      %40 = tpu.matmul %9, %39, %cst_29 {dimension_numbers = #tpu.dot_dimension_numbers<[1], [0], [0], [1], [0, 0, 1, 1], [], []>} : vector<16x64xbf16>, vector<64x128xbf16>, vector<16x128xf32> -> vector<16x128xf32>
      %41 = vector.broadcast %10 : vector<16x1xf32> to vector<16x128xf32>
      %42 = arith.addf %40, %41 : vector<16x128xf32>
      %cst_30 = arith.constant 0.000000e+00 : f32
      %43 = vector.broadcast %cst_30 : f32 to vector<16x128xf32>
      %44 = arith.maximumf %42, %43 : vector<16x128xf32>
      %45 = arith.truncf %44 : vector<16x128xf32> to vector<16x128xbf16>
      %c48 = arith.constant 48 : index
      %c0_31 = arith.constant 0 : index
      %46 = vector.load %arg15[%c48, %c0_31] : memref<128x128xbf16, #tpu.memory_space<vmem>>, vector<16x128xbf16>
      tpu.vector_store %arg15[%c48, %c0_31], %45 {strides = array<i32>} : memref<128x128xbf16, #tpu.memory_space<vmem>>, vector<16x128xbf16>,
      %c0_32 = arith.constant 0 : index
      %c4 = arith.constant 4 : index
      %c0_33 = arith.constant 0 : index
      %c0_34 = arith.constant 0 : index
      %47 = vector.load %arg3[%c0_32, %c4, %c0_33, %c0_34] : memref<1x8x64x128xbf16, #tpu.memory_space<vmem>>, vector<1x1x64x128xbf16>
      %48 = vector.shape_cast %47 : vector<1x1x64x128xbf16> to vector<64x128xbf16>
      %cst_35 = arith.constant dense<0.000000e+00> : vector<16x128xf32>
      %49 = tpu.matmul %9, %48, %cst_35 {dimension_numbers = #tpu.dot_dimension_numbers<[1], [0], [0], [1], [0, 0, 1, 1], [], []>} : vector<16x64xbf16>, vector<64x128xbf16>, vector<16x128xf32> -> vector<16x128xf32>
      %50 = vector.broadcast %10 : vector<16x1xf32> to vector<16x128xf32>
      %51 = arith.addf %49, %50 : vector<16x128xf32>
      %cst_36 = arith.constant 0.000000e+00 : f32
      %52 = vector.broadcast %cst_36 : f32 to vector<16x128xf32>
      %53 = arith.maximumf %51, %52 : vector<16x128xf32>
      %54 = arith.truncf %53 : vector<16x128xf32> to vector<16x128xbf16>
      %c64 = arith.constant 64 : index
      %c0_37 = arith.constant 0 : index
      %55 = vector.load %arg15[%c64, %c0_37] : memref<128x128xbf16, #tpu.memory_space<vmem>>, vector<16x128xbf16>
      tpu.vector_store %arg15[%c64, %c0_37], %54 {strides = array<i32>} : memref<128x128xbf16, #tpu.memory_space<vmem>>, vector<16x128xbf16>,
      %c0_38 = arith.constant 0 : index
      %c5 = arith.constant 5 : index
      %c0_39 = arith.constant 0 : index
      %c0_40 = arith.constant 0 : index
      %56 = vector.load %arg3[%c0_38, %c5, %c0_39, %c0_40] : memref<1x8x64x128xbf16, #tpu.memory_space<vmem>>, vector<1x1x64x128xbf16>
      %57 = vector.shape_cast %56 : vector<1x1x64x128xbf16> to vector<64x128xbf16>
      %cst_41 = arith.constant dense<0.000000e+00> : vector<16x128xf32>
      %58 = tpu.matmul %9, %57, %cst_41 {dimension_numbers = #tpu.dot_dimension_numbers<[1], [0], [0], [1], [0, 0, 1, 1], [], []>} : vector<16x64xbf16>, vector<64x128xbf16>, vector<16x128xf32> -> vector<16x128xf32>
      %59 = vector.broadcast %10 : vector<16x1xf32> to vector<16x128xf32>
      %60 = arith.addf %58, %59 : vector<16x128xf32>
      %cst_42 = arith.constant 0.000000e+00 : f32
      %61 = vector.broadcast %cst_42 : f32 to vector<16x128xf32>
      %62 = arith.maximumf %60, %61 : vector<16x128xf32>
      %63 = arith.truncf %62 : vector<16x128xf32> to vector<16x128xbf16>
      %c80 = arith.constant 80 : index
      %c0_43 = arith.constant 0 : index
      %64 = vector.load %arg15[%c80, %c0_43] : memref<128x128xbf16, #tpu.memory_space<vmem>>, vector<16x128xbf16>
      tpu.vector_store %arg15[%c80, %c0_43], %63 {strides = array<i32>} : memref<128x128xbf16, #tpu.memory_space<vmem>>, vector<16x128xbf16>,
      %c0_44 = arith.constant 0 : index
      %c6 = arith.constant 6 : index
      %c0_45 = arith.constant 0 : index
      %c0_46 = arith.constant 0 : index
      %65 = vector.load %arg3[%c0_44, %c6, %c0_45, %c0_46] : memref<1x8x64x128xbf16, #tpu.memory_space<vmem>>, vector<1x1x64x128xbf16>
      %66 = vector.shape_cast %65 : vector<1x1x64x128xbf16> to vector<64x128xbf16>
      %cst_47 = arith.constant dense<0.000000e+00> : vector<16x128xf32>
      %67 = tpu.matmul %9, %66, %cst_47 {dimension_numbers = #tpu.dot_dimension_numbers<[1], [0], [0], [1], [0, 0, 1, 1], [], []>} : vector<16x64xbf16>, vector<64x128xbf16>, vector<16x128xf32> -> vector<16x128xf32>
      %68 = vector.broadcast %10 : vector<16x1xf32> to vector<16x128xf32>
      %69 = arith.addf %67, %68 : vector<16x128xf32>
      %cst_48 = arith.constant 0.000000e+00 : f32
      %70 = vector.broadcast %cst_48 : f32 to vector<16x128xf32>
      %71 = arith.maximumf %69, %70 : vector<16x128xf32>
      %72 = arith.truncf %71 : vector<16x128xf32> to vector<16x128xbf16>
      %c96 = arith.constant 96 : index
      %c0_49 = arith.constant 0 : index
      %73 = vector.load %arg15[%c96, %c0_49] : memref<128x128xbf16, #tpu.memory_space<vmem>>, vector<16x128xbf16>
      tpu.vector_store %arg15[%c96, %c0_49], %72 {strides = array<i32>} : memref<128x128xbf16, #tpu.memory_space<vmem>>, vector<16x128xbf16>,
      %c0_50 = arith.constant 0 : index
      %c7 = arith.constant 7 : index
      %c0_51 = arith.constant 0 : index
      %c0_52 = arith.constant 0 : index
      %74 = vector.load %arg3[%c0_50, %c7, %c0_51, %c0_52] : memref<1x8x64x128xbf16, #tpu.memory_space<vmem>>, vector<1x1x64x128xbf16>
      %75 = vector.shape_cast %74 : vector<1x1x64x128xbf16> to vector<64x128xbf16>
      %cst_53 = arith.constant dense<0.000000e+00> : vector<16x128xf32>
      %76 = tpu.matmul %9, %75, %cst_53 {dimension_numbers = #tpu.dot_dimension_numbers<[1], [0], [0], [1], [0, 0, 1, 1], [], []>} : vector<16x64xbf16>, vector<64x128xbf16>, vector<16x128xf32> -> vector<16x128xf32>
      %77 = vector.broadcast %10 : vector<16x1xf32> to vector<16x128xf32>
      %78 = arith.addf %76, %77 : vector<16x128xf32>
      %cst_54 = arith.constant 0.000000e+00 : f32
      %79 = vector.broadcast %cst_54 : f32 to vector<16x128xf32>
      %80 = arith.maximumf %78, %79 : vector<16x128xf32>
      %81 = arith.truncf %80 : vector<16x128xf32> to vector<16x128xbf16>
      %c112 = arith.constant 112 : index
      %c0_55 = arith.constant 0 : index
      %82 = vector.load %arg15[%c112, %c0_55] : memref<128x128xbf16, #tpu.memory_space<vmem>>, vector<16x128xbf16>
      tpu.vector_store %arg15[%c112, %c0_55], %81 {strides = array<i32>} : memref<128x128xbf16, #tpu.memory_space<vmem>>, vector<16x128xbf16>,
      %cst_56 = arith.constant 0.000000e+00 : f32
      %83 = vector.broadcast %cst_56 : f32 to vector<16x128xf32>
      %c0_57 = arith.constant 0 : index
      %c0_58 = arith.constant 0 : index
      %c0_59 = arith.constant 0 : index
      %84 = vector.load %arg6[%c0_57, %c0_58, %c0_59] : memref<3x128x128xbf16, #tpu.memory_space<vmem>>, vector<1x128x128xbf16>
      %85 = vector.shape_cast %84 : vector<1x128x128xbf16> to vector<128x128xbf16>
      %c0_60 = arith.constant 0 : index
      %c0_61 = arith.constant 0 : index
      %86 = vector.load %arg15[%c0_60, %c0_61] : memref<128x128xbf16, #tpu.memory_space<vmem>>, vector<128x128xbf16>
      %cst_62 = arith.constant dense<0.000000e+00> : vector<128x128xf32>
      %87 = tpu.matmul %85, %86, %cst_62 {dimension_numbers = #tpu.dot_dimension_numbers<[1], [0], [0], [1], [0, 0, 1, 1], [], []>} : vector<128x128xbf16>, vector<128x128xbf16>, vector<128x128xf32> -> vector<128x128xf32>
      %c0_63 = arith.constant 0 : index
      %c0_64 = arith.constant 0 : index
      %c0_65 = arith.constant 0 : index
      %88 = vector.load %arg7[%c0_63, %c0_64, %c0_65] : memref<3x128x1xf32, #tpu.memory_space<vmem>>, vector<1x128x1xf32>
      %89 = vector.shape_cast %88 : vector<1x128x1xf32> to vector<128x1xf32>
      %90 = vector.broadcast %89 : vector<128x1xf32> to vector<128x128xf32>
      %91 = arith.addf %87, %90 : vector<128x128xf32>
      %cst_66 = arith.constant 0.000000e+00 : f32
      %92 = vector.broadcast %cst_66 : f32 to vector<128x128xf32>
      %93 = arith.maximumf %91, %92 : vector<128x128xf32>
      %94 = arith.truncf %93 : vector<128x128xf32> to vector<128x128xbf16>
      %c0_67 = arith.constant 0 : index
      %c0_68 = arith.constant 0 : index
      %95 = vector.load %arg15[%c0_67, %c0_68] : memref<128x128xbf16, #tpu.memory_space<vmem>>, vector<128x128xbf16>
      tpu.vector_store %arg15[%c0_67, %c0_68], %94 {strides = array<i32>} : memref<128x128xbf16, #tpu.memory_space<vmem>>, vector<128x128xbf16>,
      %96 = vector.extract_strided_slice %94 {offsets = [0, 0], sizes = [16, 128], strides = [1, 1]} : vector<128x128xbf16> to vector<16x128xbf16>
      %97 = arith.index_cast %arg2 : i32 to index
      %c0_69 = arith.constant 0 : index
      %c0_70 = arith.constant 0 : index
      %c0_71 = arith.constant 0 : index
      %98 = vector.load %arg16[%97, %c0_69, %c0_70, %c0_71] : memref<2x8x48x128xbf16, #tpu.memory_space<vmem>>, vector<1x1x16x128xbf16>
      %99 = vector.shape_cast %98 : vector<1x1x16x128xbf16> to vector<16x128xbf16>
      %100 = vector.shape_cast %96 : vector<16x128xbf16> to vector<1x1x16x128xbf16>
      tpu.vector_store %arg16[%97, %c0_69, %c0_70, %c0_71], %100 {strides = array<i32>} : memref<2x8x48x128xbf16, #tpu.memory_space<vmem>>, vector<1x1x16x128xbf16>,
      %101 = vector.extract_strided_slice %93 {offsets = [0, 0], sizes = [16, 128], strides = [1, 1]} : vector<128x128xf32> to vector<16x128xf32>
      %102 = arith.addf %83, %101 : vector<16x128xf32>
      %103 = vector.extract_strided_slice %94 {offsets = [16, 0], sizes = [16, 128], strides = [1, 1]} : vector<128x128xbf16> to vector<16x128xbf16>
      %104 = arith.index_cast %arg2 : i32 to index
      %c1_72 = arith.constant 1 : index
      %c0_73 = arith.constant 0 : index
      %c0_74 = arith.constant 0 : index
      %105 = vector.load %arg16[%104, %c1_72, %c0_73, %c0_74] : memref<2x8x48x128xbf16, #tpu.memory_space<vmem>>, vector<1x1x16x128xbf16>
      %106 = vector.shape_cast %105 : vector<1x1x16x128xbf16> to vector<16x128xbf16>
      %107 = vector.shape_cast %103 : vector<16x128xbf16> to vector<1x1x16x128xbf16>
      tpu.vector_store %arg16[%104, %c1_72, %c0_73, %c0_74], %107 {strides = array<i32>} : memref<2x8x48x128xbf16, #tpu.memory_space<vmem>>, vector<1x1x16x128xbf16>,
      %108 = vector.extract_strided_slice %93 {offsets = [16, 0], sizes = [16, 128], strides = [1, 1]} : vector<128x128xf32> to vector<16x128xf32>
      %109 = arith.addf %102, %108 : vector<16x128xf32>
      %110 = vector.extract_strided_slice %94 {offsets = [32, 0], sizes = [16, 128], strides = [1, 1]} : vector<128x128xbf16> to vector<16x128xbf16>
      %111 = arith.index_cast %arg2 : i32 to index
      %c2_75 = arith.constant 2 : index
      %c0_76 = arith.constant 0 : index
      %c0_77 = arith.constant 0 : index
      %112 = vector.load %arg16[%111, %c2_75, %c0_76, %c0_77] : memref<2x8x48x128xbf16, #tpu.memory_space<vmem>>, vector<1x1x16x128xbf16>
      %113 = vector.shape_cast %112 : vector<1x1x16x128xbf16> to vector<16x128xbf16>
      %114 = vector.shape_cast %110 : vector<16x128xbf16> to vector<1x1x16x128xbf16>
      tpu.vector_store %arg16[%111, %c2_75, %c0_76, %c0_77], %114 {strides = array<i32>} : memref<2x8x48x128xbf16, #tpu.memory_space<vmem>>, vector<1x1x16x128xbf16>,
      %115 = vector.extract_strided_slice %93 {offsets = [32, 0], sizes = [16, 128], strides = [1, 1]} : vector<128x128xf32> to vector<16x128xf32>
      %116 = arith.addf %109, %115 : vector<16x128xf32>
      %117 = vector.extract_strided_slice %94 {offsets = [48, 0], sizes = [16, 128], strides = [1, 1]} : vector<128x128xbf16> to vector<16x128xbf16>
      %118 = arith.index_cast %arg2 : i32 to index
      %c3_78 = arith.constant 3 : index
      %c0_79 = arith.constant 0 : index
      %c0_80 = arith.constant 0 : index
      %119 = vector.load %arg16[%118, %c3_78, %c0_79, %c0_80] : memref<2x8x48x128xbf16, #tpu.memory_space<vmem>>, vector<1x1x16x128xbf16>
      %120 = vector.shape_cast %119 : vector<1x1x16x128xbf16> to vector<16x128xbf16>
      %121 = vector.shape_cast %117 : vector<16x128xbf16> to vector<1x1x16x128xbf16>
      tpu.vector_store %arg16[%118, %c3_78, %c0_79, %c0_80], %121 {strides = array<i32>} : memref<2x8x48x128xbf16, #tpu.memory_space<vmem>>, vector<1x1x16x128xbf16>,
      %122 = vector.extract_strided_slice %93 {offsets = [48, 0], sizes = [16, 128], strides = [1, 1]} : vector<128x128xf32> to vector<16x128xf32>
      %123 = arith.addf %116, %122 : vector<16x128xf32>
      %124 = vector.extract_strided_slice %94 {offsets = [64, 0], sizes = [16, 128], strides = [1, 1]} : vector<128x128xbf16> to vector<16x128xbf16>
      %125 = arith.index_cast %arg2 : i32 to index
      %c4_81 = arith.constant 4 : index
      %c0_82 = arith.constant 0 : index
      %c0_83 = arith.constant 0 : index
      %126 = vector.load %arg16[%125, %c4_81, %c0_82, %c0_83] : memref<2x8x48x128xbf16, #tpu.memory_space<vmem>>, vector<1x1x16x128xbf16>
      %127 = vector.shape_cast %126 : vector<1x1x16x128xbf16> to vector<16x128xbf16>
      %128 = vector.shape_cast %124 : vector<16x128xbf16> to vector<1x1x16x128xbf16>
      tpu.vector_store %arg16[%125, %c4_81, %c0_82, %c0_83], %128 {strides = array<i32>} : memref<2x8x48x128xbf16, #tpu.memory_space<vmem>>, vector<1x1x16x128xbf16>,
      %129 = vector.extract_strided_slice %93 {offsets = [64, 0], sizes = [16, 128], strides = [1, 1]} : vector<128x128xf32> to vector<16x128xf32>
      %130 = arith.addf %123, %129 : vector<16x128xf32>
      %131 = vector.extract_strided_slice %94 {offsets = [80, 0], sizes = [16, 128], strides = [1, 1]} : vector<128x128xbf16> to vector<16x128xbf16>
      %132 = arith.index_cast %arg2 : i32 to index
      %c5_84 = arith.constant 5 : index
      %c0_85 = arith.constant 0 : index
      %c0_86 = arith.constant 0 : index
      %133 = vector.load %arg16[%132, %c5_84, %c0_85, %c0_86] : memref<2x8x48x128xbf16, #tpu.memory_space<vmem>>, vector<1x1x16x128xbf16>
      %134 = vector.shape_cast %133 : vector<1x1x16x128xbf16> to vector<16x128xbf16>
      %135 = vector.shape_cast %131 : vector<16x128xbf16> to vector<1x1x16x128xbf16>
      tpu.vector_store %arg16[%132, %c5_84, %c0_85, %c0_86], %135 {strides = array<i32>} : memref<2x8x48x128xbf16, #tpu.memory_space<vmem>>, vector<1x1x16x128xbf16>,
      %136 = vector.extract_strided_slice %93 {offsets = [80, 0], sizes = [16, 128], strides = [1, 1]} : vector<128x128xf32> to vector<16x128xf32>
      %137 = arith.addf %130, %136 : vector<16x128xf32>
      %138 = vector.extract_strided_slice %94 {offsets = [96, 0], sizes = [16, 128], strides = [1, 1]} : vector<128x128xbf16> to vector<16x128xbf16>
      %139 = arith.index_cast %arg2 : i32 to index
      %c6_87 = arith.constant 6 : index
      %c0_88 = arith.constant 0 : index
      %c0_89 = arith.constant 0 : index
      %140 = vector.load %arg16[%139, %c6_87, %c0_88, %c0_89] : memref<2x8x48x128xbf16, #tpu.memory_space<vmem>>, vector<1x1x16x128xbf16>
      %141 = vector.shape_cast %140 : vector<1x1x16x128xbf16> to vector<16x128xbf16>
      %142 = vector.shape_cast %138 : vector<16x128xbf16> to vector<1x1x16x128xbf16>
      tpu.vector_store %arg16[%139, %c6_87, %c0_88, %c0_89], %142 {strides = array<i32>} : memref<2x8x48x128xbf16, #tpu.memory_space<vmem>>, vector<1x1x16x128xbf16>,
      %143 = vector.extract_strided_slice %93 {offsets = [96, 0], sizes = [16, 128], strides = [1, 1]} : vector<128x128xf32> to vector<16x128xf32>
      %144 = arith.addf %137, %143 : vector<16x128xf32>
      %145 = vector.extract_strided_slice %94 {offsets = [112, 0], sizes = [16, 128], strides = [1, 1]} : vector<128x128xbf16> to vector<16x128xbf16>
      %146 = arith.index_cast %arg2 : i32 to index
      %c7_90 = arith.constant 7 : index
      %c0_91 = arith.constant 0 : index
      %c0_92 = arith.constant 0 : index
      %147 = vector.load %arg16[%146, %c7_90, %c0_91, %c0_92] : memref<2x8x48x128xbf16, #tpu.memory_space<vmem>>, vector<1x1x16x128xbf16>
      %148 = vector.shape_cast %147 : vector<1x1x16x128xbf16> to vector<16x128xbf16>
      %149 = vector.shape_cast %145 : vector<16x128xbf16> to vector<1x1x16x128xbf16>
      tpu.vector_store %arg16[%146, %c7_90, %c0_91, %c0_92], %149 {strides = array<i32>} : memref<2x8x48x128xbf16, #tpu.memory_space<vmem>>, vector<1x1x16x128xbf16>,
      %150 = vector.extract_strided_slice %93 {offsets = [112, 0], sizes = [16, 128], strides = [1, 1]} : vector<128x128xf32> to vector<16x128xf32>
      %151 = arith.addf %144, %150 : vector<16x128xf32>
      %c1_93 = arith.constant 1 : index
      %c0_94 = arith.constant 0 : index
      %c0_95 = arith.constant 0 : index
      %152 = vector.load %arg6[%c1_93, %c0_94, %c0_95] : memref<3x128x128xbf16, #tpu.memory_space<vmem>>, vector<1x128x128xbf16>
      %153 = vector.shape_cast %152 : vector<1x128x128xbf16> to vector<128x128xbf16>
      %c0_96 = arith.constant 0 : index
      %c0_97 = arith.constant 0 : index
      %154 = vector.load %arg15[%c0_96, %c0_97] : memref<128x128xbf16, #tpu.memory_space<vmem>>, vector<128x128xbf16>
      %cst_98 = arith.constant dense<0.000000e+00> : vector<128x128xf32>
      %155 = tpu.matmul %153, %154, %cst_98 {dimension_numbers = #tpu.dot_dimension_numbers<[1], [0], [0], [1], [0, 0, 1, 1], [], []>} : vector<128x128xbf16>, vector<128x128xbf16>, vector<128x128xf32> -> vector<128x128xf32>
      %c1_99 = arith.constant 1 : index
      %c0_100 = arith.constant 0 : index
      %c0_101 = arith.constant 0 : index
      %156 = vector.load %arg7[%c1_99, %c0_100, %c0_101] : memref<3x128x1xf32, #tpu.memory_space<vmem>>, vector<1x128x1xf32>
      %157 = vector.shape_cast %156 : vector<1x128x1xf32> to vector<128x1xf32>
      %158 = vector.broadcast %157 : vector<128x1xf32> to vector<128x128xf32>
      %159 = arith.addf %155, %158 : vector<128x128xf32>
      %cst_102 = arith.constant 0.000000e+00 : f32
      %160 = vector.broadcast %cst_102 : f32 to vector<128x128xf32>
      %161 = arith.maximumf %159, %160 : vector<128x128xf32>
      %162 = arith.truncf %161 : vector<128x128xf32> to vector<128x128xbf16>
      %c0_103 = arith.constant 0 : index
      %c0_104 = arith.constant 0 : index
      %163 = vector.load %arg15[%c0_103, %c0_104] : memref<128x128xbf16, #tpu.memory_space<vmem>>, vector<128x128xbf16>
      tpu.vector_store %arg15[%c0_103, %c0_104], %162 {strides = array<i32>} : memref<128x128xbf16, #tpu.memory_space<vmem>>, vector<128x128xbf16>,
      %164 = vector.extract_strided_slice %162 {offsets = [0, 0], sizes = [16, 128], strides = [1, 1]} : vector<128x128xbf16> to vector<16x128xbf16>
      %165 = arith.index_cast %arg2 : i32 to index
      %c0_105 = arith.constant 0 : index
      %c16_106 = arith.constant 16 : index
      %c0_107 = arith.constant 0 : index
      %166 = vector.load %arg16[%165, %c0_105, %c16_106, %c0_107] : memref<2x8x48x128xbf16, #tpu.memory_space<vmem>>, vector<1x1x16x128xbf16>
      %167 = vector.shape_cast %166 : vector<1x1x16x128xbf16> to vector<16x128xbf16>
      %168 = vector.shape_cast %164 : vector<16x128xbf16> to vector<1x1x16x128xbf16>
      tpu.vector_store %arg16[%165, %c0_105, %c16_106, %c0_107], %168 {strides = array<i32>} : memref<2x8x48x128xbf16, #tpu.memory_space<vmem>>, vector<1x1x16x128xbf16>,
      %169 = vector.extract_strided_slice %161 {offsets = [0, 0], sizes = [16, 128], strides = [1, 1]} : vector<128x128xf32> to vector<16x128xf32>
      %170 = arith.addf %151, %169 : vector<16x128xf32>
      %171 = vector.extract_strided_slice %162 {offsets = [16, 0], sizes = [16, 128], strides = [1, 1]} : vector<128x128xbf16> to vector<16x128xbf16>
      %172 = arith.index_cast %arg2 : i32 to index
      %c1_108 = arith.constant 1 : index
      %c16_109 = arith.constant 16 : index
      %c0_110 = arith.constant 0 : index
      %173 = vector.load %arg16[%172, %c1_108, %c16_109, %c0_110] : memref<2x8x48x128xbf16, #tpu.memory_space<vmem>>, vector<1x1x16x128xbf16>
      %174 = vector.shape_cast %173 : vector<1x1x16x128xbf16> to vector<16x128xbf16>
      %175 = vector.shape_cast %171 : vector<16x128xbf16> to vector<1x1x16x128xbf16>
      tpu.vector_store %arg16[%172, %c1_108, %c16_109, %c0_110], %175 {strides = array<i32>} : memref<2x8x48x128xbf16, #tpu.memory_space<vmem>>, vector<1x1x16x128xbf16>,
      %176 = vector.extract_strided_slice %161 {offsets = [16, 0], sizes = [16, 128], strides = [1, 1]} : vector<128x128xf32> to vector<16x128xf32>
      %177 = arith.addf %170, %176 : vector<16x128xf32>
      %178 = vector.extract_strided_slice %162 {offsets = [32, 0], sizes = [16, 128], strides = [1, 1]} : vector<128x128xbf16> to vector<16x128xbf16>
      %179 = arith.index_cast %arg2 : i32 to index
      %c2_111 = arith.constant 2 : index
      %c16_112 = arith.constant 16 : index
      %c0_113 = arith.constant 0 : index
      %180 = vector.load %arg16[%179, %c2_111, %c16_112, %c0_113] : memref<2x8x48x128xbf16, #tpu.memory_space<vmem>>, vector<1x1x16x128xbf16>
      %181 = vector.shape_cast %180 : vector<1x1x16x128xbf16> to vector<16x128xbf16>
      %182 = vector.shape_cast %178 : vector<16x128xbf16> to vector<1x1x16x128xbf16>
      tpu.vector_store %arg16[%179, %c2_111, %c16_112, %c0_113], %182 {strides = array<i32>} : memref<2x8x48x128xbf16, #tpu.memory_space<vmem>>, vector<1x1x16x128xbf16>,
      %183 = vector.extract_strided_slice %161 {offsets = [32, 0], sizes = [16, 128], strides = [1, 1]} : vector<128x128xf32> to vector<16x128xf32>
      %184 = arith.addf %177, %183 : vector<16x128xf32>
      %185 = vector.extract_strided_slice %162 {offsets = [48, 0], sizes = [16, 128], strides = [1, 1]} : vector<128x128xbf16> to vector<16x128xbf16>
      %186 = arith.index_cast %arg2 : i32 to index
      %c3_114 = arith.constant 3 : index
      %c16_115 = arith.constant 16 : index
      %c0_116 = arith.constant 0 : index
      %187 = vector.load %arg16[%186, %c3_114, %c16_115, %c0_116] : memref<2x8x48x128xbf16, #tpu.memory_space<vmem>>, vector<1x1x16x128xbf16>
      %188 = vector.shape_cast %187 : vector<1x1x16x128xbf16> to vector<16x128xbf16>
      %189 = vector.shape_cast %185 : vector<16x128xbf16> to vector<1x1x16x128xbf16>
      tpu.vector_store %arg16[%186, %c3_114, %c16_115, %c0_116], %189 {strides = array<i32>} : memref<2x8x48x128xbf16, #tpu.memory_space<vmem>>, vector<1x1x16x128xbf16>,
      %190 = vector.extract_strided_slice %161 {offsets = [48, 0], sizes = [16, 128], strides = [1, 1]} : vector<128x128xf32> to vector<16x128xf32>
      %191 = arith.addf %184, %190 : vector<16x128xf32>
      %192 = vector.extract_strided_slice %162 {offsets = [64, 0], sizes = [16, 128], strides = [1, 1]} : vector<128x128xbf16> to vector<16x128xbf16>
      %193 = arith.index_cast %arg2 : i32 to index
      %c4_117 = arith.constant 4 : index
      %c16_118 = arith.constant 16 : index
      %c0_119 = arith.constant 0 : index
      %194 = vector.load %arg16[%193, %c4_117, %c16_118, %c0_119] : memref<2x8x48x128xbf16, #tpu.memory_space<vmem>>, vector<1x1x16x128xbf16>
      %195 = vector.shape_cast %194 : vector<1x1x16x128xbf16> to vector<16x128xbf16>
      %196 = vector.shape_cast %192 : vector<16x128xbf16> to vector<1x1x16x128xbf16>
      tpu.vector_store %arg16[%193, %c4_117, %c16_118, %c0_119], %196 {strides = array<i32>} : memref<2x8x48x128xbf16, #tpu.memory_space<vmem>>, vector<1x1x16x128xbf16>,
      %197 = vector.extract_strided_slice %161 {offsets = [64, 0], sizes = [16, 128], strides = [1, 1]} : vector<128x128xf32> to vector<16x128xf32>
      %198 = arith.addf %191, %197 : vector<16x128xf32>
      %199 = vector.extract_strided_slice %162 {offsets = [80, 0], sizes = [16, 128], strides = [1, 1]} : vector<128x128xbf16> to vector<16x128xbf16>
      %200 = arith.index_cast %arg2 : i32 to index
      %c5_120 = arith.constant 5 : index
      %c16_121 = arith.constant 16 : index
      %c0_122 = arith.constant 0 : index
      %201 = vector.load %arg16[%200, %c5_120, %c16_121, %c0_122] : memref<2x8x48x128xbf16, #tpu.memory_space<vmem>>, vector<1x1x16x128xbf16>
      %202 = vector.shape_cast %201 : vector<1x1x16x128xbf16> to vector<16x128xbf16>
      %203 = vector.shape_cast %199 : vector<16x128xbf16> to vector<1x1x16x128xbf16>
      tpu.vector_store %arg16[%200, %c5_120, %c16_121, %c0_122], %203 {strides = array<i32>} : memref<2x8x48x128xbf16, #tpu.memory_space<vmem>>, vector<1x1x16x128xbf16>,
      %204 = vector.extract_strided_slice %161 {offsets = [80, 0], sizes = [16, 128], strides = [1, 1]} : vector<128x128xf32> to vector<16x128xf32>
      %205 = arith.addf %198, %204 : vector<16x128xf32>
      %206 = vector.extract_strided_slice %162 {offsets = [96, 0], sizes = [16, 128], strides = [1, 1]} : vector<128x128xbf16> to vector<16x128xbf16>
      %207 = arith.index_cast %arg2 : i32 to index
      %c6_123 = arith.constant 6 : index
      %c16_124 = arith.constant 16 : index
      %c0_125 = arith.constant 0 : index
      %208 = vector.load %arg16[%207, %c6_123, %c16_124, %c0_125] : memref<2x8x48x128xbf16, #tpu.memory_space<vmem>>, vector<1x1x16x128xbf16>
      %209 = vector.shape_cast %208 : vector<1x1x16x128xbf16> to vector<16x128xbf16>
      %210 = vector.shape_cast %206 : vector<16x128xbf16> to vector<1x1x16x128xbf16>
      tpu.vector_store %arg16[%207, %c6_123, %c16_124, %c0_125], %210 {strides = array<i32>} : memref<2x8x48x128xbf16, #tpu.memory_space<vmem>>, vector<1x1x16x128xbf16>,
      %211 = vector.extract_strided_slice %161 {offsets = [96, 0], sizes = [16, 128], strides = [1, 1]} : vector<128x128xf32> to vector<16x128xf32>
      %212 = arith.addf %205, %211 : vector<16x128xf32>
      %213 = vector.extract_strided_slice %162 {offsets = [112, 0], sizes = [16, 128], strides = [1, 1]} : vector<128x128xbf16> to vector<16x128xbf16>
      %214 = arith.index_cast %arg2 : i32 to index
      %c7_126 = arith.constant 7 : index
      %c16_127 = arith.constant 16 : index
      %c0_128 = arith.constant 0 : index
      %215 = vector.load %arg16[%214, %c7_126, %c16_127, %c0_128] : memref<2x8x48x128xbf16, #tpu.memory_space<vmem>>, vector<1x1x16x128xbf16>
      %216 = vector.shape_cast %215 : vector<1x1x16x128xbf16> to vector<16x128xbf16>
      %217 = vector.shape_cast %213 : vector<16x128xbf16> to vector<1x1x16x128xbf16>
      tpu.vector_store %arg16[%214, %c7_126, %c16_127, %c0_128], %217 {strides = array<i32>} : memref<2x8x48x128xbf16, #tpu.memory_space<vmem>>, vector<1x1x16x128xbf16>,
      %218 = vector.extract_strided_slice %161 {offsets = [112, 0], sizes = [16, 128], strides = [1, 1]} : vector<128x128xf32> to vector<16x128xf32>
      %219 = arith.addf %212, %218 : vector<16x128xf32>
      %c2_129 = arith.constant 2 : index
      %c0_130 = arith.constant 0 : index
      %c0_131 = arith.constant 0 : index
      %220 = vector.load %arg6[%c2_129, %c0_130, %c0_131] : memref<3x128x128xbf16, #tpu.memory_space<vmem>>, vector<1x128x128xbf16>
      %221 = vector.shape_cast %220 : vector<1x128x128xbf16> to vector<128x128xbf16>
      %c0_132 = arith.constant 0 : index
      %c0_133 = arith.constant 0 : index
      %222 = vector.load %arg15[%c0_132, %c0_133] : memref<128x128xbf16, #tpu.memory_space<vmem>>, vector<128x128xbf16>
      %cst_134 = arith.constant dense<0.000000e+00> : vector<128x128xf32>
      %223 = tpu.matmul %221, %222, %cst_134 {dimension_numbers = #tpu.dot_dimension_numbers<[1], [0], [0], [1], [0, 0, 1, 1], [], []>} : vector<128x128xbf16>, vector<128x128xbf16>, vector<128x128xf32> -> vector<128x128xf32>
      %c2_135 = arith.constant 2 : index
      %c0_136 = arith.constant 0 : index
      %c0_137 = arith.constant 0 : index
      %224 = vector.load %arg7[%c2_135, %c0_136, %c0_137] : memref<3x128x1xf32, #tpu.memory_space<vmem>>, vector<1x128x1xf32>
      %225 = vector.shape_cast %224 : vector<1x128x1xf32> to vector<128x1xf32>
      %226 = vector.broadcast %225 : vector<128x1xf32> to vector<128x128xf32>
      %227 = arith.addf %223, %226 : vector<128x128xf32>
      %cst_138 = arith.constant 0.000000e+00 : f32
      %228 = vector.broadcast %cst_138 : f32 to vector<128x128xf32>
      %229 = arith.maximumf %227, %228 : vector<128x128xf32>
      %230 = arith.truncf %229 : vector<128x128xf32> to vector<128x128xbf16>
      %c0_139 = arith.constant 0 : index
      %c0_140 = arith.constant 0 : index
      %231 = vector.load %arg15[%c0_139, %c0_140] : memref<128x128xbf16, #tpu.memory_space<vmem>>, vector<128x128xbf16>
      tpu.vector_store %arg15[%c0_139, %c0_140], %230 {strides = array<i32>} : memref<128x128xbf16, #tpu.memory_space<vmem>>, vector<128x128xbf16>,
      %232 = vector.extract_strided_slice %230 {offsets = [0, 0], sizes = [16, 128], strides = [1, 1]} : vector<128x128xbf16> to vector<16x128xbf16>
      %233 = arith.index_cast %arg2 : i32 to index
      %c0_141 = arith.constant 0 : index
      %c32_142 = arith.constant 32 : index
      %c0_143 = arith.constant 0 : index
      %234 = vector.load %arg16[%233, %c0_141, %c32_142, %c0_143] : memref<2x8x48x128xbf16, #tpu.memory_space<vmem>>, vector<1x1x16x128xbf16>
      %235 = vector.shape_cast %234 : vector<1x1x16x128xbf16> to vector<16x128xbf16>
      %236 = vector.shape_cast %232 : vector<16x128xbf16> to vector<1x1x16x128xbf16>
      tpu.vector_store %arg16[%233, %c0_141, %c32_142, %c0_143], %236 {strides = array<i32>} : memref<2x8x48x128xbf16, #tpu.memory_space<vmem>>, vector<1x1x16x128xbf16>,
      %237 = vector.extract_strided_slice %229 {offsets = [0, 0], sizes = [16, 128], strides = [1, 1]} : vector<128x128xf32> to vector<16x128xf32>
      %238 = arith.addf %219, %237 : vector<16x128xf32>
      %239 = vector.extract_strided_slice %230 {offsets = [16, 0], sizes = [16, 128], strides = [1, 1]} : vector<128x128xbf16> to vector<16x128xbf16>
      %240 = arith.index_cast %arg2 : i32 to index
      %c1_144 = arith.constant 1 : index
      %c32_145 = arith.constant 32 : index
      %c0_146 = arith.constant 0 : index
      %241 = vector.load %arg16[%240, %c1_144, %c32_145, %c0_146] : memref<2x8x48x128xbf16, #tpu.memory_space<vmem>>, vector<1x1x16x128xbf16>
      %242 = vector.shape_cast %241 : vector<1x1x16x128xbf16> to vector<16x128xbf16>
      %243 = vector.shape_cast %239 : vector<16x128xbf16> to vector<1x1x16x128xbf16>
      tpu.vector_store %arg16[%240, %c1_144, %c32_145, %c0_146], %243 {strides = array<i32>} : memref<2x8x48x128xbf16, #tpu.memory_space<vmem>>, vector<1x1x16x128xbf16>,
      %244 = vector.extract_strided_slice %229 {offsets = [16, 0], sizes = [16, 128], strides = [1, 1]} : vector<128x128xf32> to vector<16x128xf32>
      %245 = arith.addf %238, %244 : vector<16x128xf32>
      %246 = vector.extract_strided_slice %230 {offsets = [32, 0], sizes = [16, 128], strides = [1, 1]} : vector<128x128xbf16> to vector<16x128xbf16>
      %247 = arith.index_cast %arg2 : i32 to index
      %c2_147 = arith.constant 2 : index
      %c32_148 = arith.constant 32 : index
      %c0_149 = arith.constant 0 : index
      %248 = vector.load %arg16[%247, %c2_147, %c32_148, %c0_149] : memref<2x8x48x128xbf16, #tpu.memory_space<vmem>>, vector<1x1x16x128xbf16>
      %249 = vector.shape_cast %248 : vector<1x1x16x128xbf16> to vector<16x128xbf16>
      %250 = vector.shape_cast %246 : vector<16x128xbf16> to vector<1x1x16x128xbf16>
      tpu.vector_store %arg16[%247, %c2_147, %c32_148, %c0_149], %250 {strides = array<i32>} : memref<2x8x48x128xbf16, #tpu.memory_space<vmem>>, vector<1x1x16x128xbf16>,
      %251 = vector.extract_strided_slice %229 {offsets = [32, 0], sizes = [16, 128], strides = [1, 1]} : vector<128x128xf32> to vector<16x128xf32>
      %252 = arith.addf %245, %251 : vector<16x128xf32>
      %253 = vector.extract_strided_slice %230 {offsets = [48, 0], sizes = [16, 128], strides = [1, 1]} : vector<128x128xbf16> to vector<16x128xbf16>
      %254 = arith.index_cast %arg2 : i32 to index
      %c3_150 = arith.constant 3 : index
      %c32_151 = arith.constant 32 : index
      %c0_152 = arith.constant 0 : index
      %255 = vector.load %arg16[%254, %c3_150, %c32_151, %c0_152] : memref<2x8x48x128xbf16, #tpu.memory_space<vmem>>, vector<1x1x16x128xbf16>
      %256 = vector.shape_cast %255 : vector<1x1x16x128xbf16> to vector<16x128xbf16>
      %257 = vector.shape_cast %253 : vector<16x128xbf16> to vector<1x1x16x128xbf16>
      tpu.vector_store %arg16[%254, %c3_150, %c32_151, %c0_152], %257 {strides = array<i32>} : memref<2x8x48x128xbf16, #tpu.memory_space<vmem>>, vector<1x1x16x128xbf16>,
      %258 = vector.extract_strided_slice %229 {offsets = [48, 0], sizes = [16, 128], strides = [1, 1]} : vector<128x128xf32> to vector<16x128xf32>
      %259 = arith.addf %252, %258 : vector<16x128xf32>
      %260 = vector.extract_strided_slice %230 {offsets = [64, 0], sizes = [16, 128], strides = [1, 1]} : vector<128x128xbf16> to vector<16x128xbf16>
      %261 = arith.index_cast %arg2 : i32 to index
      %c4_153 = arith.constant 4 : index
      %c32_154 = arith.constant 32 : index
      %c0_155 = arith.constant 0 : index
      %262 = vector.load %arg16[%261, %c4_153, %c32_154, %c0_155] : memref<2x8x48x128xbf16, #tpu.memory_space<vmem>>, vector<1x1x16x128xbf16>
      %263 = vector.shape_cast %262 : vector<1x1x16x128xbf16> to vector<16x128xbf16>
      %264 = vector.shape_cast %260 : vector<16x128xbf16> to vector<1x1x16x128xbf16>
      tpu.vector_store %arg16[%261, %c4_153, %c32_154, %c0_155], %264 {strides = array<i32>} : memref<2x8x48x128xbf16, #tpu.memory_space<vmem>>, vector<1x1x16x128xbf16>,
      %265 = vector.extract_strided_slice %229 {offsets = [64, 0], sizes = [16, 128], strides = [1, 1]} : vector<128x128xf32> to vector<16x128xf32>
      %266 = arith.addf %259, %265 : vector<16x128xf32>
      %267 = vector.extract_strided_slice %230 {offsets = [80, 0], sizes = [16, 128], strides = [1, 1]} : vector<128x128xbf16> to vector<16x128xbf16>
      %268 = arith.index_cast %arg2 : i32 to index
      %c5_156 = arith.constant 5 : index
      %c32_157 = arith.constant 32 : index
      %c0_158 = arith.constant 0 : index
      %269 = vector.load %arg16[%268, %c5_156, %c32_157, %c0_158] : memref<2x8x48x128xbf16, #tpu.memory_space<vmem>>, vector<1x1x16x128xbf16>
      %270 = vector.shape_cast %269 : vector<1x1x16x128xbf16> to vector<16x128xbf16>
      %271 = vector.shape_cast %267 : vector<16x128xbf16> to vector<1x1x16x128xbf16>
      tpu.vector_store %arg16[%268, %c5_156, %c32_157, %c0_158], %271 {strides = array<i32>} : memref<2x8x48x128xbf16, #tpu.memory_space<vmem>>, vector<1x1x16x128xbf16>,
      %272 = vector.extract_strided_slice %229 {offsets = [80, 0], sizes = [16, 128], strides = [1, 1]} : vector<128x128xf32> to vector<16x128xf32>
      %273 = arith.addf %266, %272 : vector<16x128xf32>
      %274 = vector.extract_strided_slice %230 {offsets = [96, 0], sizes = [16, 128], strides = [1, 1]} : vector<128x128xbf16> to vector<16x128xbf16>
      %275 = arith.index_cast %arg2 : i32 to index
      %c6_159 = arith.constant 6 : index
      %c32_160 = arith.constant 32 : index
      %c0_161 = arith.constant 0 : index
      %276 = vector.load %arg16[%275, %c6_159, %c32_160, %c0_161] : memref<2x8x48x128xbf16, #tpu.memory_space<vmem>>, vector<1x1x16x128xbf16>
      %277 = vector.shape_cast %276 : vector<1x1x16x128xbf16> to vector<16x128xbf16>
      %278 = vector.shape_cast %274 : vector<16x128xbf16> to vector<1x1x16x128xbf16>
      tpu.vector_store %arg16[%275, %c6_159, %c32_160, %c0_161], %278 {strides = array<i32>} : memref<2x8x48x128xbf16, #tpu.memory_space<vmem>>, vector<1x1x16x128xbf16>,
      %279 = vector.extract_strided_slice %229 {offsets = [96, 0], sizes = [16, 128], strides = [1, 1]} : vector<128x128xf32> to vector<16x128xf32>
      %280 = arith.addf %273, %279 : vector<16x128xf32>
      %281 = vector.extract_strided_slice %230 {offsets = [112, 0], sizes = [16, 128], strides = [1, 1]} : vector<128x128xbf16> to vector<16x128xbf16>
      %282 = arith.index_cast %arg2 : i32 to index
      %c7_162 = arith.constant 7 : index
      %c32_163 = arith.constant 32 : index
      %c0_164 = arith.constant 0 : index
      %283 = vector.load %arg16[%282, %c7_162, %c32_163, %c0_164] : memref<2x8x48x128xbf16, #tpu.memory_space<vmem>>, vector<1x1x16x128xbf16>
      %284 = vector.shape_cast %283 : vector<1x1x16x128xbf16> to vector<16x128xbf16>
      %285 = vector.shape_cast %281 : vector<16x128xbf16> to vector<1x1x16x128xbf16>
      tpu.vector_store %arg16[%282, %c7_162, %c32_163, %c0_164], %285 {strides = array<i32>} : memref<2x8x48x128xbf16, #tpu.memory_space<vmem>>, vector<1x1x16x128xbf16>,
      %286 = vector.extract_strided_slice %229 {offsets = [112, 0], sizes = [16, 128], strides = [1, 1]} : vector<128x128xf32> to vector<16x128xf32>
      %287 = arith.addf %280, %286 : vector<16x128xf32>
      %c0_165 = arith.constant 0 : index
      %c0_166 = arith.constant 0 : index
      %288 = vector.load %arg17[%c0_165, %c0_166] : memref<16x1xf32, #tpu.memory_space<vmem>>, vector<16x1xf32>
      %cst_167 = arith.constant dense<0.000000e+00> : vector<16xf32>
      %289 = vector.multi_reduction <add>, %287, %cst_167 [1] : vector<16x128xf32> to vector<16xf32>
      %290 = vector.shape_cast %289 : vector<16xf32> to vector<16x1xf32>
      %291 = arith.addf %288, %290 : vector<16x1xf32>
      %c0_168 = arith.constant 0 : index
      %c0_169 = arith.constant 0 : index
      %292 = vector.load %arg17[%c0_168, %c0_169] : memref<16x1xf32, #tpu.memory_space<vmem>>, vector<16x1xf32>
      tpu.vector_store %arg17[%c0_168, %c0_169], %291 {strides = array<i32>} : memref<16x1xf32, #tpu.memory_space<vmem>>, vector<16x1xf32>,
    } else {
    }
    %c1_i32 = arith.constant 1 : i32
    %3 = arith.cmpi eq, %arg1, %c1_i32 : i32
    %4 = arith.extui %3 : i1 to i32
    %c0_i32_1 = arith.constant 0 : i32
    %5 = arith.cmpi ne, %4, %c0_i32_1 : i32
    scf.if %5 {
      %c0_i32_2 = arith.constant 0 : i32
      %6 = arith.cmpi eq, %arg2, %c0_i32_2 : i32
      %7 = arith.extui %6 : i1 to i32
      %c0_i32_3 = arith.constant 0 : i32
      %8 = arith.cmpi ne, %7, %c0_i32_3 : i32
      scf.if %8 {
        %c0_71 = arith.constant 0 : index
        %c0_72 = arith.constant 0 : index
        %107 = vector.load %arg17[%c0_71, %c0_72] : memref<16x1xf32, #tpu.memory_space<vmem>>, vector<16x1xf32>
        %cst_73 = arith.constant 1.62760422E-4 : f32
        %108 = vector.broadcast %cst_73 : f32 to vector<16x1xf32>
        %109 = arith.mulf %107, %108 : vector<16x1xf32>
        %110 = tpu.iota {dimensions = array<i32: 0>} : vector<16x16xi32>
        %111 = tpu.iota {dimensions = array<i32: 1>} : vector<16x16xi32>
        %112 = arith.cmpi eq, %110, %111 : vector<16x16xi32>
        %cst_74 = arith.constant 0.000000e+00 : f32
        %113 = vector.shape_cast %109 : vector<16x1xf32> to vector<16x1xf32>
        %114 = vector.broadcast %113 : vector<16x1xf32> to vector<16x16xf32>
        %115 = vector.broadcast %cst_74 : f32 to vector<16x16xf32>
        %116 = arith.select %112, %114, %115 : vector<16x16xi1>, vector<16x16xf32>
        %cst_75 = arith.constant dense<0.000000e+00> : vector<16xf32>
        %117 = vector.multi_reduction <add>, %116, %cst_75 [0] : vector<16x16xf32> to vector<16xf32>
        %118 = vector.shape_cast %117 : vector<16xf32> to vector<1x16xf32>
        %c0_76 = arith.constant 0 : index
        %c0_77 = arith.constant 0 : index
        %119 = vector.load %arg8[%c0_76, %c0_77] : memref<16x32xf32, #tpu.memory_space<vmem>>, vector<16x32xf32>
        %cst_78 = arith.constant dense<0.000000e+00> : vector<1x32xf32>
        %120 = tpu.matmul %118, %119, %cst_78 {dimension_numbers = #tpu.dot_dimension_numbers<[1], [0], [0], [1], [0, 0, 1, 1], [], []>} : vector<1x16xf32>, vector<16x32xf32>, vector<1x32xf32> -> vector<1x32xf32>
        %c0_79 = arith.constant 0 : index
        %c0_80 = arith.constant 0 : index
        %121 = vector.load %arg9[%c0_79, %c0_80] : memref<1x32xf32, #tpu.memory_space<vmem>>, vector<1x32xf32>
        %122 = arith.addf %120, %121 : vector<1x32xf32>
        %cst_81 = arith.constant 0.000000e+00 : f32
        %123 = vector.broadcast %cst_81 : f32 to vector<1x32xf32>
        %124 = arith.maximumf %122, %123 : vector<1x32xf32>
        %c0_82 = arith.constant 0 : index
        %c0_83 = arith.constant 0 : index
        %125 = vector.load %arg11[%c0_82, %c0_83] : memref<3x16xf32, #tpu.memory_space<vmem>>, vector<3x16xf32>
        %c0_84 = arith.constant 0 : index
        %c0_85 = arith.constant 0 : index
        %c0_86 = arith.constant 0 : index
        %126 = vector.load %arg10[%c0_84, %c0_85, %c0_86] : memref<3x32x16xf32, #tpu.memory_space<vmem>>, vector<1x32x16xf32>
        %127 = vector.shape_cast %126 : vector<1x32x16xf32> to vector<32x16xf32>
        %cst_87 = arith.constant dense<0.000000e+00> : vector<1x16xf32>
        %128 = tpu.matmul %124, %127, %cst_87 {dimension_numbers = #tpu.dot_dimension_numbers<[1], [0], [0], [1], [0, 0, 1, 1], [], []>} : vector<1x32xf32>, vector<32x16xf32>, vector<1x16xf32> -> vector<1x16xf32>
        %129 = vector.extract_strided_slice %125 {offsets = [0, 0], sizes = [1, 16], strides = [1, 1]} : vector<3x16xf32> to vector<1x16xf32>
        %130 = arith.addf %128, %129 : vector<1x16xf32>
        %c1_88 = arith.constant 1 : index
        %c0_89 = arith.constant 0 : index
        %c0_90 = arith.constant 0 : index
        %131 = vector.load %arg10[%c1_88, %c0_89, %c0_90] : memref<3x32x16xf32, #tpu.memory_space<vmem>>, vector<1x32x16xf32>
        %132 = vector.shape_cast %131 : vector<1x32x16xf32> to vector<32x16xf32>
        %cst_91 = arith.constant dense<0.000000e+00> : vector<1x16xf32>
        %133 = tpu.matmul %124, %132, %cst_91 {dimension_numbers = #tpu.dot_dimension_numbers<[1], [0], [0], [1], [0, 0, 1, 1], [], []>} : vector<1x32xf32>, vector<32x16xf32>, vector<1x16xf32> -> vector<1x16xf32>
        %134 = vector.extract_strided_slice %125 {offsets = [1, 0], sizes = [1, 16], strides = [1, 1]} : vector<3x16xf32> to vector<1x16xf32>
        %135 = arith.addf %133, %134 : vector<1x16xf32>
        %c2_92 = arith.constant 2 : index
        %c0_93 = arith.constant 0 : index
        %c0_94 = arith.constant 0 : index
        %136 = vector.load %arg10[%c2_92, %c0_93, %c0_94] : memref<3x32x16xf32, #tpu.memory_space<vmem>>, vector<1x32x16xf32>
        %137 = vector.shape_cast %136 : vector<1x32x16xf32> to vector<32x16xf32>
        %cst_95 = arith.constant dense<0.000000e+00> : vector<1x16xf32>
        %138 = tpu.matmul %124, %137, %cst_95 {dimension_numbers = #tpu.dot_dimension_numbers<[1], [0], [0], [1], [0, 0, 1, 1], [], []>} : vector<1x32xf32>, vector<32x16xf32>, vector<1x16xf32> -> vector<1x16xf32>
        %139 = vector.extract_strided_slice %125 {offsets = [2, 0], sizes = [1, 16], strides = [1, 1]} : vector<3x16xf32> to vector<1x16xf32>
        %140 = arith.addf %138, %139 : vector<1x16xf32>
        %141 = tpu.concatenate %130, %135, %140 in 0 : vector<1x16xf32>, vector<1x16xf32>, vector<1x16xf32> -> vector<3x16xf32>
        %cst_96 = arith.constant dense<0xFF800000> : vector<16xf32>
        %142 = vector.multi_reduction <maximumf>, %141, %cst_96 [0] : vector<3x16xf32> to vector<16xf32>
        %143 = vector.shape_cast %142 : vector<16xf32> to vector<1x16xf32>
        %144 = vector.broadcast %143 : vector<1x16xf32> to vector<3x16xf32>
        %145 = arith.subf %141, %144 : vector<3x16xf32>
        %146 = math.exp %145 : vector<3x16xf32>
        %cst_97 = arith.constant dense<0.000000e+00> : vector<16xf32>
        %147 = vector.multi_reduction <add>, %146, %cst_97 [0] : vector<3x16xf32> to vector<16xf32>
        %148 = vector.shape_cast %147 : vector<16xf32> to vector<1x16xf32>
        %149 = tpu.reciprocal %148 {approx = true} : vector<1x16xf32> -> vector<1x16xf32>
        %150 = vector.broadcast %149 : vector<1x16xf32> to vector<3x16xf32>
        %151 = arith.mulf %146, %150 : vector<3x16xf32>
        %c0_98 = arith.constant 0 : index
        %c0_99 = arith.constant 0 : index
        %152 = vector.load %arg12[%c0_98, %c0_99] : memref<64x16xbf16, #tpu.memory_space<vmem>>, vector<64x16xbf16>
        %153 = arith.extf %152 : vector<64x16xbf16> to vector<64x16xf32>
        %154 = vector.extract_strided_slice %151 {offsets = [0, 0], sizes = [1, 16], strides = [1, 1]} : vector<3x16xf32> to vector<1x16xf32>
        %155 = vector.broadcast %154 : vector<1x16xf32> to vector<64x16xf32>
        %156 = arith.mulf %153, %155 : vector<64x16xf32>
        %157 = arith.truncf %156 : vector<64x16xf32> to vector<64x16xbf16>
        %158 = vector.extract_strided_slice %151 {offsets = [1, 0], sizes = [1, 16], strides = [1, 1]} : vector<3x16xf32> to vector<1x16xf32>
        %159 = vector.broadcast %158 : vector<1x16xf32> to vector<64x16xf32>
        %160 = arith.mulf %153, %159 : vector<64x16xf32>
        %161 = arith.truncf %160 : vector<64x16xf32> to vector<64x16xbf16>
        %162 = vector.extract_strided_slice %151 {offsets = [2, 0], sizes = [1, 16], strides = [1, 1]} : vector<3x16xf32> to vector<1x16xf32>
        %163 = vector.broadcast %162 : vector<1x16xf32> to vector<64x16xf32>
        %164 = arith.mulf %153, %163 : vector<64x16xf32>
        %165 = arith.truncf %164 : vector<64x16xf32> to vector<64x16xbf16>
        %166 = tpu.concatenate %157, %161, %165 in 1 : vector<64x16xbf16>, vector<64x16xbf16>, vector<64x16xbf16> -> vector<64x48xbf16>
        %c0_100 = arith.constant 0 : index
        %c0_101 = arith.constant 0 : index
        %167 = vector.load %arg18[%c0_100, %c0_101] : memref<64x48xbf16, #tpu.memory_space<vmem>>, vector<64x48xbf16>
        tpu.vector_store %arg18[%c0_100, %c0_101], %166 {strides = array<i32>} : memref<64x48xbf16, #tpu.memory_space<vmem>>, vector<64x48xbf16>,
      } else {
      }
      %c0 = arith.constant 0 : index
      %c0_4 = arith.constant 0 : index
      %9 = vector.load %arg13[%c0, %c0_4] : memref<64x1xf32, #tpu.memory_space<vmem>>, vector<64x1xf32>
      %c0_5 = arith.constant 0 : index
      %c0_6 = arith.constant 0 : index
      %10 = vector.load %arg18[%c0_5, %c0_6] : memref<64x48xbf16, #tpu.memory_space<vmem>>, vector<64x48xbf16>
      %11 = arith.index_cast %arg2 : i32 to index
      %c0_7 = arith.constant 0 : index
      %c0_8 = arith.constant 0 : index
      %c0_9 = arith.constant 0 : index
      %12 = vector.load %arg16[%11, %c0_7, %c0_8, %c0_9] : memref<2x8x48x128xbf16, #tpu.memory_space<vmem>>, vector<1x1x48x128xbf16>
      %13 = vector.shape_cast %12 : vector<1x1x48x128xbf16> to vector<48x128xbf16>
      %cst = arith.constant dense<0.000000e+00> : vector<64x128xf32>
      %14 = tpu.matmul %10, %13, %cst {dimension_numbers = #tpu.dot_dimension_numbers<[1], [0], [0], [1], [0, 0, 1, 1], [], []>} : vector<64x48xbf16>, vector<48x128xbf16>, vector<64x128xf32> -> vector<64x128xf32>
      %15 = vector.broadcast %9 : vector<64x1xf32> to vector<64x128xf32>
      %16 = arith.addf %14, %15 : vector<64x128xf32>
      %cst_10 = arith.constant 0.000000e+00 : f32
      %17 = vector.broadcast %cst_10 : f32 to vector<64x128xf32>
      %18 = arith.maximumf %16, %17 : vector<64x128xf32>
      %19 = arith.truncf %18 : vector<64x128xf32> to vector<64x128xbf16>
      %c0_11 = arith.constant 0 : index
      %c0_12 = arith.constant 0 : index
      %c0_13 = arith.constant 0 : index
      %c0_14 = arith.constant 0 : index
      %20 = vector.load %arg14[%c0_11, %c0_12, %c0_13, %c0_14] : memref<1x8x64x128xbf16, #tpu.memory_space<vmem>>, vector<1x1x64x128xbf16>
      %21 = vector.shape_cast %20 : vector<1x1x64x128xbf16> to vector<64x128xbf16>
      %22 = vector.shape_cast %19 : vector<64x128xbf16> to vector<1x1x64x128xbf16>
      tpu.vector_store %arg14[%c0_11, %c0_12, %c0_13, %c0_14], %22 {strides = array<i32>} : memref<1x8x64x128xbf16, #tpu.memory_space<vmem>>, vector<1x1x64x128xbf16>,
      %23 = arith.index_cast %arg2 : i32 to index
      %c1 = arith.constant 1 : index
      %c0_15 = arith.constant 0 : index
      %c0_16 = arith.constant 0 : index
      %24 = vector.load %arg16[%23, %c1, %c0_15, %c0_16] : memref<2x8x48x128xbf16, #tpu.memory_space<vmem>>, vector<1x1x48x128xbf16>
      %25 = vector.shape_cast %24 : vector<1x1x48x128xbf16> to vector<48x128xbf16>
      %cst_17 = arith.constant dense<0.000000e+00> : vector<64x128xf32>
      %26 = tpu.matmul %10, %25, %cst_17 {dimension_numbers = #tpu.dot_dimension_numbers<[1], [0], [0], [1], [0, 0, 1, 1], [], []>} : vector<64x48xbf16>, vector<48x128xbf16>, vector<64x128xf32> -> vector<64x128xf32>
      %27 = vector.broadcast %9 : vector<64x1xf32> to vector<64x128xf32>
      %28 = arith.addf %26, %27 : vector<64x128xf32>
      %cst_18 = arith.constant 0.000000e+00 : f32
      %29 = vector.broadcast %cst_18 : f32 to vector<64x128xf32>
      %30 = arith.maximumf %28, %29 : vector<64x128xf32>
      %31 = arith.truncf %30 : vector<64x128xf32> to vector<64x128xbf16>
      %c0_19 = arith.constant 0 : index
      %c1_20 = arith.constant 1 : index
      %c0_21 = arith.constant 0 : index
      %c0_22 = arith.constant 0 : index
      %32 = vector.load %arg14[%c0_19, %c1_20, %c0_21, %c0_22] : memref<1x8x64x128xbf16, #tpu.memory_space<vmem>>, vector<1x1x64x128xbf16>
      %33 = vector.shape_cast %32 : vector<1x1x64x128xbf16> to vector<64x128xbf16>
      %34 = vector.shape_cast %31 : vector<64x128xbf16> to vector<1x1x64x128xbf16>
      tpu.vector_store %arg14[%c0_19, %c1_20, %c0_21, %c0_22], %34 {strides = array<i32>} : memref<1x8x64x128xbf16, #tpu.memory_space<vmem>>, vector<1x1x64x128xbf16>,
      %35 = arith.index_cast %arg2 : i32 to index
      %c2 = arith.constant 2 : index
      %c0_23 = arith.constant 0 : index
      %c0_24 = arith.constant 0 : index
      %36 = vector.load %arg16[%35, %c2, %c0_23, %c0_24] : memref<2x8x48x128xbf16, #tpu.memory_space<vmem>>, vector<1x1x48x128xbf16>
      %37 = vector.shape_cast %36 : vector<1x1x48x128xbf16> to vector<48x128xbf16>
      %cst_25 = arith.constant dense<0.000000e+00> : vector<64x128xf32>
      %38 = tpu.matmul %10, %37, %cst_25 {dimension_numbers = #tpu.dot_dimension_numbers<[1], [0], [0], [1], [0, 0, 1, 1], [], []>} : vector<64x48xbf16>, vector<48x128xbf16>, vector<64x128xf32> -> vector<64x128xf32>
      %39 = vector.broadcast %9 : vector<64x1xf32> to vector<64x128xf32>
      %40 = arith.addf %38, %39 : vector<64x128xf32>
      %cst_26 = arith.constant 0.000000e+00 : f32
      %41 = vector.broadcast %cst_26 : f32 to vector<64x128xf32>
      %42 = arith.maximumf %40, %41 : vector<64x128xf32>
      %43 = arith.truncf %42 : vector<64x128xf32> to vector<64x128xbf16>
      %c0_27 = arith.constant 0 : index
      %c2_28 = arith.constant 2 : index
      %c0_29 = arith.constant 0 : index
      %c0_30 = arith.constant 0 : index
      %44 = vector.load %arg14[%c0_27, %c2_28, %c0_29, %c0_30] : memref<1x8x64x128xbf16, #tpu.memory_space<vmem>>, vector<1x1x64x128xbf16>
      %45 = vector.shape_cast %44 : vector<1x1x64x128xbf16> to vector<64x128xbf16>
      %46 = vector.shape_cast %43 : vector<64x128xbf16> to vector<1x1x64x128xbf16>
      tpu.vector_store %arg14[%c0_27, %c2_28, %c0_29, %c0_30], %46 {strides = array<i32>} : memref<1x8x64x128xbf16, #tpu.memory_space<vmem>>, vector<1x1x64x128xbf16>,
      %47 = arith.index_cast %arg2 : i32 to index
      %c3 = arith.constant 3 : index
      %c0_31 = arith.constant 0 : index
      %c0_32 = arith.constant 0 : index
      %48 = vector.load %arg16[%47, %c3, %c0_31, %c0_32] : memref<2x8x48x128xbf16, #tpu.memory_space<vmem>>, vector<1x1x48x128xbf16>
      %49 = vector.shape_cast %48 : vector<1x1x48x128xbf16> to vector<48x128xbf16>
      %cst_33 = arith.constant dense<0.000000e+00> : vector<64x128xf32>
      %50 = tpu.matmul %10, %49, %cst_33 {dimension_numbers = #tpu.dot_dimension_numbers<[1], [0], [0], [1], [0, 0, 1, 1], [], []>} : vector<64x48xbf16>, vector<48x128xbf16>, vector<64x128xf32> -> vector<64x128xf32>
      %51 = vector.broadcast %9 : vector<64x1xf32> to vector<64x128xf32>
      %52 = arith.addf %50, %51 : vector<64x128xf32>
      %cst_34 = arith.constant 0.000000e+00 : f32
      %53 = vector.broadcast %cst_34 : f32 to vector<64x128xf32>
      %54 = arith.maximumf %52, %53 : vector<64x128xf32>
      %55 = arith.truncf %54 : vector<64x128xf32> to vector<64x128xbf16>
      %c0_35 = arith.constant 0 : index
      %c3_36 = arith.constant 3 : index
      %c0_37 = arith.constant 0 : index
      %c0_38 = arith.constant 0 : index
      %56 = vector.load %arg14[%c0_35, %c3_36, %c0_37, %c0_38] : memref<1x8x64x128xbf16, #tpu.memory_space<vmem>>, vector<1x1x64x128xbf16>
      %57 = vector.shape_cast %56 : vector<1x1x64x128xbf16> to vector<64x128xbf16>
      %58 = vector.shape_cast %55 : vector<64x128xbf16> to vector<1x1x64x128xbf16>
      tpu.vector_store %arg14[%c0_35, %c3_36, %c0_37, %c0_38], %58 {strides = array<i32>} : memref<1x8x64x128xbf16, #tpu.memory_space<vmem>>, vector<1x1x64x128xbf16>,
      %59 = arith.index_cast %arg2 : i32 to index
      %c4 = arith.constant 4 : index
      %c0_39 = arith.constant 0 : index
      %c0_40 = arith.constant 0 : index
      %60 = vector.load %arg16[%59, %c4, %c0_39, %c0_40] : memref<2x8x48x128xbf16, #tpu.memory_space<vmem>>, vector<1x1x48x128xbf16>
      %61 = vector.shape_cast %60 : vector<1x1x48x128xbf16> to vector<48x128xbf16>
      %cst_41 = arith.constant dense<0.000000e+00> : vector<64x128xf32>
      %62 = tpu.matmul %10, %61, %cst_41 {dimension_numbers = #tpu.dot_dimension_numbers<[1], [0], [0], [1], [0, 0, 1, 1], [], []>} : vector<64x48xbf16>, vector<48x128xbf16>, vector<64x128xf32> -> vector<64x128xf32>
      %63 = vector.broadcast %9 : vector<64x1xf32> to vector<64x128xf32>
      %64 = arith.addf %62, %63 : vector<64x128xf32>
      %cst_42 = arith.constant 0.000000e+00 : f32
      %65 = vector.broadcast %cst_42 : f32 to vector<64x128xf32>
      %66 = arith.maximumf %64, %65 : vector<64x128xf32>
      %67 = arith.truncf %66 : vector<64x128xf32> to vector<64x128xbf16>
      %c0_43 = arith.constant 0 : index
      %c4_44 = arith.constant 4 : index
      %c0_45 = arith.constant 0 : index
      %c0_46 = arith.constant 0 : index
      %68 = vector.load %arg14[%c0_43, %c4_44, %c0_45, %c0_46] : memref<1x8x64x128xbf16, #tpu.memory_space<vmem>>, vector<1x1x64x128xbf16>
      %69 = vector.shape_cast %68 : vector<1x1x64x128xbf16> to vector<64x128xbf16>
      %70 = vector.shape_cast %67 : vector<64x128xbf16> to vector<1x1x64x128xbf16>
      tpu.vector_store %arg14[%c0_43, %c4_44, %c0_45, %c0_46], %70 {strides = array<i32>} : memref<1x8x64x128xbf16, #tpu.memory_space<vmem>>, vector<1x1x64x128xbf16>,
      %71 = arith.index_cast %arg2 : i32 to index
      %c5 = arith.constant 5 : index
      %c0_47 = arith.constant 0 : index
      %c0_48 = arith.constant 0 : index
      %72 = vector.load %arg16[%71, %c5, %c0_47, %c0_48] : memref<2x8x48x128xbf16, #tpu.memory_space<vmem>>, vector<1x1x48x128xbf16>
      %73 = vector.shape_cast %72 : vector<1x1x48x128xbf16> to vector<48x128xbf16>
      %cst_49 = arith.constant dense<0.000000e+00> : vector<64x128xf32>
      %74 = tpu.matmul %10, %73, %cst_49 {dimension_numbers = #tpu.dot_dimension_numbers<[1], [0], [0], [1], [0, 0, 1, 1], [], []>} : vector<64x48xbf16>, vector<48x128xbf16>, vector<64x128xf32> -> vector<64x128xf32>
      %75 = vector.broadcast %9 : vector<64x1xf32> to vector<64x128xf32>
      %76 = arith.addf %74, %75 : vector<64x128xf32>
      %cst_50 = arith.constant 0.000000e+00 : f32
      %77 = vector.broadcast %cst_50 : f32 to vector<64x128xf32>
      %78 = arith.maximumf %76, %77 : vector<64x128xf32>
      %79 = arith.truncf %78 : vector<64x128xf32> to vector<64x128xbf16>
      %c0_51 = arith.constant 0 : index
      %c5_52 = arith.constant 5 : index
      %c0_53 = arith.constant 0 : index
      %c0_54 = arith.constant 0 : index
      %80 = vector.load %arg14[%c0_51, %c5_52, %c0_53, %c0_54] : memref<1x8x64x128xbf16, #tpu.memory_space<vmem>>, vector<1x1x64x128xbf16>
      %81 = vector.shape_cast %80 : vector<1x1x64x128xbf16> to vector<64x128xbf16>
      %82 = vector.shape_cast %79 : vector<64x128xbf16> to vector<1x1x64x128xbf16>
      tpu.vector_store %arg14[%c0_51, %c5_52, %c0_53, %c0_54], %82 {strides = array<i32>} : memref<1x8x64x128xbf16, #tpu.memory_space<vmem>>, vector<1x1x64x128xbf16>,
      %83 = arith.index_cast %arg2 : i32 to index
      %c6 = arith.constant 6 : index
      %c0_55 = arith.constant 0 : index
      %c0_56 = arith.constant 0 : index
      %84 = vector.load %arg16[%83, %c6, %c0_55, %c0_56] : memref<2x8x48x128xbf16, #tpu.memory_space<vmem>>, vector<1x1x48x128xbf16>
      %85 = vector.shape_cast %84 : vector<1x1x48x128xbf16> to vector<48x128xbf16>
      %cst_57 = arith.constant dense<0.000000e+00> : vector<64x128xf32>
      %86 = tpu.matmul %10, %85, %cst_57 {dimension_numbers = #tpu.dot_dimension_numbers<[1], [0], [0], [1], [0, 0, 1, 1], [], []>} : vector<64x48xbf16>, vector<48x128xbf16>, vector<64x128xf32> -> vector<64x128xf32>
      %87 = vector.broadcast %9 : vector<64x1xf32> to vector<64x128xf32>
      %88 = arith.addf %86, %87 : vector<64x128xf32>
      %cst_58 = arith.constant 0.000000e+00 : f32
      %89 = vector.broadcast %cst_58 : f32 to vector<64x128xf32>
      %90 = arith.maximumf %88, %89 : vector<64x128xf32>
      %91 = arith.truncf %90 : vector<64x128xf32> to vector<64x128xbf16>
      %c0_59 = arith.constant 0 : index
      %c6_60 = arith.constant 6 : index
      %c0_61 = arith.constant 0 : index
      %c0_62 = arith.constant 0 : index
      %92 = vector.load %arg14[%c0_59, %c6_60, %c0_61, %c0_62] : memref<1x8x64x128xbf16, #tpu.memory_space<vmem>>, vector<1x1x64x128xbf16>
      %93 = vector.shape_cast %92 : vector<1x1x64x128xbf16> to vector<64x128xbf16>
      %94 = vector.shape_cast %91 : vector<64x128xbf16> to vector<1x1x64x128xbf16>
      tpu.vector_store %arg14[%c0_59, %c6_60, %c0_61, %c0_62], %94 {strides = array<i32>} : memref<1x8x64x128xbf16, #tpu.memory_space<vmem>>, vector<1x1x64x128xbf16>,
      %95 = arith.index_cast %arg2 : i32 to index
      %c7 = arith.constant 7 : index
      %c0_63 = arith.constant 0 : index
      %c0_64 = arith.constant 0 : index
      %96 = vector.load %arg16[%95, %c7, %c0_63, %c0_64] : memref<2x8x48x128xbf16, #tpu.memory_space<vmem>>, vector<1x1x48x128xbf16>
      %97 = vector.shape_cast %96 : vector<1x1x48x128xbf16> to vector<48x128xbf16>
      %cst_65 = arith.constant dense<0.000000e+00> : vector<64x128xf32>
      %98 = tpu.matmul %10, %97, %cst_65 {dimension_numbers = #tpu.dot_dimension_numbers<[1], [0], [0], [1], [0, 0, 1, 1], [], []>} : vector<64x48xbf16>, vector<48x128xbf16>, vector<64x128xf32> -> vector<64x128xf32>
      %99 = vector.broadcast %9 : vector<64x1xf32> to vector<64x128xf32>
      %100 = arith.addf %98, %99 : vector<64x128xf32>
      %cst_66 = arith.constant 0.000000e+00 : f32
      %101 = vector.broadcast %cst_66 : f32 to vector<64x128xf32>
      %102 = arith.maximumf %100, %101 : vector<64x128xf32>
      %103 = arith.truncf %102 : vector<64x128xf32> to vector<64x128xbf16>
      %c0_67 = arith.constant 0 : index
      %c7_68 = arith.constant 7 : index
      %c0_69 = arith.constant 0 : index
      %c0_70 = arith.constant 0 : index
      %104 = vector.load %arg14[%c0_67, %c7_68, %c0_69, %c0_70] : memref<1x8x64x128xbf16, #tpu.memory_space<vmem>>, vector<1x1x64x128xbf16>
      %105 = vector.shape_cast %104 : vector<1x1x64x128xbf16> to vector<64x128xbf16>
      %106 = vector.shape_cast %103 : vector<64x128xbf16> to vector<1x1x64x128xbf16>
      tpu.vector_store %arg14[%c0_67, %c7_68, %c0_69, %c0_70], %106 {strides = array<i32>} : memref<1x8x64x128xbf16, #tpu.memory_space<vmem>>, vector<1x1x64x128xbf16>,
    } else {
    }
    return
  }
  func.func @transform_0(%arg0: i32, %arg1: i32, %arg2: i32) -> (i32, i32, i32, i32) {
    %c1_i32 = arith.constant 1 : i32
    %0 = arith.subi %c1_i32, %arg1 : i32
    %1 = arith.muli %arg2, %0 : i32
    %c1_i32_0 = arith.constant 1 : i32
    %2 = arith.muli %c1_i32_0, %arg1 : i32
    %3 = arith.addi %1, %2 : i32
    %c0_i32 = arith.constant 0 : i32
    %c0_i32_1 = arith.constant 0 : i32
    %c0_i32_2 = arith.constant 0 : i32
    return %arg0, %c0_i32, %c0_i32_1, %3 : i32, i32, i32, i32
  }
  func.func @transform_1(%arg0: i32, %arg1: i32, %arg2: i32) -> (i32, i32) {
    %c0_i32 = arith.constant 0 : i32
    %c0_i32_0 = arith.constant 0 : i32
    %c0_i32_1 = arith.constant 0 : i32
    return %c0_i32, %c0_i32_0 : i32, i32
  }
  func.func @transform_2(%arg0: i32, %arg1: i32, %arg2: i32) -> (i32, i32) {
    %c0_i32 = arith.constant 0 : i32
    %c0_i32_0 = arith.constant 0 : i32
    %c0_i32_1 = arith.constant 0 : i32
    return %c0_i32, %c0_i32_0 : i32, i32
  }
  func.func @transform_3(%arg0: i32, %arg1: i32, %arg2: i32) -> (i32, i32, i32) {
    %c0_i32 = arith.constant 0 : i32
    %c0_i32_0 = arith.constant 0 : i32
    %c0_i32_1 = arith.constant 0 : i32
    %c0_i32_2 = arith.constant 0 : i32
    return %c0_i32, %c0_i32_0, %c0_i32_1 : i32, i32, i32
  }
  func.func @transform_4(%arg0: i32, %arg1: i32, %arg2: i32) -> (i32, i32, i32) {
    %c0_i32 = arith.constant 0 : i32
    %c0_i32_0 = arith.constant 0 : i32
    %c0_i32_1 = arith.constant 0 : i32
    %c0_i32_2 = arith.constant 0 : i32
    return %c0_i32, %c0_i32_0, %c0_i32_1 : i32, i32, i32
  }
  func.func @transform_5(%arg0: i32, %arg1: i32, %arg2: i32) -> (i32, i32) {
    %c0_i32 = arith.constant 0 : i32
    %c0_i32_0 = arith.constant 0 : i32
    %c0_i32_1 = arith.constant 0 : i32
    return %c0_i32, %c0_i32_0 : i32, i32
  }
  func.func @transform_6(%arg0: i32, %arg1: i32, %arg2: i32) -> (i32, i32) {
    %c0_i32 = arith.constant 0 : i32
    %c0_i32_0 = arith.constant 0 : i32
    %c0_i32_1 = arith.constant 0 : i32
    return %c0_i32, %c0_i32_0 : i32, i32
  }
  func.func @transform_7(%arg0: i32, %arg1: i32, %arg2: i32) -> (i32, i32, i32) {
    %c0_i32 = arith.constant 0 : i32
    %c0_i32_0 = arith.constant 0 : i32
    %c0_i32_1 = arith.constant 0 : i32
    %c0_i32_2 = arith.constant 0 : i32
    return %c0_i32, %c0_i32_0, %c0_i32_1 : i32, i32, i32
  }
  func.func @transform_8(%arg0: i32, %arg1: i32, %arg2: i32) -> (i32, i32) {
    %c0_i32 = arith.constant 0 : i32
    %c0_i32_0 = arith.constant 0 : i32
    %c0_i32_1 = arith.constant 0 : i32
    return %c0_i32, %c0_i32_0 : i32, i32
  }
  func.func @transform_9(%arg0: i32, %arg1: i32, %arg2: i32) -> (i32, i32) {
    %c0_i32 = arith.constant 0 : i32
    %c0_i32_0 = arith.constant 0 : i32
    %c0_i32_1 = arith.constant 0 : i32
    return %c0_i32, %c0_i32_0 : i32, i32
  }
  func.func @transform_10(%arg0: i32, %arg1: i32, %arg2: i32) -> (i32, i32) {
    %c0_i32 = arith.constant 0 : i32
    %c0_i32_0 = arith.constant 0 : i32
    %c0_i32_1 = arith.constant 0 : i32
    return %c0_i32, %c0_i32_0 : i32, i32
  }
  func.func @transform_11(%arg0: i32, %arg1: i32, %arg2: i32) -> (i32, i32, i32, i32) {
    %0 = arith.muli %arg2, %arg1 : i32
    %c0_i32 = arith.constant 0 : i32
    %c0_i32_0 = arith.constant 0 : i32
    %c0_i32_1 = arith.constant 0 : i32
    return %arg0, %c0_i32, %c0_i32_0, %0 : i32, i32, i32, i32
  }
}

</mosaic_0001>

<llo_original>
// kernel: cptm_bottleneck_forward.1
$region0: #{cptm_bottleneck_forward.1}
  #allocation0 [shape = 'u32[]', space=smem, size = 0x4, offset = 0x4, fixed_abs, tag = 'smem constant byte address 0x4 - core index']
  #allocation1 [shape = 'u32[144,128]{1,0:T(1,128)}', space=vmem, size = 0x12000, scoped, tag = 'internal scratch']
  #allocation2 [shape = 'bf16[128,128]{1,0:T(16,128)(2,1)}', space=vmem, size = 0x8000, scoped, tag = 'scratch operand']
  #allocation3 [shape = 'bf16[2,8,48,128]{3,2,1,0:T(16,128)(2,1)}', space=vmem, size = 0x30000, scoped, tag = 'scratch operand']
  #allocation4 [shape = 'f32[16,1]{1,0:T(8,128)}', space=vmem, size = 0x2000, scoped, tag = 'scratch operand']
  #allocation5 [shape = 'bf16[64,48]{1,0:T(16,128)(2,1)}', space=vmem, size = 0x4000, scoped, tag = 'scratch operand']
  %s0 = inlined_call_operand.vmem [shape: bf16[2,8,64,256], index: 0, kind: input, shape index: {}]
  %s1 = inlined_call_operand.vmem [shape: bf16[16,64], index: 1, kind: input, shape index: {}]
  %s2 = inlined_call_operand.vmem [shape: f32[16,1], index: 2, kind: input, shape index: {}]
  %s3 = inlined_call_operand.vmem [shape: bf16[3,128,128], index: 3, kind: input, shape index: {}]
  %s4 = inlined_call_operand.vmem [shape: f32[3,128,1], index: 4, kind: input, shape index: {}]
  %s5 = inlined_call_operand.vmem [shape: f32[16,32], index: 5, kind: input, shape index: {}]
  %s6 = inlined_call_operand.vmem [shape: f32[1,32], index: 6, kind: input, shape index: {}]
  %s7 = inlined_call_operand.vmem [shape: f32[3,32,16], index: 7, kind: input, shape index: {}]
  %s8 = inlined_call_operand.vmem [shape: f32[3,16], index: 8, kind: input, shape index: {}]
  %s9 = inlined_call_operand.vmem [shape: bf16[64,16], index: 9, kind: input, shape index: {}]
  %s10 = inlined_call_operand.vmem [shape: f32[64,1], index: 10, kind: input, shape index: {}]
  %s11 = inlined_call_operand.vmem [shape: bf16[2,8,64,256], index: 11, kind: output, shape index: {}]
  %s12 = sld [smem:[#allocation0]]
  $region171: #{cptm_bottleneck_forward.1} parent=0
    _
  %s14 = ssub.s32 1, %s12
  %s15 = scalar_select 0, %s14, %s12
  $region1: #{cptm_bottleneck_forward.1} parent=0
    #allocation6 [shape = 'u8[262144]{0}', space=vmem, size = 0x40000, scoped, tag = 'input window, operand 0']
    #allocation7 [shape = 'u8[262144]{0}', space=vmem, size = 0x40000, scoped, tag = 'output window, operand 0']
    loop: start=0, step=1, limit=10
    $region2: #{cptm_bottleneck_forward.1} parent=1 // loop_pre_header
      _
    $region3: #{cptm_bottleneck_forward.1} parent=1 // loop_header
      %s17 = sphi 0, %s21
      %p18 = scmp.ge.s32.totalorder %s17, 10
      %s24 = sphi 0, %s43
      %s25 = sphi 0, %s39
      %s26 = sphi 0, %s35
      %s27 = sphi 0, %s24
      %s28 = sphi 0, %s25
      %s29 = sphi 0, %s26
      %s30 = sphi 0, %s27
      %s31 = sphi 0, %s28
      %s32 = sphi 0, %s29
      %s54 = sphi 0, %s56
      %s57 = sphi 0, %s54
      %s58 = sphi 0, %s57
      %s74 = sphi 0, %s58
      %s78 = sphi 0, %s78
      %s80 = sphi 0, %s78
      %s81 = sphi 0, %s80
      %s95 = sphi 0, %s81
      %s99 = sphi 0, %s99
      %s101 = sphi 0, %s99
      %s102 = sphi 0, %s101
      %s116 = sphi 0, %s102
      %s120 = sphi 0, %s120
      %s122 = sphi 0, %s120
      %s123 = sphi 0, %s122
      %s137 = sphi 0, %s123
      %s141 = sphi 0, %s141
      %s143 = sphi 0, %s141
      %s144 = sphi 0, %s143
      %s158 = sphi 0, %s144
      %s162 = sphi 0, %s162
      %s164 = sphi 0, %s162
      %s165 = sphi 0, %s164
      %s179 = sphi 0, %s165
      %s183 = sphi 0, %s183
      %s185 = sphi 0, %s183
      %s186 = sphi 0, %s185
      %s200 = sphi 0, %s186
      %s204 = sphi 0, %s204
      %s206 = sphi 0, %s204
      %s207 = sphi 0, %s206
      %s221 = sphi 0, %s207
      %s225 = sphi 0, %s225
      %s227 = sphi 0, %s225
      %s228 = sphi 0, %s227
      %s242 = sphi 0, %s228
      %s246 = sphi 0, %s246
      %s248 = sphi 0, %s246
      %s249 = sphi 0, %s248
      %s263 = sphi 0, %s249
      %s267 = sphi 0, %s267
      %s269 = sphi 0, %s267
      %s270 = sphi 0, %s269
      %s284 = sphi 0, %s270
      %s294 = sphi 0, %s296
      %s297 = sphi 0, %s294
      %s298 = sphi 0, %s297
      %s314 = sphi 0, %s298
    $region4: #{cptm_bottleneck_forward.1} parent=1 // loop_header_branch
      %20 = sbr.rel (%p18) target = $region8
    $region5: #{cptm_bottleneck_forward.1} parent=1 // loop_body
      %s22 = ssub.s32 %s17, 1
      %s23 = ssub.s32 %s17, 2
      %s33 = sadd.s32 1, %s26
      %p34 = scmp.ge.s32.totalorder %s33, 2
      %s35 = scalar_select %p34, 0, %s33
      %s36 = sadd.s32 1, %s25
      %s37 = scalar_select %p34, %s36, %s25
      %p38 = scmp.ge.s32.totalorder %s37, 2
      %s39 = scalar_select %p38, 0, %s37
      %s40 = sadd.s32 1, %s24
      %s41 = scalar_select %p38, %s40, %s24
      %p42 = scmp.ge.s32.totalorder %s41, 2
      %s43 = scalar_select %p42, 0, %s41
      %s44 = ssub.s32 1, %s25
      %s45 = smul.u32 %s26, %s44
      %s46 = sadd.s32 %s45, %s25
      %s47 = ssub.s32 1, %s39
      %s48 = smul.u32 %s35, %s47
      %s49 = sadd.s32 %s48, %s39
      %s50 = ssub.s32 %s24, %s43
      %s51 = ssub.s32 %s46, %s49
      %s52 = sor.u32 %s50, %s51
      %p53 = scmp.eq.s32.totalorder %s52, 0
      %s55 = sadd.s32 %s54, 1
      %s56 = scalar_select %p53, %s54, %s55
      %p59 = pneg %p53
      %p60 = scmp.eq.s32.totalorder %s17, 7
      %p61 = por %p59, %p60
      %p62 = scmp.ne.s32.totalorder %s54, %s57
      %p63 = scmp.eq.s32.totalorder %s17, 0
      %p64 = por %p62, %p63
      %p65 = scmp.ne.s32.totalorder %s54, %s57
      %p66 = scmp.eq.s32.totalorder %s22, 7
      %p67 = por %p65, %p66
      %p68 = scmp.ne.s32.totalorder %s57, %s58
      %p69 = scmp.eq.s32.totalorder %s22, 0
      %p70 = por %p68, %p69
      %p71 = scmp.ne.s32.totalorder %s57, %s58
      %p72 = scmp.eq.s32.totalorder %s23, 7
      %p73 = por %p71, %p72
      %p75 = scmp.ne.s32.totalorder %s58, %s74
      %p76 = scmp.eq.s32.totalorder %s23, 0
      %p77 = por %p75, %p76
      %s79 = sadd.s32 %s78, 1
      %p82 = scmp.eq.s32.totalorder %s17, 7
      %p83 = scmp.ne.s32.totalorder %s78, %s80
      %p84 = scmp.eq.s32.totalorder %s17, 0
      %p85 = por %p83, %p84
      %p86 = scmp.ne.s32.totalorder %s78, %s80
      %p87 = scmp.eq.s32.totalorder %s22, 7
      %p88 = por %p86, %p87
      %p89 = scmp.ne.s32.totalorder %s80, %s81
      %p90 = scmp.eq.s32.totalorder %s22, 0
      %p91 = por %p89, %p90
      %p92 = scmp.ne.s32.totalorder %s80, %s81
      %p93 = scmp.eq.s32.totalorder %s23, 7
      %p94 = por %p92, %p93
      %p96 = scmp.ne.s32.totalorder %s81, %s95
      %p97 = scmp.eq.s32.totalorder %s23, 0
      %p98 = por %p96, %p97
      %s100 = sadd.s32 %s99, 1
      %p103 = scmp.eq.s32.totalorder %s17, 7
      %p104 = scmp.ne.s32.totalorder %s99, %s101
      %p105 = scmp.eq.s32.totalorder %s17, 0
      %p106 = por %p104, %p105
      %p107 = scmp.ne.s32.totalorder %s99, %s101
      %p108 = scmp.eq.s32.totalorder %s22, 7
      %p109 = por %p107, %p108
      %p110 = scmp.ne.s32.totalorder %s101, %s102
      %p111 = scmp.eq.s32.totalorder %s22, 0
      %p112 = por %p110, %p111
      %p113 = scmp.ne.s32.totalorder %s101, %s102
      %p114 = scmp.eq.s32.totalorder %s23, 7
      %p115 = por %p113, %p114
      %p117 = scmp.ne.s32.totalorder %s102, %s116
      %p118 = scmp.eq.s32.totalorder %s23, 0
      %p119 = por %p117, %p118
      %s121 = sadd.s32 %s120, 1
      %p124 = scmp.eq.s32.totalorder %s17, 7
      %p125 = scmp.ne.s32.totalorder %s120, %s122
      %p126 = scmp.eq.s32.totalorder %s17, 0
      %p127 = por %p125, %p126
      %p128 = scmp.ne.s32.totalorder %s120, %s122
      %p129 = scmp.eq.s32.totalorder %s22, 7
      %p130 = por %p128, %p129
      %p131 = scmp.ne.s32.totalorder %s122, %s123
      %p132 = scmp.eq.s32.totalorder %s22, 0
      %p133 = por %p131, %p132
      %p134 = scmp.ne.s32.totalorder %s122, %s123
      %p135 = scmp.eq.s32.totalorder %s23, 7
      %p136 = por %p134, %p135
      %p138 = scmp.ne.s32.totalorder %s123, %s137
      %p139 = scmp.eq.s32.totalorder %s23, 0
      %p140 = por %p138, %p139
      %s142 = sadd.s32 %s141, 1
      %p145 = scmp.eq.s32.totalorder %s17, 7
      %p146 = scmp.ne.s32.totalorder %s141, %s143
      %p147 = scmp.eq.s32.totalorder %s17, 0
      %p148 = por %p146, %p147
      %p149 = scmp.ne.s32.totalorder %s141, %s143
      %p150 = scmp.eq.s32.totalorder %s22, 7
      %p151 = por %p149, %p150
      %p152 = scmp.ne.s32.totalorder %s143, %s144
      %p153 = scmp.eq.s32.totalorder %s22, 0
      %p154 = por %p152, %p153
      %p155 = scmp.ne.s32.totalorder %s143, %s144
      %p156 = scmp.eq.s32.totalorder %s23, 7
      %p157 = por %p155, %p156
      %p159 = scmp.ne.s32.totalorder %s144, %s158
      %p160 = scmp.eq.s32.totalorder %s23, 0
      %p161 = por %p159, %p160
      %s163 = sadd.s32 %s162, 1
      %p166 = scmp.eq.s32.totalorder %s17, 7
      %p167 = scmp.ne.s32.totalorder %s162, %s164
      %p168 = scmp.eq.s32.totalorder %s17, 0
      %p169 = por %p167, %p168
      %p170 = scmp.ne.s32.totalorder %s162, %s164
      %p171 = scmp.eq.s32.totalorder %s22, 7
      %p172 = por %p170, %p171
      %p173 = scmp.ne.s32.totalorder %s164, %s165
      %p174 = scmp.eq.s32.totalorder %s22, 0
      %p175 = por %p173, %p174
      %p176 = scmp.ne.s32.totalorder %s164, %s165
      %p177 = scmp.eq.s32.totalorder %s23, 7
      %p178 = por %p176, %p177
      %p180 = scmp.ne.s32.totalorder %s165, %s179
      %p181 = scmp.eq.s32.totalorder %s23, 0
      %p182 = por %p180, %p181
      %s184 = sadd.s32 %s183, 1
      %p187 = scmp.eq.s32.totalorder %s17, 7
      %p188 = scmp.ne.s32.totalorder %s183, %s185
      %p189 = scmp.eq.s32.totalorder %s17, 0
      %p190 = por %p188, %p189
      %p191 = scmp.ne.s32.totalorder %s183, %s185
      %p192 = scmp.eq.s32.totalorder %s22, 7
      %p193 = por %p191, %p192
      %p194 = scmp.ne.s32.totalorder %s185, %s186
      %p195 = scmp.eq.s32.totalorder %s22, 0
      %p196 = por %p194, %p195
      %p197 = scmp.ne.s32.totalorder %s185, %s186
      %p198 = scmp.eq.s32.totalorder %s23, 7
      %p199 = por %p197, %p198
      %p201 = scmp.ne.s32.totalorder %s186, %s200
      %p202 = scmp.eq.s32.totalorder %s23, 0
      %p203 = por %p201, %p202
      %s205 = sadd.s32 %s204, 1
      %p208 = scmp.eq.s32.totalorder %s17, 7
      %p209 = scmp.ne.s32.totalorder %s204, %s206
      %p210 = scmp.eq.s32.totalorder %s17, 0
      %p211 = por %p209, %p210
      %p212 = scmp.ne.s32.totalorder %s204, %s206
      %p213 = scmp.eq.s32.totalorder %s22, 7
      %p214 = por %p212, %p213
      %p215 = scmp.ne.s32.totalorder %s206, %s207
      %p216 = scmp.eq.s32.totalorder %s22, 0
      %p217 = por %p215, %p216
      %p218 = scmp.ne.s32.totalorder %s206, %s207
      %p219 = scmp.eq.s32.totalorder %s23, 7
      %p220 = por %p218, %p219
      %p222 = scmp.ne.s32.totalorder %s207, %s221
      %p223 = scmp.eq.s32.totalorder %s23, 0
      %p224 = por %p222, %p223
      %s226 = sadd.s32 %s225, 1
      %p229 = scmp.eq.s32.totalorder %s17, 7
      %p230 = scmp.ne.s32.totalorder %s225, %s227
      %p231 = scmp.eq.s32.totalorder %s17, 0
      %p232 = por %p230, %p231
      %p233 = scmp.ne.s32.totalorder %s225, %s227
      %p234 = scmp.eq.s32.totalorder %s22, 7
      %p235 = por %p233, %p234
      %p236 = scmp.ne.s32.totalorder %s227, %s228
      %p237 = scmp.eq.s32.totalorder %s22, 0
      %p238 = por %p236, %p237
      %p239 = scmp.ne.s32.totalorder %s227, %s228
      %p240 = scmp.eq.s32.totalorder %s23, 7
      %p241 = por %p239, %p240
      %p243 = scmp.ne.s32.totalorder %s228, %s242
      %p244 = scmp.eq.s32.totalorder %s23, 0
      %p245 = por %p243, %p244
      %s247 = sadd.s32 %s246, 1
      %p250 = scmp.eq.s32.totalorder %s17, 7
      %p251 = scmp.ne.s32.totalorder %s246, %s248
      %p252 = scmp.eq.s32.totalorder %s17, 0
      %p253 = por %p251, %p252
      %p254 = scmp.ne.s32.totalorder %s246, %s248
      %p255 = scmp.eq.s32.totalorder %s22, 7
      %p256 = por %p254, %p255
      %p257 = scmp.ne.s32.totalorder %s248, %s249
      %p258 = scmp.eq.s32.totalorder %s22, 0
      %p259 = por %p257, %p258
      %p260 = scmp.ne.s32.totalorder %s248, %s249
      %p261 = scmp.eq.s32.totalorder %s23, 7
      %p262 = por %p260, %p261
      %p264 = scmp.ne.s32.totalorder %s249, %s263
      %p265 = scmp.eq.s32.totalorder %s23, 0
      %p266 = por %p264, %p265
      %s268 = sadd.s32 %s267, 1
      %p271 = scmp.eq.s32.totalorder %s17, 7
      %p272 = scmp.ne.s32.totalorder %s267, %s269
      %p273 = scmp.eq.s32.totalorder %s17, 0
      %p274 = por %p272, %p273
      %p275 = scmp.ne.s32.totalorder %s267, %s269
      %p276 = scmp.eq.s32.totalorder %s22, 7
      %p277 = por %p275, %p276
      %p278 = scmp.ne.s32.totalorder %s269, %s270
      %p279 = scmp.eq.s32.totalorder %s22, 0
      %p280 = por %p278, %p279
      %p281 = scmp.ne.s32.totalorder %s269, %s270
      %p282 = scmp.eq.s32.totalorder %s23, 7
      %p283 = por %p281, %p282
      %p285 = scmp.ne.s32.totalorder %s270, %s284
      %p286 = scmp.eq.s32.totalorder %s23, 0
      %p287 = por %p285, %p286
      %s288 = smul.u32 %s26, %s25
      %s289 = smul.u32 %s35, %s39
      %s290 = ssub.s32 %s24, %s43
      %s291 = ssub.s32 %s288, %s289
      %s292 = sor.u32 %s290, %s291
      %p293 = scmp.eq.s32.totalorder %s292, 0
      %s295 = sadd.s32 %s294, 1
      %s296 = scalar_select %p293, %s294, %s295
      %p299 = pneg %p293
      %p300 = scmp.eq.s32.totalorder %s17, 7
      %p301 = por %p299, %p300
      %p302 = scmp.ne.s32.totalorder %s294, %s297
      %p303 = scmp.eq.s32.totalorder %s17, 0
      %p304 = por %p302, %p303
      %p305 = scmp.ne.s32.totalorder %s294, %s297
      %p306 = scmp.eq.s32.totalorder %s22, 7
      %p307 = por %p305, %p306
      %p308 = scmp.ne.s32.totalorder %s297, %s298
      %p309 = scmp.eq.s32.totalorder %s22, 0
      %p310 = por %p308, %p309
      %p311 = scmp.ne.s32.totalorder %s297, %s298
      %p312 = scmp.eq.s32.totalorder %s23, 7
      %p313 = por %p311, %p312
      %p315 = scmp.ne.s32.totalorder %s298, %s314
      %p316 = scmp.eq.s32.totalorder %s23, 0
      %p317 = por %p315, %p316
      %p318 = scmp.le.s32.totalorder 1, %s17
      %p319 = scmp.lt.s32.totalorder %s17, 9
      %p320 = pnand %p318, %p319
      %p321 = pneg %p320
      // Predicated region
      $region9: #{cptm_bottleneck_forward.1} parent=5 // pred_check
        _
      $region10: #{cptm_bottleneck_forward.1} parent=5 // pred_check_branch
        %323 = sbr.rel (%p320) target = $region12
      $region11: #{cptm_bottleneck_forward.1} parent=5 // pred_region
        %s324 = ssub.s32 %s17, 1
        // Predicated region
        $region13: #{cptm_bottleneck_forward.1} parent=11 // pred_check
          %p325 = pneg %p91
        $region14: #{cptm_bottleneck_forward.1} parent=11 // pred_check_branch
          %327 = sbr.rel (%p325) target = $region16
        $region15: #{cptm_bottleneck_forward.1} parent=11 // pred_region
          _
        $region16: #{cptm_bottleneck_forward.1} parent=11 // pred_fallthru
          _
        // Predicated region
        $region17: #{cptm_bottleneck_forward.1} parent=11 // pred_check
          %p328 = pneg %p112
        $region18: #{cptm_bottleneck_forward.1} parent=11 // pred_check_branch
          %330 = sbr.rel (%p328) target = $region20
        $region19: #{cptm_bottleneck_forward.1} parent=11 // pred_region
          _
        $region20: #{cptm_bottleneck_forward.1} parent=11 // pred_fallthru
          _
        // Predicated region
        $region21: #{cptm_bottleneck_forward.1} parent=11 // pred_check
          %p331 = pneg %p133
        $region22: #{cptm_bottleneck_forward.1} parent=11 // pred_check_branch
          %333 = sbr.rel (%p331) target = $region24
        $region23: #{cptm_bottleneck_forward.1} parent=11 // pred_region
          _
        $region24: #{cptm_bottleneck_forward.1} parent=11 // pred_fallthru
          _
        // Predicated region
        $region25: #{cptm_bottleneck_forward.1} parent=11 // pred_check
          %p334 = pneg %p154
        $region26: #{cptm_bottleneck_forward.1} parent=11 // pred_check_branch
          %336 = sbr.rel (%p334) target = $region28
        $region27: #{cptm_bottleneck_forward.1} parent=11 // pred_region
          _
        $region28: #{cptm_bottleneck_forward.1} parent=11 // pred_fallthru
          _
        // Predicated region
        $region29: #{cptm_bottleneck_forward.1} parent=11 // pred_check
          %p337 = pneg %p175
        $region30: #{cptm_bottleneck_forward.1} parent=11 // pred_check_branch
          %339 = sbr.rel (%p337) target = $region32
        $region31: #{cptm_bottleneck_forward.1} parent=11 // pred_region
          _
        $region32: #{cptm_bottleneck_forward.1} parent=11 // pred_fallthru
          _
        // Predicated region
        $region33: #{cptm_bottleneck_forward.1} parent=11 // pred_check
          %p340 = pneg %p196
        $region34: #{cptm_bottleneck_forward.1} parent=11 // pred_check_branch
          %342 = sbr.rel (%p340) target = $region36
        $region35: #{cptm_bottleneck_forward.1} parent=11 // pred_region
          _
        $region36: #{cptm_bottleneck_forward.1} parent=11 // pred_fallthru
          _
        // Predicated region
        $region37: #{cptm_bottleneck_forward.1} parent=11 // pred_check
          %p343 = pneg %p217
        $region38: #{cptm_bottleneck_forward.1} parent=11 // pred_check_branch
          %345 = sbr.rel (%p343) target = $region40
        $region39: #{cptm_bottleneck_forward.1} parent=11 // pred_region
          _
        $region40: #{cptm_bottleneck_forward.1} parent=11 // pred_fallthru
          _
        // Predicated region
        $region41: #{cptm_bottleneck_forward.1} parent=11 // pred_check
          %p346 = pneg %p238
        $region42: #{cptm_bottleneck_forward.1} parent=11 // pred_check_branch
          %348 = sbr.rel (%p346) target = $region44
        $region43: #{cptm_bottleneck_forward.1} parent=11 // pred_region
          _
        $region44: #{cptm_bottleneck_forward.1} parent=11 // pred_fallthru
          _
        // Predicated region
        $region45: #{cptm_bottleneck_forward.1} parent=11 // pred_check
          %p349 = pneg %p259
        $region46: #{cptm_bottleneck_forward.1} parent=11 // pred_check_branch
          %351 = sbr.rel (%p349) target = $region48
        $region47: #{cptm_bottleneck_forward.1} parent=11 // pred_region
          _
        $region48: #{cptm_bottleneck_forward.1} parent=11 // pred_fallthru
          _
        // Predicated region
        $region49: #{cptm_bottleneck_forward.1} parent=11 // pred_check
          %p352 = pneg %p280
        $region50: #{cptm_bottleneck_forward.1} parent=11 // pred_check_branch
          %354 = sbr.rel (%p352) target = $region52
        $region51: #{cptm_bottleneck_forward.1} parent=11 // pred_region
          _
        $region52: #{cptm_bottleneck_forward.1} parent=11 // pred_fallthru
          _
      $region12: #{cptm_bottleneck_forward.1} parent=5 // pred_fallthru
        _
      %p355 = scmp.lt.s32.totalorder %s17, 8
      // Predicated region
      $region53: #{cptm_bottleneck_forward.1} parent=5 // pred_check
        %p356 = pneg %p355
      $region54: #{cptm_bottleneck_forward.1} parent=5 // pred_check_branch
        %358 = sbr.rel (%p356) target = $region56
      $region55: #{cptm_bottleneck_forward.1} parent=5 // pred_region
        // Predicated region
        $region57: #{cptm_bottleneck_forward.1} parent=55 // pred_check
          %p359 = pneg %p64
        $region58: #{cptm_bottleneck_forward.1} parent=55 // pred_check_branch
          %361 = sbr.rel (%p359) target = $region60
        $region59: #{cptm_bottleneck_forward.1} parent=55 // pred_region
          %s362 = sand.u32 %s54, 1
          %s363 = sand.u32 %s54, 1
          %s364 = smul.addr %s363, 256
          %s365 = scalar_lea.vmem [#allocation6], %s364
          %s366 = ssub.s32 1, %s25
          %s367 = smul.u32 %s26, %s366
          %s368 = sadd.s32 %s367, %s25
          %s369 = smul.addr %s24, 128
          %s370 = sadd.s32 %s368, %s369
          %s371 = smul.addr %s370, 4
          %s372 = scalar_lea.vmem %s0, %s371
          // Predicated region
          $region61: #{cptm_bottleneck_forward.1} parent=59 // pred_check
            _
          $region62: #{cptm_bottleneck_forward.1} parent=59 // pred_check_branch
            %374 = sbr.rel (0) target = $region64
          $region63: #{cptm_bottleneck_forward.1} parent=59 // pred_region
            // Predicated region
            $region65: #{cptm_bottleneck_forward.1} parent=63 // pred_check
              _
            $region66: #{cptm_bottleneck_forward.1} parent=63 // pred_check_branch
              %376 = sbr.rel target = $region68
            $region67: #{cptm_bottleneck_forward.1} parent=63 // pred_region
              // Predicated region
              $region80: #{cptm_bottleneck_forward.1} parent=67 // pred_check
                _
              $region81: #{cptm_bottleneck_forward.1} parent=67 // pred_check_branch
                %517 = sbr.rel (0) target = $region83
              $region82: #{cptm_bottleneck_forward.1} parent=67 // pred_region
                loop: start=0, step=1, limit=1
                $region84: #{cptm_bottleneck_forward.1} parent=82 // loop_pre_header
                  _
                $region85: #{cptm_bottleneck_forward.1} parent=82 // loop_header
                  %s519 = sphi 0, %s523
                  %p520 = scmp.ge.s32.totalorder %s519, 1
                  %s524 = sphi %s372, %s372
                  %s525 = sphi %s365, %s365
                $region86: #{cptm_bottleneck_forward.1} parent=82 // loop_header_branch
                  %522 = sbr.rel (%p520) target = $region90
                $region87: #{cptm_bottleneck_forward.1} parent=82 // loop_body
                  _
                $region88: #{cptm_bottleneck_forward.1} parent=82 // loop_footer
                  %s523 = sadd.s32 1, %s519
                $region89: #{cptm_bottleneck_forward.1} parent=82 // loop_footer_branch
                  %518 = sbr.rel target = $region85
                $region90: #{cptm_bottleneck_forward.1} parent=82 // loop_exit
                  _
                loop: start=0, step=1, limit=1
                $region91: #{cptm_bottleneck_forward.1} parent=82 // loop_pre_header
                  _
                $region92: #{cptm_bottleneck_forward.1} parent=82 // loop_header
                  %s528 = sphi 0, %s532
                  %p529 = scmp.ge.s32.totalorder %s528, 1
                  %s533 = sphi %s372, %s372
                  %s534 = sphi %s365, %s365
                $region93: #{cptm_bottleneck_forward.1} parent=82 // loop_header_branch
                  %531 = sbr.rel (%p529) target = $region97
                $region94: #{cptm_bottleneck_forward.1} parent=82 // loop_body
                  %v535 = vld [vmem:[%s533] sm:$0xf]
                  %536 = vst [vmem:[%s534] sm:$0xf] %v535
                  %v537 = vld [vmem:[%s533 + $0x8] sm:$0xf]
                  %538 = vst [vmem:[%s534 + $0x4] sm:$0xf] %v537
                  %v539 = vld [vmem:[%s533 + $0x10] sm:$0xf]
                  %540 = vst [vmem:[%s534 + $0x8] sm:$0xf] %v539
                  %v541 = vld [vmem:[%s533 + $0x18] sm:$0xf]
                  %542 = vst [vmem:[%s534 + $0xc] sm:$0xf] %v541
                  %v543 = vld [vmem:[%s533 + $0x20] sm:$0xf]
                  %544 = vst [vmem:[%s534 + $0x10] sm:$0xf] %v543
                  %v545 = vld [vmem:[%s533 + $0x28] sm:$0xf]
                  %546 = vst [vmem:[%s534 + $0x14] sm:$0xf] %v545
                  %v547 = vld [vmem:[%s533 + $0x30] sm:$0xf]
                  %548 = vst [vmem:[%s534 + $0x18] sm:$0xf] %v547
                  %v549 = vld [vmem:[%s533 + $0x38] sm:$0xf]
                  %550 = vst [vmem:[%s534 + $0x1c] sm:$0xf] %v549
                  %v551 = vld [vmem:[%s533 + $0x40] sm:$0xf]
                  %552 = vst [vmem:[%s534 + $0x20] sm:$0xf] %v551
                  %v553 = vld [vmem:[%s533 + $0x48] sm:$0xf]
                  %554 = vst [vmem:[%s534 + $0x24] sm:$0xf] %v553
                  %v555 = vld [vmem:[%s533 + $0x50] sm:$0xf]
                  %556 = vst [vmem:[%s534 + $0x28] sm:$0xf] %v555
                  %v557 = vld [vmem:[%s533 + $0x58] sm:$0xf]
                  %558 = vst [vmem:[%s534 + $0x2c] sm:$0xf] %v557
                  %v559 = vld [vmem:[%s533 + $0x60] sm:$0xf]
                  %560 = vst [vmem:[%s534 + $0x30] sm:$0xf] %v559
                  %v561 = vld [vmem:[%s533 + $0x68] sm:$0xf]
                  %562 = vst [vmem:[%s534 + $0x34] sm:$0xf] %v561
                  %v563 = vld [vmem:[%s533 + $0x70] sm:$0xf]
                  %564 = vst [vmem:[%s534 + $0x38] sm:$0xf] %v563
                  %v565 = vld [vmem:[%s533 + $0x78] sm:$0xf]
                  %566 = vst [vmem:[%s534 + $0x3c] sm:$0xf] %v565
                  %v567 = vld [vmem:[%s533 + $0x80] sm:$0xf]
                  %568 = vst [vmem:[%s534 + $0x40] sm:$0xf] %v567
                  %v569 = vld [vmem:[%s533 + $0x88] sm:$0xf]
                  %570 = vst [vmem:[%s534 + $0x44] sm:$0xf] %v569
                  %v571 = vld [vmem:[%s533 + $0x90] sm:$0xf]
                  %572 = vst [vmem:[%s534 + $0x48] sm:$0xf] %v571
                  %v573 = vld [vmem:[%s533 + $0x98] sm:$0xf]
                  %574 = vst [vmem:[%s534 + $0x4c] sm:$0xf] %v573
                  %v575 = vld [vmem:[%s533 + $0xa0] sm:$0xf]
                  %576 = vst [vmem:[%s534 + $0x50] sm:$0xf] %v575
                  %v577 = vld [vmem:[%s533 + $0xa8] sm:$0xf]
                  %578 = vst [vmem:[%s534 + $0x54] sm:$0xf] %v577
                  %v579 = vld [vmem:[%s533 + $0xb0] sm:$0xf]
                  %580 = vst [vmem:[%s534 + $0x58] sm:$0xf] %v579
                  %v581 = vld [vmem:[%s533 + $0xb8] sm:$0xf]
                  %582 = vst [vmem:[%s534 + $0x5c] sm:$0xf] %v581
                  %v583 = vld [vmem:[%s533 + $0xc0] sm:$0xf]
                  %584 = vst [vmem:[%s534 + $0x60] sm:$0xf] %v583
                  %v585 = vld [vmem:[%s533 + $0xc8] sm:$0xf]
                  %586 = vst [vmem:[%s534 + $0x64] sm:$0xf] %v585
                  %v587 = vld [vmem:[%s533 + $0xd0] sm:$0xf]
                  %588 = vst [vmem:[%s534 + $0x68] sm:$0xf] %v587
                  %v589 = vld [vmem:[%s533 + $0xd8] sm:$0xf]
                  %590 = vst [vmem:[%s534 + $0x6c] sm:$0xf] %v589
                  %v591 = vld [vmem:[%s533 + $0xe0] sm:$0xf]
                  %592 = vst [vmem:[%s534 + $0x70] sm:$0xf] %v591
                  %v593 = vld [vmem:[%s533 + $0xe8] sm:$0xf]
                  %594 = vst [vmem:[%s534 + $0x74] sm:$0xf] %v593
                  %v595 = vld [vmem:[%s533 + $0xf0] sm:$0xf]
                  %596 = vst [vmem:[%s534 + $0x78] sm:$0xf] %v595
                  %v597 = vld [vmem:[%s533 + $0xf8] sm:$0xf]
                  %598 = vst [vmem:[%s534 + $0x7c] sm:$0xf] %v597
                  %v599 = vld [vmem:[%s533 + $0x100] sm:$0xf]
                  %600 = vst [vmem:[%s534 + $0x80] sm:$0xf] %v599
                  %v601 = vld [vmem:[%s533 + $0x108] sm:$0xf]
                  %602 = vst [vmem:[%s534 + $0x84] sm:$0xf] %v601
                  %v603 = vld [vmem:[%s533 + $0x110] sm:$0xf]
                  %604 = vst [vmem:[%s534 + $0x88] sm:$0xf] %v603
                  %v605 = vld [vmem:[%s533 + $0x118] sm:$0xf]
                  %606 = vst [vmem:[%s534 + $0x8c] sm:$0xf] %v605
                  %v607 = vld [vmem:[%s533 + $0x120] sm:$0xf]
                  %608 = vst [vmem:[%s534 + $0x90] sm:$0xf] %v607
                  %v609 = vld [vmem:[%s533 + $0x128] sm:$0xf]
                  %610 = vst [vmem:[%s534 + $0x94] sm:$0xf] %v609
                  %v611 = vld [vmem:[%s533 + $0x130] sm:$0xf]
                  %612 = vst [vmem:[%s534 + $0x98] sm:$0xf] %v611
                  %v613 = vld [vmem:[%s533 + $0x138] sm:$0xf]
                  %614 = vst [vmem:[%s534 + $0x9c] sm:$0xf] %v613
                  %v615 = vld [vmem:[%s533 + $0x140] sm:$0xf]
                  %616 = vst [vmem:[%s534 + $0xa0] sm:$0xf] %v615
                  %v617 = vld [vmem:[%s533 + $0x148] sm:$0xf]
                  %618 = vst [vmem:[%s534 + $0xa4] sm:$0xf] %v617
                  %v619 = vld [vmem:[%s533 + $0x150] sm:$0xf]
                  %620 = vst [vmem:[%s534 + $0xa8] sm:$0xf] %v619
                  %v621 = vld [vmem:[%s533 + $0x158] sm:$0xf]
                  %622 = vst [vmem:[%s534 + $0xac] sm:$0xf] %v621
                  %v623 = vld [vmem:[%s533 + $0x160] sm:$0xf]
                  %624 = vst [vmem:[%s534 + $0xb0] sm:$0xf] %v623
                  %v625 = vld [vmem:[%s533 + $0x168] sm:$0xf]
                  %626 = vst [vmem:[%s534 + $0xb4] sm:$0xf] %v625
                  %v627 = vld [vmem:[%s533 + $0x170] sm:$0xf]
                  %628 = vst [vmem:[%s534 + $0xb8] sm:$0xf] %v627
                  %v629 = vld [vmem:[%s533 + $0x178] sm:$0xf]
                  %630 = vst [vmem:[%s534 + $0xbc] sm:$0xf] %v629
                  %v631 = vld [vmem:[%s533 + $0x180] sm:$0xf]
                  %632 = vst [vmem:[%s534 + $0xc0] sm:$0xf] %v631
                  %v633 = vld [vmem:[%s533 + $0x188] sm:$0xf]
                  %634 = vst [vmem:[%s534 + $0xc4] sm:$0xf] %v633
                  %v635 = vld [vmem:[%s533 + $0x190] sm:$0xf]
                  %636 = vst [vmem:[%s534 + $0xc8] sm:$0xf] %v635
                  %v637 = vld [vmem:[%s533 + $0x198] sm:$0xf]
                  %638 = vst [vmem:[%s534 + $0xcc] sm:$0xf] %v637
                  %v639 = vld [vmem:[%s533 + $0x1a0] sm:$0xf]
                  %640 = vst [vmem:[%s534 + $0xd0] sm:$0xf] %v639
                  %v641 = vld [vmem:[%s533 + $0x1a8] sm:$0xf]
                  %642 = vst [vmem:[%s534 + $0xd4] sm:$0xf] %v641
                  %v643 = vld [vmem:[%s533 + $0x1b0] sm:$0xf]
                  %644 = vst [vmem:[%s534 + $0xd8] sm:$0xf] %v643
                  %v645 = vld [vmem:[%s533 + $0x1b8] sm:$0xf]
                  %646 = vst [vmem:[%s534 + $0xdc] sm:$0xf] %v645
                  %v647 = vld [vmem:[%s533 + $0x1c0] sm:$0xf]
                  %648 = vst [vmem:[%s534 + $0xe0] sm:$0xf] %v647
                  %v649 = vld [vmem:[%s533 + $0x1c8] sm:$0xf]
                  %650 = vst [vmem:[%s534 + $0xe4] sm:$0xf] %v649
                  %v651 = vld [vmem:[%s533 + $0x1d0] sm:$0xf]
                  %652 = vst [vmem:[%s534 + $0xe8] sm:$0xf] %v651
                  %v653 = vld [vmem:[%s533 + $0x1d8] sm:$0xf]
                  %654 = vst [vmem:[%s534 + $0xec] sm:$0xf] %v653
                  %v655 = vld [vmem:[%s533 + $0x1e0] sm:$0xf]
                  %656 = vst [vmem:[%s534 + $0xf0] sm:$0xf] %v655
                  %v657 = vld [vmem:[%s533 + $0x1e8] sm:$0xf]
                  %658 = vst [vmem:[%s534 + $0xf4] sm:$0xf] %v657
                  %v659 = vld [vmem:[%s533 + $0x1f0] sm:$0xf]
                  %660 = vst [vmem:[%s534 + $0xf8] sm:$0xf] %v659
                  %v661 = vld [vmem:[%s533 + $0x1f8] sm:$0xf]
                  %662 = vst [vmem:[%s534 + $0xfc] sm:$0xf] %v661
                $region95: #{cptm_bottleneck_forward.1} parent=82 // loop_footer
                  %s532 = sadd.s32 1, %s528
                $region96: #{cptm_bottleneck_forward.1} parent=82 // loop_footer_branch
                  %527 = sbr.rel target = $region92
                $region97: #{cptm_bottleneck_forward.1} parent=82 // loop_exit
                  _
              $region83: #{cptm_bottleneck_forward.1} parent=67 // pred_fallthru
                _
            $region68: #{cptm_bottleneck_forward.1} parent=63 // pred_fallthru
              _
            // Predicated region
            $region69: #{cptm_bottleneck_forward.1} parent=63 // pred_check
              _
            $region70: #{cptm_bottleneck_forward.1} parent=63 // pred_check_branch
              %378 = sbr.rel (0) target = $region72
            $region71: #{cptm_bottleneck_forward.1} parent=63 // pred_region
              loop: start=0, step=1, limit=1
              $region73: #{cptm_bottleneck_forward.1} parent=71 // loop_pre_header
                _
              $region74: #{cptm_bottleneck_forward.1} parent=71 // loop_header
                %s381 = sphi 0, %s385
                %p382 = scmp.ge.s32.totalorder %s381, 1
                %s386 = sphi %s372, %s372
                %s387 = sphi %s365, %s365
              $region75: #{cptm_bottleneck_forward.1} parent=71 // loop_header_branch
                %384 = sbr.rel (%p382) target = $region79
              $region76: #{cptm_bottleneck_forward.1} parent=71 // loop_body
                %v388 = vld [vmem:[%s386] sm:$0xf]
                %389 = vst [vmem:[%s387] sm:$0xf] %v388
                %v390 = vld [vmem:[%s386 + $0x8] sm:$0xf]
                %391 = vst [vmem:[%s387 + $0x4] sm:$0xf] %v390
                %v392 = vld [vmem:[%s386 + $0x10] sm:$0xf]
                %393 = vst [vmem:[%s387 + $0x8] sm:$0xf] %v392
                %v394 = vld [vmem:[%s386 + $0x18] sm:$0xf]
                %395 = vst [vmem:[%s387 + $0xc] sm:$0xf] %v394
                %v396 = vld [vmem:[%s386 + $0x20] sm:$0xf]
                %397 = vst [vmem:[%s387 + $0x10] sm:$0xf] %v396
                %v398 = vld [vmem:[%s386 + $0x28] sm:$0xf]
                %399 = vst [vmem:[%s387 + $0x14] sm:$0xf] %v398
                %v400 = vld [vmem:[%s386 + $0x30] sm:$0xf]
                %401 = vst [vmem:[%s387 + $0x18] sm:$0xf] %v400
                %v402 = vld [vmem:[%s386 + $0x38] sm:$0xf]
                %403 = vst [vmem:[%s387 + $0x1c] sm:$0xf] %v402
                %v404 = vld [vmem:[%s386 + $0x40] sm:$0xf]
                %405 = vst [vmem:[%s387 + $0x20] sm:$0xf] %v404
                %v406 = vld [vmem:[%s386 + $0x48] sm:$0xf]
                %407 = vst [vmem:[%s387 + $0x24] sm:$0xf] %v406
                %v408 = vld [vmem:[%s386 + $0x50] sm:$0xf]
                %409 = vst [vmem:[%s387 + $0x28] sm:$0xf] %v408
                %v410 = vld [vmem:[%s386 + $0x58] sm:$0xf]
                %411 = vst [vmem:[%s387 + $0x2c] sm:$0xf] %v410
                %v412 = vld [vmem:[%s386 + $0x60] sm:$0xf]
                %413 = vst [vmem:[%s387 + $0x30] sm:$0xf] %v412
                %v414 = vld [vmem:[%s386 + $0x68] sm:$0xf]
                %415 = vst [vmem:[%s387 + $0x34] sm:$0xf] %v414
                %v416 = vld [vmem:[%s386 + $0x70] sm:$0xf]
                %417 = vst [vmem:[%s387 + $0x38] sm:$0xf] %v416
                %v418 = vld [vmem:[%s386 + $0x78] sm:$0xf]
                %419 = vst [vmem:[%s387 + $0x3c] sm:$0xf] %v418
                %v420 = vld [vmem:[%s386 + $0x80] sm:$0xf]
                %421 = vst [vmem:[%s387 + $0x40] sm:$0xf] %v420
                %v422 = vld [vmem:[%s386 + $0x88] sm:$0xf]
                %423 = vst [vmem:[%s387 + $0x44] sm:$0xf] %v422
                %v424 = vld [vmem:[%s386 + $0x90] sm:$0xf]
                %425 = vst [vmem:[%s387 + $0x48] sm:$0xf] %v424
                %v426 = vld [vmem:[%s386 + $0x98] sm:$0xf]
                %427 = vst [vmem:[%s387 + $0x4c] sm:$0xf] %v426
                %v428 = vld [vmem:[%s386 + $0xa0] sm:$0xf]
                %429 = vst [vmem:[%s387 + $0x50] sm:$0xf] %v428
                %v430 = vld [vmem:[%s386 + $0xa8] sm:$0xf]
                %431 = vst [vmem:[%s387 + $0x54] sm:$0xf] %v430
                %v432 = vld [vmem:[%s386 + $0xb0] sm:$0xf]
                %433 = vst [vmem:[%s387 + $0x58] sm:$0xf] %v432
                %v434 = vld [vmem:[%s386 + $0xb8] sm:$0xf]
                %435 = vst [vmem:[%s387 + $0x5c] sm:$0xf] %v434
                %v436 = vld [vmem:[%s386 + $0xc0] sm:$0xf]
                %437 = vst [vmem:[%s387 + $0x60] sm:$0xf] %v436
                %v438 = vld [vmem:[%s386 + $0xc8] sm:$0xf]
                %439 = vst [vmem:[%s387 + $0x64] sm:$0xf] %v438
                %v440 = vld [vmem:[%s386 + $0xd0] sm:$0xf]
                %441 = vst [vmem:[%s387 + $0x68] sm:$0xf] %v440
                %v442 = vld [vmem:[%s386 + $0xd8] sm:$0xf]
                %443 = vst [vmem:[%s387 + $0x6c] sm:$0xf] %v442
                %v444 = vld [vmem:[%s386 + $0xe0] sm:$0xf]
                %445 = vst [vmem:[%s387 + $0x70] sm:$0xf] %v444
                %v446 = vld [vmem:[%s386 + $0xe8] sm:$0xf]
                %447 = vst [vmem:[%s387 + $0x74] sm:$0xf] %v446
                %v448 = vld [vmem:[%s386 + $0xf0] sm:$0xf]
                %449 = vst [vmem:[%s387 + $0x78] sm:$0xf] %v448
                %v450 = vld [vmem:[%s386 + $0xf8] sm:$0xf]
                %451 = vst [vmem:[%s387 + $0x7c] sm:$0xf] %v450
                %v452 = vld [vmem:[%s386 + $0x100] sm:$0xf]
                %453 = vst [vmem:[%s387 + $0x80] sm:$0xf] %v452
                %v454 = vld [vmem:[%s386 + $0x108] sm:$0xf]
                %455 = vst [vmem:[%s387 + $0x84] sm:$0xf] %v454
                %v456 = vld [vmem:[%s386 + $0x110] sm:$0xf]
                %457 = vst [vmem:[%s387 + $0x88] sm:$0xf] %v456
                %v458 = vld [vmem:[%s386 + $0x118] sm:$0xf]
                %459 = vst [vmem:[%s387 + $0x8c] sm:$0xf] %v458
                %v460 = vld [vmem:[%s386 + $0x120] sm:$0xf]
                %461 = vst [vmem:[%s387 + $0x90] sm:$0xf] %v460
                %v462 = vld [vmem:[%s386 + $0x128] sm:$0xf]
                %463 = vst [vmem:[%s387 + $0x94] sm:$0xf] %v462
                %v464 = vld [vmem:[%s386 + $0x130] sm:$0xf]
                %465 = vst [vmem:[%s387 + $0x98] sm:$0xf] %v464
                %v466 = vld [vmem:[%s386 + $0x138] sm:$0xf]
                %467 = vst [vmem:[%s387 + $0x9c] sm:$0xf] %v466
                %v468 = vld [vmem:[%s386 + $0x140] sm:$0xf]
                %469 = vst [vmem:[%s387 + $0xa0] sm:$0xf] %v468
                %v470 = vld [vmem:[%s386 + $0x148] sm:$0xf]
                %471 = vst [vmem:[%s387 + $0xa4] sm:$0xf] %v470
                %v472 = vld [vmem:[%s386 + $0x150] sm:$0xf]
                %473 = vst [vmem:[%s387 + $0xa8] sm:$0xf] %v472
                %v474 = vld [vmem:[%s386 + $0x158] sm:$0xf]
                %475 = vst [vmem:[%s387 + $0xac] sm:$0xf] %v474
                %v476 = vld [vmem:[%s386 + $0x160] sm:$0xf]
                %477 = vst [vmem:[%s387 + $0xb0] sm:$0xf] %v476
                %v478 = vld [vmem:[%s386 + $0x168] sm:$0xf]
                %479 = vst [vmem:[%s387 + $0xb4] sm:$0xf] %v478
                %v480 = vld [vmem:[%s386 + $0x170] sm:$0xf]
                %481 = vst [vmem:[%s387 + $0xb8] sm:$0xf] %v480
                %v482 = vld [vmem:[%s386 + $0x178] sm:$0xf]
                %483 = vst [vmem:[%s387 + $0xbc] sm:$0xf] %v482
                %v484 = vld [vmem:[%s386 + $0x180] sm:$0xf]
                %485 = vst [vmem:[%s387 + $0xc0] sm:$0xf] %v484
                %v486 = vld [vmem:[%s386 + $0x188] sm:$0xf]
                %487 = vst [vmem:[%s387 + $0xc4] sm:$0xf] %v486
                %v488 = vld [vmem:[%s386 + $0x190] sm:$0xf]
                %489 = vst [vmem:[%s387 + $0xc8] sm:$0xf] %v488
                %v490 = vld [vmem:[%s386 + $0x198] sm:$0xf]
                %491 = vst [vmem:[%s387 + $0xcc] sm:$0xf] %v490
                %v492 = vld [vmem:[%s386 + $0x1a0] sm:$0xf]
                %493 = vst [vmem:[%s387 + $0xd0] sm:$0xf] %v492
                %v494 = vld [vmem:[%s386 + $0x1a8] sm:$0xf]
                %495 = vst [vmem:[%s387 + $0xd4] sm:$0xf] %v494
                %v496 = vld [vmem:[%s386 + $0x1b0] sm:$0xf]
                %497 = vst [vmem:[%s387 + $0xd8] sm:$0xf] %v496
                %v498 = vld [vmem:[%s386 + $0x1b8] sm:$0xf]
                %499 = vst [vmem:[%s387 + $0xdc] sm:$0xf] %v498
                %v500 = vld [vmem:[%s386 + $0x1c0] sm:$0xf]
                %501 = vst [vmem:[%s387 + $0xe0] sm:$0xf] %v500
                %v502 = vld [vmem:[%s386 + $0x1c8] sm:$0xf]
                %503 = vst [vmem:[%s387 + $0xe4] sm:$0xf] %v502
                %v504 = vld [vmem:[%s386 + $0x1d0] sm:$0xf]
                %505 = vst [vmem:[%s387 + $0xe8] sm:$0xf] %v504
                %v506 = vld [vmem:[%s386 + $0x1d8] sm:$0xf]
                %507 = vst [vmem:[%s387 + $0xec] sm:$0xf] %v506
                %v508 = vld [vmem:[%s386 + $0x1e0] sm:$0xf]
                %509 = vst [vmem:[%s387 + $0xf0] sm:$0xf] %v508
                %v510 = vld [vmem:[%s386 + $0x1e8] sm:$0xf]
                %511 = vst [vmem:[%s387 + $0xf4] sm:$0xf] %v510
                %v512 = vld [vmem:[%s386 + $0x1f0] sm:$0xf]
                %513 = vst [vmem:[%s387 + $0xf8] sm:$0xf] %v512
                %v514 = vld [vmem:[%s386 + $0x1f8] sm:$0xf]
                %515 = vst [vmem:[%s387 + $0xfc] sm:$0xf] %v514
              $region77: #{cptm_bottleneck_forward.1} parent=71 // loop_footer
                %s385 = sadd.s32 1, %s381
              $region78: #{cptm_bottleneck_forward.1} parent=71 // loop_footer_branch
                %380 = sbr.rel target = $region74
              $region79: #{cptm_bottleneck_forward.1} parent=71 // loop_exit
                _
            $region72: #{cptm_bottleneck_forward.1} parent=63 // pred_fallthru
              _
          $region64: #{cptm_bottleneck_forward.1} parent=59 // pred_fallthru
            _
          %663 = vnop
        $region60: #{cptm_bottleneck_forward.1} parent=55 // pred_fallthru
          _
      $region56: #{cptm_bottleneck_forward.1} parent=5 // pred_fallthru
        _
      %p664 = scmp.le.s32.totalorder 1, %s17
      %p665 = scmp.lt.s32.totalorder %s17, 9
      %p666 = pnand %p664, %p665
      %p667 = pneg %p666
      // Predicated region
      $region98: #{cptm_bottleneck_forward.1} parent=5 // pred_check
        _
      $region99: #{cptm_bottleneck_forward.1} parent=5 // pred_check_branch
        %669 = sbr.rel (%p666) target = $region101
      $region100: #{cptm_bottleneck_forward.1} parent=5 // pred_region
        %s670 = ssub.s32 %s17, 1
        %s671 = sand.u32 %s57, 1
        %s672 = sand.u32 %s57, 1
        %s673 = smul.addr %s672, 256
        %s674 = scalar_lea.vmem [#allocation6], %s673
        // Predicated region
        $region102: #{cptm_bottleneck_forward.1} parent=100 // pred_check
          %p675 = pneg %p70
        $region103: #{cptm_bottleneck_forward.1} parent=100 // pred_check_branch
          %677 = sbr.rel (%p675) target = $region105
        $region104: #{cptm_bottleneck_forward.1} parent=100 // pred_region
          _
        $region105: #{cptm_bottleneck_forward.1} parent=100 // pred_fallthru
          _
        %s678 = sand.u32 %s57, 1
        %s679 = sand.u32 %s57, 1
        %s680 = smul.addr %s679, 256
        %s681 = scalar_lea.vmem [#allocation6], %s680
        %p682 = pneg %p70
        %p683 = pneg %p67
        %p684 = pneg %p91
        %p685 = pneg %p88
        %p686 = pneg %p112
        %p687 = pneg %p109
        %p688 = pneg %p133
        %p689 = pneg %p130
        %p690 = pneg %p154
        %p691 = pneg %p151
        %p692 = pneg %p175
        %p693 = pneg %p172
        %p694 = pneg %p196
        %p695 = pneg %p193
        %p696 = pneg %p217
        %p697 = pneg %p214
        %p698 = pneg %p238
        %p699 = pneg %p235
        %p700 = pneg %p259
        %p701 = pneg %p256
        %p702 = pneg %p280
        %p703 = pneg %p277
        %p704 = pneg %p310
        %p705 = pneg %p307
        %s706 = sand.u32 %s297, 1
        %s707 = sand.u32 %s297, 1
        %s708 = smul.addr %s707, 256
        %s709 = scalar_lea.vmem [#allocation7], %s708
        %s710 = ssub.s32 1, %s28
        %s711 = smul.u32 %s29, %s710
        %s712 = sadd.s32 %s711, %s28
        %s713 = smul.u32 %s29, %s28
        %p715 = scmp.eq.s32.totalorder %s28, 0
        // Predicated region
        $region106: #{cptm_bottleneck_forward.1} parent=100 // pred_check
          %p716 = pneg %p715
        $region107: #{cptm_bottleneck_forward.1} parent=100 // pred_check_branch
          %718 = sbr.rel (%p716) target = $region109
        $region108: #{cptm_bottleneck_forward.1} parent=100 // pred_region
          %p719 = scmp.eq.s32.totalorder %s29, 0
          // Predicated region
          $region110: #{cptm_bottleneck_forward.1} parent=108 // pred_check
            %p720 = pneg %p719
          $region111: #{cptm_bottleneck_forward.1} parent=108 // pred_check_branch
            %722 = sbr.rel (%p720) target = $region113
          $region112: #{cptm_bottleneck_forward.1} parent=108 // pred_region
            %vm723 = vcmask 7168
            %724 = vst.msk [vmem:[#allocation4] sm:$0xff] %vm723, 0.0
            %725 = vst.msk [vmem:[#allocation4 + $0x8] sm:$0xff] %vm723, 0.0
          $region113: #{cptm_bottleneck_forward.1} parent=108 // pred_fallthru
            _
          %v726 = vld [vmem:[%s1] sm:$0xf]
          %v727 = vld [vmem:[%s1 + $0x4] sm:$0xf]
          %v728 = vld [vmem:[%s2] sm:$0xff]
          %v729 = vld [vmem:[%s2 + $0x8] sm:$0xff]
          %v730 = vld [vmem:[%s674] sm:$0xf]
          %v731 = vld [vmem:[%s674 + $0x4] sm:$0xf]
          %v732 = vld [vmem:[%s674 + $0x8] sm:$0xf]
          %v733 = vld [vmem:[%s674 + $0xc] sm:$0xf]
          %v734 = vld [vmem:[%s674 + $0x10] sm:$0xf]
          %v735 = vld [vmem:[%s674 + $0x14] sm:$0xf]
          %v736 = vld [vmem:[%s674 + $0x18] sm:$0xf]
          %v737 = vld [vmem:[%s674 + $0x1c] sm:$0xf]
          %739 = vset.pattern.permute.xlu0 0
          %740 = vperm.xlu0 %739, %v728
          %v741 = vpop.permute.xlu0 %740
          %744 = vset.pattern.permute.xlu0 0
          %745 = vperm.xlu0 %744, %v729
          %v746 = vpop.permute.xlu0 %745
          %v750 = vunpack.c.l.b16 %v726
          %v751 = vunpack.c.l.b16 %v727
          %v752 = vpack.c.b16 %v751, %v750
          %v761 = vunpack.c.l.b16 %v730
          %v762 = vunpack.c.l.b16 %v731
          %v763 = vunpack.c.l.b16 %v732
          %v764 = vunpack.c.l.b16 %v733
          %v765 = vunpack.c.l.b16 %v734
          %v766 = vunpack.c.l.b16 %v735
          %v767 = vunpack.c.l.b16 %v736
          %v768 = vunpack.c.l.b16 %v737
          %v769 = vpack.c.b16 %v762, %v761
          %v770 = vpack.c.b16 %v764, %v763
          %v771 = vpack.c.b16 %v766, %v765
          %v772 = vpack.c.b16 %v768, %v767
          %vm777 = vcmask 523264
          %v779 = vsel %vm777, %v752, 0
          %781 = vmatprep.subr.bf16.mxu0 0
          %782 = vmatpush1.bf16.msra.mxu0 %v769
          %783 = vmatprep.subr.bf16.mxu0 0
          %784 = vmatpush1.bf16.msra.mxu0 %v770
          %785 = vmatprep.subr.bf16.mxu0 0
          %786 = vmatpush1.bf16.msra.mxu0 %v771
          %787 = vmatprep.subr.bf16.mxu0 0
          %788 = vmatpush1.bf16.msra.mxu0 %v772
          %789 = vmatprep.subr.bf16.mxu0 0
          %790 = vmatpush1.bf16.msra.mxu0 0
          %791 = vmatprep.subr.bf16.mxu0 0
          %792 = vmatpush1.bf16.msra.mxu0 0
          %793 = vmatprep.subr.bf16.mxu0 0
          %794 = vmatpush1.bf16.msra.mxu0 0
          %795 = vmatprep.subr.bf16.mxu0 0
          %796 = vmatpush1.bf16.msra.mxu0 0
          %797 = vmatprep.subr.bf16.mxu0 0
          %798 = vmatpush1.bf16.msra.mxu0 0
          %799 = vmatprep.subr.bf16.mxu0 0
          %800 = vmatpush1.bf16.msra.mxu0 0
          %801 = vmatprep.subr.bf16.mxu0 0
          %802 = vmatpush1.bf16.msra.mxu0 0
          %803 = vmatprep.subr.bf16.mxu0 0
          %804 = vmatpush1.bf16.msra.mxu0 0
          %805 = vmatprep.subr.bf16.mxu0 0
          %806 = vmatpush1.bf16.msra.mxu0 0
          %807 = vmatprep.subr.bf16.mxu0 0
          %808 = vmatpush1.bf16.msra.mxu0 0
          %809 = vmatprep.subr.bf16.mxu0 0
          %810 = vmatpush1.bf16.msra.mxu0 0
          %811 = vmatprep.subr.bf16.mxu0 0
          %812 = vmatpush1.bf16.msra.mxu0 0
          %813 = vmatprep.mubr.bf16.mxu0 0
          %814 = vmatmul.mubr.bf16.gmra.mrb[0].mxu0 %v779
          %v815 = vpop.f32.mrb[0].mxu0
          %v816 = vadd.f32 %v741, %v815
          %v817 = vpop.f32.mrb[0].mxu0
          %v818 = vpop.f32.mrb[0].mxu0
          %v819 = vadd.f32 %v746, %v818
          %v820 = vpop.f32.mrb[0].mxu0
          %821 = vdwg.mxu0
          %v822 = vmax.f32 %v816, 0.0
          %v823 = vmax.f32 %v819, 0.0
          %v824 = vpack.c.bf16 %v823, %v822
          %825 = vst [vmem:[#allocation2] sm:$0xff] %v824
          %s826 = scalar_lea.vmem %s674, 32 [#allocation6]
          %v827 = vld [vmem:[%s826] sm:$0xf]
          %v828 = vld [vmem:[%s826 + $0x4] sm:$0xf]
          %v829 = vld [vmem:[%s826 + $0x8] sm:$0xf]
          %v830 = vld [vmem:[%s826 + $0xc] sm:$0xf]
          %v831 = vld [vmem:[%s826 + $0x10] sm:$0xf]
          %v832 = vld [vmem:[%s826 + $0x14] sm:$0xf]
          %v833 = vld [vmem:[%s826 + $0x18] sm:$0xf]
          %v834 = vld [vmem:[%s826 + $0x1c] sm:$0xf]
          %v843 = vunpack.c.l.b16 %v827
          %v844 = vunpack.c.l.b16 %v828
          %v845 = vunpack.c.l.b16 %v829
          %v846 = vunpack.c.l.b16 %v830
          %v847 = vunpack.c.l.b16 %v831
          %v848 = vunpack.c.l.b16 %v832
          %v849 = vunpack.c.l.b16 %v833
          %v850 = vunpack.c.l.b16 %v834
          %v851 = vpack.c.b16 %v844, %v843
          %v852 = vpack.c.b16 %v846, %v845
          %v853 = vpack.c.b16 %v848, %v847
          %v854 = vpack.c.b16 %v850, %v849
          %859 = vmatprep.subr.bf16.mxu0 0
          %860 = vmatpush1.bf16.msra.mxu0 %v851
          %861 = vmatprep.subr.bf16.mxu0 0
          %862 = vmatpush1.bf16.msra.mxu0 %v852
          %863 = vmatprep.subr.bf16.mxu0 0
          %864 = vmatpush1.bf16.msra.mxu0 %v853
          %865 = vmatprep.subr.bf16.mxu0 0
          %866 = vmatpush1.bf16.msra.mxu0 %v854
          %867 = vmatprep.subr.bf16.mxu0 0
          %868 = vmatpush1.bf16.msra.mxu0 0
          %869 = vmatprep.subr.bf16.mxu0 0
          %870 = vmatpush1.bf16.msra.mxu0 0
          %871 = vmatprep.subr.bf16.mxu0 0
          %872 = vmatpush1.bf16.msra.mxu0 0
          %873 = vmatprep.subr.bf16.mxu0 0
          %874 = vmatpush1.bf16.msra.mxu0 0
          %875 = vmatprep.subr.bf16.mxu0 0
          %876 = vmatpush1.bf16.msra.mxu0 0
          %877 = vmatprep.subr.bf16.mxu0 0
          %878 = vmatpush1.bf16.msra.mxu0 0
          %879 = vmatprep.subr.bf16.mxu0 0
          %880 = vmatpush1.bf16.msra.mxu0 0
          %881 = vmatprep.subr.bf16.mxu0 0
          %882 = vmatpush1.bf16.msra.mxu0 0
          %883 = vmatprep.subr.bf16.mxu0 0
          %884 = vmatpush1.bf16.msra.mxu0 0
          %885 = vmatprep.subr.bf16.mxu0 0
          %886 = vmatpush1.bf16.msra.mxu0 0
          %887 = vmatprep.subr.bf16.mxu0 0
          %888 = vmatpush1.bf16.msra.mxu0 0
          %889 = vmatprep.subr.bf16.mxu0 0
          %890 = vmatpush1.bf16.msra.mxu0 0
          %891 = vmatprep.mubr.bf16.mxu0 0
          %892 = vmatmul.mubr.bf16.gmra.mrb[0].mxu0 %v779
          %v893 = vpop.f32.mrb[0].mxu0
          %v894 = vadd.f32 %v741, %v893
          %v895 = vpop.f32.mrb[0].mxu0
          %v896 = vpop.f32.mrb[0].mxu0
          %v897 = vadd.f32 %v746, %v896
          %v898 = vpop.f32.mrb[0].mxu0
          %899 = vdwg.mxu0
          %v900 = vmax.f32 %v894, 0.0
          %v901 = vmax.f32 %v897, 0.0
          %v902 = vpack.c.bf16 %v901, %v900
          %903 = vst [vmem:[#allocation2 + $0x8] sm:$0xff] %v902
          %s904 = scalar_lea.vmem %s674, 64 [#allocation6]
          %v905 = vld [vmem:[%s904] sm:$0xf]
          %v906 = vld [vmem:[%s904 + $0x4] sm:$0xf]
          %v907 = vld [vmem:[%s904 + $0x8] sm:$0xf]
          %v908 = vld [vmem:[%s904 + $0xc] sm:$0xf]
          %v909 = vld [vmem:[%s904 + $0x10] sm:$0xf]
          %v910 = vld [vmem:[%s904 + $0x14] sm:$0xf]
          %v911 = vld [vmem:[%s904 + $0x18] sm:$0xf]
          %v912 = vld [vmem:[%s904 + $0x1c] sm:$0xf]
          %v921 = vunpack.c.l.b16 %v905
          %v922 = vunpack.c.l.b16 %v906
          %v923 = vunpack.c.l.b16 %v907
          %v924 = vunpack.c.l.b16 %v908
          %v925 = vunpack.c.l.b16 %v909
          %v926 = vunpack.c.l.b16 %v910
          %v927 = vunpack.c.l.b16 %v911
          %v928 = vunpack.c.l.b16 %v912
          %v929 = vpack.c.b16 %v922, %v921
          %v930 = vpack.c.b16 %v924, %v923
          %v931 = vpack.c.b16 %v926, %v925
          %v932 = vpack.c.b16 %v928, %v927
          %937 = vmatprep.subr.bf16.mxu0 0
          %938 = vmatpush1.bf16.msra.mxu0 %v929
          %939 = vmatprep.subr.bf16.mxu0 0
          %940 = vmatpush1.bf16.msra.mxu0 %v930
          %941 = vmatprep.subr.bf16.mxu0 0
          %942 = vmatpush1.bf16.msra.mxu0 %v931
          %943 = vmatprep.subr.bf16.mxu0 0
          %944 = vmatpush1.bf16.msra.mxu0 %v932
          %945 = vmatprep.subr.bf16.mxu0 0
          %946 = vmatpush1.bf16.msra.mxu0 0
          %947 = vmatprep.subr.bf16.mxu0 0
          %948 = vmatpush1.bf16.msra.mxu0 0
          %949 = vmatprep.subr.bf16.mxu0 0
          %950 = vmatpush1.bf16.msra.mxu0 0
          %951 = vmatprep.subr.bf16.mxu0 0
          %952 = vmatpush1.bf16.msra.mxu0 0
          %953 = vmatprep.subr.bf16.mxu0 0
          %954 = vmatpush1.bf16.msra.mxu0 0
          %955 = vmatprep.subr.bf16.mxu0 0
          %956 = vmatpush1.bf16.msra.mxu0 0
          %957 = vmatprep.subr.bf16.mxu0 0
          %958 = vmatpush1.bf16.msra.mxu0 0
          %959 = vmatprep.subr.bf16.mxu0 0
          %960 = vmatpush1.bf16.msra.mxu0 0
          %961 = vmatprep.subr.bf16.mxu0 0
          %962 = vmatpush1.bf16.msra.mxu0 0
          %963 = vmatprep.subr.bf16.mxu0 0
          %964 = vmatpush1.bf16.msra.mxu0 0
          %965 = vmatprep.subr.bf16.mxu0 0
          %966 = vmatpush1.bf16.msra.mxu0 0
          %967 = vmatprep.subr.bf16.mxu0 0
          %968 = vmatpush1.bf16.msra.mxu0 0
          %969 = vmatprep.mubr.bf16.mxu0 0
          %970 = vmatmul.mubr.bf16.gmra.mrb[0].mxu0 %v779
          %v971 = vpop.f32.mrb[0].mxu0
          %v972 = vadd.f32 %v741, %v971
          %v973 = vpop.f32.mrb[0].mxu0
          %v974 = vpop.f32.mrb[0].mxu0
          %v975 = vadd.f32 %v746, %v974
          %v976 = vpop.f32.mrb[0].mxu0
          %977 = vdwg.mxu0
          %v978 = vmax.f32 %v972, 0.0
          %v979 = vmax.f32 %v975, 0.0
          %v980 = vpack.c.bf16 %v979, %v978
          %981 = vst [vmem:[#allocation2 + $0x10] sm:$0xff] %v980
          %s982 = scalar_lea.vmem %s674, 96 [#allocation6]
          %v983 = vld [vmem:[%s982] sm:$0xf]
          %v984 = vld [vmem:[%s982 + $0x4] sm:$0xf]
          %v985 = vld [vmem:[%s982 + $0x8] sm:$0xf]
          %v986 = vld [vmem:[%s982 + $0xc] sm:$0xf]
          %v987 = vld [vmem:[%s982 + $0x10] sm:$0xf]
          %v988 = vld [vmem:[%s982 + $0x14] sm:$0xf]
          %v989 = vld [vmem:[%s982 + $0x18] sm:$0xf]
          %v990 = vld [vmem:[%s982 + $0x1c] sm:$0xf]
          %v999 = vunpack.c.l.b16 %v983
          %v1000 = vunpack.c.l.b16 %v984
          %v1001 = vunpack.c.l.b16 %v985
          %v1002 = vunpack.c.l.b16 %v986
          %v1003 = vunpack.c.l.b16 %v987
          %v1004 = vunpack.c.l.b16 %v988
          %v1005 = vunpack.c.l.b16 %v989
          %v1006 = vunpack.c.l.b16 %v990
          %v1007 = vpack.c.b16 %v1000, %v999
          %v1008 = vpack.c.b16 %v1002, %v1001
          %v1009 = vpack.c.b16 %v1004, %v1003
          %v1010 = vpack.c.b16 %v1006, %v1005
          %1015 = vmatprep.subr.bf16.mxu0 0
          %1016 = vmatpush1.bf16.msra.mxu0 %v1007
          %1017 = vmatprep.subr.bf16.mxu0 0
          %1018 = vmatpush1.bf16.msra.mxu0 %v1008
          %1019 = vmatprep.subr.bf16.mxu0 0
          %1020 = vmatpush1.bf16.msra.mxu0 %v1009
          %1021 = vmatprep.subr.bf16.mxu0 0
          %1022 = vmatpush1.bf16.msra.mxu0 %v1010
          %1023 = vmatprep.subr.bf16.mxu0 0
          %1024 = vmatpush1.bf16.msra.mxu0 0
          %1025 = vmatprep.subr.bf16.mxu0 0
          %1026 = vmatpush1.bf16.msra.mxu0 0
          %1027 = vmatprep.subr.bf16.mxu0 0
          %1028 = vmatpush1.bf16.msra.mxu0 0
          %1029 = vmatprep.subr.bf16.mxu0 0
          %1030 = vmatpush1.bf16.msra.mxu0 0
          %1031 = vmatprep.subr.bf16.mxu0 0
          %1032 = vmatpush1.bf16.msra.mxu0 0
          %1033 = vmatprep.subr.bf16.mxu0 0
          %1034 = vmatpush1.bf16.msra.mxu0 0
          %1035 = vmatprep.subr.bf16.mxu0 0
          %1036 = vmatpush1.bf16.msra.mxu0 0
          %1037 = vmatprep.subr.bf16.mxu0 0
          %1038 = vmatpush1.bf16.msra.mxu0 0
          %1039 = vmatprep.subr.bf16.mxu0 0
          %1040 = vmatpush1.bf16.msra.mxu0 0
          %1041 = vmatprep.subr.bf16.mxu0 0
          %1042 = vmatpush1.bf16.msra.mxu0 0
          %1043 = vmatprep.subr.bf16.mxu0 0
          %1044 = vmatpush1.bf16.msra.mxu0 0
          %1045 = vmatprep.subr.bf16.mxu0 0
          %1046 = vmatpush1.bf16.msra.mxu0 0
          %1047 = vmatprep.mubr.bf16.mxu0 0
          %1048 = vmatmul.mubr.bf16.gmra.mrb[0].mxu0 %v779
          %v1049 = vpop.f32.mrb[0].mxu0
          %v1050 = vadd.f32 %v741, %v1049
          %v1051 = vpop.f32.mrb[0].mxu0
          %v1052 = vpop.f32.mrb[0].mxu0
          %v1053 = vadd.f32 %v746, %v1052
          %v1054 = vpop.f32.mrb[0].mxu0
          %1055 = vdwg.mxu0
          %v1056 = vmax.f32 %v1050, 0.0
          %v1057 = vmax.f32 %v1053, 0.0
          %v1058 = vpack.c.bf16 %v1057, %v1056
          %1059 = vst [vmem:[#allocation2 + $0x18] sm:$0xff] %v1058
          %s1060 = scalar_lea.vmem %s674, 128 [#allocation6]
          %v1061 = vld [vmem:[%s1060] sm:$0xf]
          %v1062 = vld [vmem:[%s1060 + $0x4] sm:$0xf]
          %v1063 = vld [vmem:[%s1060 + $0x8] sm:$0xf]
          %v1064 = vld [vmem:[%s1060 + $0xc] sm:$0xf]
          %v1065 = vld [vmem:[%s1060 + $0x10] sm:$0xf]
          %v1066 = vld [vmem:[%s1060 + $0x14] sm:$0xf]
          %v1067 = vld [vmem:[%s1060 + $0x18] sm:$0xf]
          %v1068 = vld [vmem:[%s1060 + $0x1c] sm:$0xf]
          %v1077 = vunpack.c.l.b16 %v1061
          %v1078 = vunpack.c.l.b16 %v1062
          %v1079 = vunpack.c.l.b16 %v1063
          %v1080 = vunpack.c.l.b16 %v1064
          %v1081 = vunpack.c.l.b16 %v1065
          %v1082 = vunpack.c.l.b16 %v1066
          %v1083 = vunpack.c.l.b16 %v1067
          %v1084 = vunpack.c.l.b16 %v1068
          %v1085 = vpack.c.b16 %v1078, %v1077
          %v1086 = vpack.c.b16 %v1080, %v1079
          %v1087 = vpack.c.b16 %v1082, %v1081
          %v1088 = vpack.c.b16 %v1084, %v1083
          %1093 = vmatprep.subr.bf16.mxu0 0
          %1094 = vmatpush1.bf16.msra.mxu0 %v1085
          %1095 = vmatprep.subr.bf16.mxu0 0
          %1096 = vmatpush1.bf16.msra.mxu0 %v1086
          %1097 = vmatprep.subr.bf16.mxu0 0
          %1098 = vmatpush1.bf16.msra.mxu0 %v1087
          %1099 = vmatprep.subr.bf16.mxu0 0
          %1100 = vmatpush1.bf16.msra.mxu0 %v1088
          %1101 = vmatprep.subr.bf16.mxu0 0
          %1102 = vmatpush1.bf16.msra.mxu0 0
          %1103 = vmatprep.subr.bf16.mxu0 0
          %1104 = vmatpush1.bf16.msra.mxu0 0
          %1105 = vmatprep.subr.bf16.mxu0 0
          %1106 = vmatpush1.bf16.msra.mxu0 0
          %1107 = vmatprep.subr.bf16.mxu0 0
          %1108 = vmatpush1.bf16.msra.mxu0 0
          %1109 = vmatprep.subr.bf16.mxu0 0
          %1110 = vmatpush1.bf16.msra.mxu0 0
          %1111 = vmatprep.subr.bf16.mxu0 0
          %1112 = vmatpush1.bf16.msra.mxu0 0
          %1113 = vmatprep.subr.bf16.mxu0 0
          %1114 = vmatpush1.bf16.msra.mxu0 0
          %1115 = vmatprep.subr.bf16.mxu0 0
          %1116 = vmatpush1.bf16.msra.mxu0 0
          %1117 = vmatprep.subr.bf16.mxu0 0
          %1118 = vmatpush1.bf16.msra.mxu0 0
          %1119 = vmatprep.subr.bf16.mxu0 0
          %1120 = vmatpush1.bf16.msra.mxu0 0
          %1121 = vmatprep.subr.bf16.mxu0 0
          %1122 = vmatpush1.bf16.msra.mxu0 0
          %1123 = vmatprep.subr.bf16.mxu0 0
          %1124 = vmatpush1.bf16.msra.mxu0 0
          %1125 = vmatprep.mubr.bf16.mxu0 0
          %1126 = vmatmul.mubr.bf16.gmra.mrb[0].mxu0 %v779
          %v1127 = vpop.f32.mrb[0].mxu0
          %v1128 = vadd.f32 %v741, %v1127
          %v1129 = vpop.f32.mrb[0].mxu0
          %v1130 = vpop.f32.mrb[0].mxu0
          %v1131 = vadd.f32 %v746, %v1130
          %v1132 = vpop.f32.mrb[0].mxu0
          %1133 = vdwg.mxu0
          %v1134 = vmax.f32 %v1128, 0.0
          %v1135 = vmax.f32 %v1131, 0.0
          %v1136 = vpack.c.bf16 %v1135, %v1134
          %1137 = vst [vmem:[#allocation2 + $0x20] sm:$0xff] %v1136
          %s1138 = scalar_lea.vmem %s674, 160 [#allocation6]
          %v1139 = vld [vmem:[%s1138] sm:$0xf]
          %v1140 = vld [vmem:[%s1138 + $0x4] sm:$0xf]
          %v1141 = vld [vmem:[%s1138 + $0x8] sm:$0xf]
          %v1142 = vld [vmem:[%s1138 + $0xc] sm:$0xf]
          %v1143 = vld [vmem:[%s1138 + $0x10] sm:$0xf]
          %v1144 = vld [vmem:[%s1138 + $0x14] sm:$0xf]
          %v1145 = vld [vmem:[%s1138 + $0x18] sm:$0xf]
          %v1146 = vld [vmem:[%s1138 + $0x1c] sm:$0xf]
          %v1155 = vunpack.c.l.b16 %v1139
          %v1156 = vunpack.c.l.b16 %v1140
          %v1157 = vunpack.c.l.b16 %v1141
          %v1158 = vunpack.c.l.b16 %v1142
          %v1159 = vunpack.c.l.b16 %v1143
          %v1160 = vunpack.c.l.b16 %v1144
          %v1161 = vunpack.c.l.b16 %v1145
          %v1162 = vunpack.c.l.b16 %v1146
          %v1163 = vpack.c.b16 %v1156, %v1155
          %v1164 = vpack.c.b16 %v1158, %v1157
          %v1165 = vpack.c.b16 %v1160, %v1159
          %v1166 = vpack.c.b16 %v1162, %v1161
          %1171 = vmatprep.subr.bf16.mxu0 0
          %1172 = vmatpush1.bf16.msra.mxu0 %v1163
          %1173 = vmatprep.subr.bf16.mxu0 0
          %1174 = vmatpush1.bf16.msra.mxu0 %v1164
          %1175 = vmatprep.subr.bf16.mxu0 0
          %1176 = vmatpush1.bf16.msra.mxu0 %v1165
          %1177 = vmatprep.subr.bf16.mxu0 0
          %1178 = vmatpush1.bf16.msra.mxu0 %v1166
          %1179 = vmatprep.subr.bf16.mxu0 0
          %1180 = vmatpush1.bf16.msra.mxu0 0
          %1181 = vmatprep.subr.bf16.mxu0 0
          %1182 = vmatpush1.bf16.msra.mxu0 0
          %1183 = vmatprep.subr.bf16.mxu0 0
          %1184 = vmatpush1.bf16.msra.mxu0 0
          %1185 = vmatprep.subr.bf16.mxu0 0
          %1186 = vmatpush1.bf16.msra.mxu0 0
          %1187 = vmatprep.subr.bf16.mxu0 0
          %1188 = vmatpush1.bf16.msra.mxu0 0
          %1189 = vmatprep.subr.bf16.mxu0 0
          %1190 = vmatpush1.bf16.msra.mxu0 0
          %1191 = vmatprep.subr.bf16.mxu0 0
          %1192 = vmatpush1.bf16.msra.mxu0 0
          %1193 = vmatprep.subr.bf16.mxu0 0
          %1194 = vmatpush1.bf16.msra.mxu0 0
          %1195 = vmatprep.subr.bf16.mxu0 0
          %1196 = vmatpush1.bf16.msra.mxu0 0
          %1197 = vmatprep.subr.bf16.mxu0 0
          %1198 = vmatpush1.bf16.msra.mxu0 0
          %1199 = vmatprep.subr.bf16.mxu0 0
          %1200 = vmatpush1.bf16.msra.mxu0 0
          %1201 = vmatprep.subr.bf16.mxu0 0
          %1202 = vmatpush1.bf16.msra.mxu0 0
          %1203 = vmatprep.mubr.bf16.mxu0 0
          %1204 = vmatmul.mubr.bf16.gmra.mrb[0].mxu0 %v779
          %v1205 = vpop.f32.mrb[0].mxu0
          %v1206 = vadd.f32 %v741, %v1205
          %v1207 = vpop.f32.mrb[0].mxu0
          %v1208 = vpop.f32.mrb[0].mxu0
          %v1209 = vadd.f32 %v746, %v1208
          %v1210 = vpop.f32.mrb[0].mxu0
          %1211 = vdwg.mxu0
          %v1212 = vmax.f32 %v1206, 0.0
          %v1213 = vmax.f32 %v1209, 0.0
          %v1214 = vpack.c.bf16 %v1213, %v1212
          %1215 = vst [vmem:[#allocation2 + $0x28] sm:$0xff] %v1214
          %s1216 = scalar_lea.vmem %s674, 192 [#allocation6]
          %v1217 = vld [vmem:[%s1216] sm:$0xf]
          %v1218 = vld [vmem:[%s1216 + $0x4] sm:$0xf]
          %v1219 = vld [vmem:[%s1216 + $0x8] sm:$0xf]
          %v1220 = vld [vmem:[%s1216 + $0xc] sm:$0xf]
          %v1221 = vld [vmem:[%s1216 + $0x10] sm:$0xf]
          %v1222 = vld [vmem:[%s1216 + $0x14] sm:$0xf]
          %v1223 = vld [vmem:[%s1216 + $0x18] sm:$0xf]
          %v1224 = vld [vmem:[%s1216 + $0x1c] sm:$0xf]
          %v1233 = vunpack.c.l.b16 %v1217
          %v1234 = vunpack.c.l.b16 %v1218
          %v1235 = vunpack.c.l.b16 %v1219
          %v1236 = vunpack.c.l.b16 %v1220
          %v1237 = vunpack.c.l.b16 %v1221
          %v1238 = vunpack.c.l.b16 %v1222
          %v1239 = vunpack.c.l.b16 %v1223
          %v1240 = vunpack.c.l.b16 %v1224
          %v1241 = vpack.c.b16 %v1234, %v1233
          %v1242 = vpack.c.b16 %v1236, %v1235
          %v1243 = vpack.c.b16 %v1238, %v1237
          %v1244 = vpack.c.b16 %v1240, %v1239
          %1249 = vmatprep.subr.bf16.mxu0 0
          %1250 = vmatpush1.bf16.msra.mxu0 %v1241
          %1251 = vmatprep.subr.bf16.mxu0 0
          %1252 = vmatpush1.bf16.msra.mxu0 %v1242
          %1253 = vmatprep.subr.bf16.mxu0 0
          %1254 = vmatpush1.bf16.msra.mxu0 %v1243
          %1255 = vmatprep.subr.bf16.mxu0 0
          %1256 = vmatpush1.bf16.msra.mxu0 %v1244
          %1257 = vmatprep.subr.bf16.mxu0 0
          %1258 = vmatpush1.bf16.msra.mxu0 0
          %1259 = vmatprep.subr.bf16.mxu0 0
          %1260 = vmatpush1.bf16.msra.mxu0 0
          %1261 = vmatprep.subr.bf16.mxu0 0
          %1262 = vmatpush1.bf16.msra.mxu0 0
          %1263 = vmatprep.subr.bf16.mxu0 0
          %1264 = vmatpush1.bf16.msra.mxu0 0
          %1265 = vmatprep.subr.bf16.mxu0 0
          %1266 = vmatpush1.bf16.msra.mxu0 0
          %1267 = vmatprep.subr.bf16.mxu0 0
          %1268 = vmatpush1.bf16.msra.mxu0 0
          %1269 = vmatprep.subr.bf16.mxu0 0
          %1270 = vmatpush1.bf16.msra.mxu0 0
          %1271 = vmatprep.subr.bf16.mxu0 0
          %1272 = vmatpush1.bf16.msra.mxu0 0
          %1273 = vmatprep.subr.bf16.mxu0 0
          %1274 = vmatpush1.bf16.msra.mxu0 0
          %1275 = vmatprep.subr.bf16.mxu0 0
          %1276 = vmatpush1.bf16.msra.mxu0 0
          %1277 = vmatprep.subr.bf16.mxu0 0
          %1278 = vmatpush1.bf16.msra.mxu0 0
          %1279 = vmatprep.subr.bf16.mxu0 0
          %1280 = vmatpush1.bf16.msra.mxu0 0
          %1281 = vmatprep.mubr.bf16.mxu0 0
          %1282 = vmatmul.mubr.bf16.gmra.mrb[0].mxu0 %v779
          %v1283 = vpop.f32.mrb[0].mxu0
          %v1284 = vadd.f32 %v741, %v1283
          %v1285 = vpop.f32.mrb[0].mxu0
          %v1286 = vpop.f32.mrb[0].mxu0
          %v1287 = vadd.f32 %v746, %v1286
          %v1288 = vpop.f32.mrb[0].mxu0
          %1289 = vdwg.mxu0
          %v1290 = vmax.f32 %v1284, 0.0
          %v1291 = vmax.f32 %v1287, 0.0
          %v1292 = vpack.c.bf16 %v1291, %v1290
          %1293 = vst [vmem:[#allocation2 + $0x30] sm:$0xff] %v1292
          %s1294 = scalar_lea.vmem %s674, 224 [#allocation6]
          %v1295 = vld [vmem:[%s1294] sm:$0xf]
          %v1296 = vld [vmem:[%s1294 + $0x4] sm:$0xf]
          %v1297 = vld [vmem:[%s1294 + $0x8] sm:$0xf]
          %v1298 = vld [vmem:[%s1294 + $0xc] sm:$0xf]
          %v1299 = vld [vmem:[%s1294 + $0x10] sm:$0xf]
          %v1300 = vld [vmem:[%s1294 + $0x14] sm:$0xf]
          %v1301 = vld [vmem:[%s1294 + $0x18] sm:$0xf]
          %v1302 = vld [vmem:[%s1294 + $0x1c] sm:$0xf]
          %v1311 = vunpack.c.l.b16 %v1295
          %v1312 = vunpack.c.l.b16 %v1296
          %v1313 = vunpack.c.l.b16 %v1297
          %v1314 = vunpack.c.l.b16 %v1298
          %v1315 = vunpack.c.l.b16 %v1299
          %v1316 = vunpack.c.l.b16 %v1300
          %v1317 = vunpack.c.l.b16 %v1301
          %v1318 = vunpack.c.l.b16 %v1302
          %v1319 = vpack.c.b16 %v1312, %v1311
          %v1320 = vpack.c.b16 %v1314, %v1313
          %v1321 = vpack.c.b16 %v1316, %v1315
          %v1322 = vpack.c.b16 %v1318, %v1317
          %1327 = vmatprep.subr.bf16.mxu0 0
          %1328 = vmatpush1.bf16.msra.mxu0 %v1319
          %1329 = vmatprep.subr.bf16.mxu0 0
          %1330 = vmatpush1.bf16.msra.mxu0 %v1320
          %1331 = vmatprep.subr.bf16.mxu0 0
          %1332 = vmatpush1.bf16.msra.mxu0 %v1321
          %1333 = vmatprep.subr.bf16.mxu0 0
          %1334 = vmatpush1.bf16.msra.mxu0 %v1322
          %1335 = vmatprep.subr.bf16.mxu0 0
          %1336 = vmatpush1.bf16.msra.mxu0 0
          %1337 = vmatprep.subr.bf16.mxu0 0
          %1338 = vmatpush1.bf16.msra.mxu0 0
          %1339 = vmatprep.subr.bf16.mxu0 0
          %1340 = vmatpush1.bf16.msra.mxu0 0
          %1341 = vmatprep.subr.bf16.mxu0 0
          %1342 = vmatpush1.bf16.msra.mxu0 0
          %1343 = vmatprep.subr.bf16.mxu0 0
          %1344 = vmatpush1.bf16.msra.mxu0 0
          %1345 = vmatprep.subr.bf16.mxu0 0
          %1346 = vmatpush1.bf16.msra.mxu0 0
          %1347 = vmatprep.subr.bf16.mxu0 0
          %1348 = vmatpush1.bf16.msra.mxu0 0
          %1349 = vmatprep.subr.bf16.mxu0 0
          %1350 = vmatpush1.bf16.msra.mxu0 0
          %1351 = vmatprep.subr.bf16.mxu0 0
          %1352 = vmatpush1.bf16.msra.mxu0 0
          %1353 = vmatprep.subr.bf16.mxu0 0
          %1354 = vmatpush1.bf16.msra.mxu0 0
          %1355 = vmatprep.subr.bf16.mxu0 0
          %1356 = vmatpush1.bf16.msra.mxu0 0
          %1357 = vmatprep.subr.bf16.mxu0 0
          %1358 = vmatpush1.bf16.msra.mxu0 0
          %1359 = vmatprep.mubr.bf16.mxu0 0
          %1360 = vmatmul.mubr.bf16.gmra.mrb[0].mxu0 %v779
          %v1361 = vpop.f32.mrb[0].mxu0
          %v1362 = vadd.f32 %v741, %v1361
          %v1363 = vpop.f32.mrb[0].mxu0
          %v1364 = vpop.f32.mrb[0].mxu0
          %v1365 = vadd.f32 %v746, %v1364
          %v1366 = vpop.f32.mrb[0].mxu0
          %1367 = vdwg.mxu0
          %v1368 = vmax.f32 %v1362, 0.0
          %v1369 = vmax.f32 %v1365, 0.0
          %v1370 = vpack.c.bf16 %v1369, %v1368
          %1371 = vst [vmem:[#allocation2 + $0x38] sm:$0xff] %v1370
          %v1372 = vld [vmem:[%s3] sm:$0xf]
          %v1373 = vld [vmem:[%s3 + $0x4] sm:$0xf]
          %v1374 = vld [vmem:[%s3 + $0x8] sm:$0xf]
          %v1375 = vld [vmem:[%s3 + $0xc] sm:$0xf]
          %v1376 = vld [vmem:[%s3 + $0x10] sm:$0xf]
          %v1377 = vld [vmem:[%s3 + $0x14] sm:$0xf]
          %v1378 = vld [vmem:[%s3 + $0x18] sm:$0xf]
          %v1379 = vld [vmem:[%s3 + $0x1c] sm:$0xf]
          %v1380 = vld [vmem:[%s3 + $0x20] sm:$0xf]
          %v1381 = vld [vmem:[%s3 + $0x24] sm:$0xf]
          %v1382 = vld [vmem:[%s3 + $0x28] sm:$0xf]
          %v1383 = vld [vmem:[%s3 + $0x2c] sm:$0xf]
          %v1384 = vld [vmem:[%s3 + $0x30] sm:$0xf]
          %v1385 = vld [vmem:[%s3 + $0x34] sm:$0xf]
          %v1386 = vld [vmem:[%s3 + $0x38] sm:$0xf]
          %v1387 = vld [vmem:[%s3 + $0x3c] sm:$0xf]
          %v1388 = vld [vmem:[#allocation2] sm:$0xff]
          %v1389 = vld [vmem:[#allocation2 + $0x8] sm:$0xff]
          %v1390 = vld [vmem:[#allocation2 + $0x10] sm:$0xff]
          %v1391 = vld [vmem:[#allocation2 + $0x18] sm:$0xff]
          %v1392 = vld [vmem:[#allocation2 + $0x20] sm:$0xff]
          %v1393 = vld [vmem:[#allocation2 + $0x28] sm:$0xff]
          %v1394 = vld [vmem:[#allocation2 + $0x30] sm:$0xff]
          %v1395 = vld [vmem:[#allocation2 + $0x38] sm:$0xff]
          %v1396 = vld [vmem:[%s4] sm:$0xff]
          %v1397 = vld [vmem:[%s4 + $0x8] sm:$0xff]
          %v1398 = vld [vmem:[%s4 + $0x10] sm:$0xff]
          %v1399 = vld [vmem:[%s4 + $0x18] sm:$0xff]
          %v1400 = vld [vmem:[%s4 + $0x20] sm:$0xff]
          %v1401 = vld [vmem:[%s4 + $0x28] sm:$0xff]
          %v1402 = vld [vmem:[%s4 + $0x30] sm:$0xff]
          %v1403 = vld [vmem:[%s4 + $0x38] sm:$0xff]
          %v1404 = vld [vmem:[%s4 + $0x40] sm:$0xff]
          %v1405 = vld [vmem:[%s4 + $0x48] sm:$0xff]
          %v1406 = vld [vmem:[%s4 + $0x50] sm:$0xff]
          %v1407 = vld [vmem:[%s4 + $0x58] sm:$0xff]
          %v1408 = vld [vmem:[%s4 + $0x60] sm:$0xff]
          %v1409 = vld [vmem:[%s4 + $0x68] sm:$0xff]
          %v1410 = vld [vmem:[%s4 + $0x70] sm:$0xff]
          %v1411 = vld [vmem:[%s4 + $0x78] sm:$0xff]
          %1413 = vset.pattern.permute.xlu0 0
          %1414 = vperm.xlu0 %1413, %v1396
          %v1415 = vpop.permute.xlu0 %1414
          %1418 = vset.pattern.permute.xlu0 0
          %1419 = vperm.xlu0 %1418, %v1397
          %v1420 = vpop.permute.xlu0 %1419
          %1423 = vset.pattern.permute.xlu0 0
          %1424 = vperm.xlu0 %1423, %v1398
          %v1425 = vpop.permute.xlu0 %1424
          %1428 = vset.pattern.permute.xlu0 0
          %1429 = vperm.xlu0 %1428, %v1399
          %v1430 = vpop.permute.xlu0 %1429
          %1433 = vset.pattern.permute.xlu0 0
          %1434 = vperm.xlu0 %1433, %v1400
          %v1435 = vpop.permute.xlu0 %1434
          %1438 = vset.pattern.permute.xlu0 0
          %1439 = vperm.xlu0 %1438, %v1401
          %v1440 = vpop.permute.xlu0 %1439
          %1443 = vset.pattern.permute.xlu0 0
          %1444 = vperm.xlu0 %1443, %v1402
          %v1445 = vpop.permute.xlu0 %1444
          %1448 = vset.pattern.permute.xlu0 0
          %1449 = vperm.xlu0 %1448, %v1403
          %v1450 = vpop.permute.xlu0 %1449
          %1453 = vset.pattern.permute.xlu0 0
          %1454 = vperm.xlu0 %1453, %v1404
          %v1455 = vpop.permute.xlu0 %1454
          %1458 = vset.pattern.permute.xlu0 0
          %1459 = vperm.xlu0 %1458, %v1405
          %v1460 = vpop.permute.xlu0 %1459
          %1463 = vset.pattern.permute.xlu0 0
          %1464 = vperm.xlu0 %1463, %v1406
          %v1465 = vpop.permute.xlu0 %1464
          %1468 = vset.pattern.permute.xlu0 0
          %1469 = vperm.xlu0 %1468, %v1407
          %v1470 = vpop.permute.xlu0 %1469
          %1473 = vset.pattern.permute.xlu0 0
          %1474 = vperm.xlu0 %1473, %v1408
          %v1475 = vpop.permute.xlu0 %1474
          %1478 = vset.pattern.permute.xlu0 0
          %1479 = vperm.xlu0 %1478, %v1409
          %v1480 = vpop.permute.xlu0 %1479
          %1483 = vset.pattern.permute.xlu0 0
          %1484 = vperm.xlu0 %1483, %v1410
          %v1485 = vpop.permute.xlu0 %1484
          %1488 = vset.pattern.permute.xlu0 0
          %1489 = vperm.xlu0 %1488, %v1411
          %v1490 = vpop.permute.xlu0 %1489
          %v1508 = vunpack.c.l.b16 %v1372
          %v1509 = vunpack.c.l.b16 %v1373
          %v1510 = vunpack.c.l.b16 %v1374
          %v1511 = vunpack.c.l.b16 %v1375
          %v1512 = vunpack.c.l.b16 %v1376
          %v1513 = vunpack.c.l.b16 %v1377
          %v1514 = vunpack.c.l.b16 %v1378
          %v1515 = vunpack.c.l.b16 %v1379
          %v1516 = vunpack.c.l.b16 %v1380
          %v1517 = vunpack.c.l.b16 %v1381
          %v1518 = vunpack.c.l.b16 %v1382
          %v1519 = vunpack.c.l.b16 %v1383
          %v1520 = vunpack.c.l.b16 %v1384
          %v1521 = vunpack.c.l.b16 %v1385
          %v1522 = vunpack.c.l.b16 %v1386
          %v1523 = vunpack.c.l.b16 %v1387
          %v1524 = vpack.c.b16 %v1509, %v1508
          %v1525 = vpack.c.b16 %v1511, %v1510
          %v1526 = vpack.c.b16 %v1513, %v1512
          %v1527 = vpack.c.b16 %v1515, %v1514
          %v1528 = vpack.c.b16 %v1517, %v1516
          %v1529 = vpack.c.b16 %v1519, %v1518
          %v1530 = vpack.c.b16 %v1521, %v1520
          %v1531 = vpack.c.b16 %v1523, %v1522
          %1540 = vmatprep.subr.bf16.mxu0 0
          %1541 = vmatpush1.bf16.msra.mxu0 %v1388
          %1542 = vmatprep.subr.bf16.mxu0 0
          %1543 = vmatpush1.bf16.msra.mxu0 %v1389
          %1544 = vmatprep.subr.bf16.mxu0 0
          %1545 = vmatpush1.bf16.msra.mxu0 %v1390
          %1546 = vmatprep.subr.bf16.mxu0 0
          %1547 = vmatpush1.bf16.msra.mxu0 %v1391
          %1548 = vmatprep.subr.bf16.mxu0 0
          %1549 = vmatpush1.bf16.msra.mxu0 %v1392
          %1550 = vmatprep.subr.bf16.mxu0 0
          %1551 = vmatpush1.bf16.msra.mxu0 %v1393
          %1552 = vmatprep.subr.bf16.mxu0 0
          %1553 = vmatpush1.bf16.msra.mxu0 %v1394
          %1554 = vmatprep.subr.bf16.mxu0 0
          %1555 = vmatpush1.bf16.msra.mxu0 %v1395
          %1556 = vmatprep.subr.bf16.mxu0 0
          %1557 = vmatpush1.bf16.msra.mxu0 0
          %1558 = vmatprep.subr.bf16.mxu0 0
          %1559 = vmatpush1.bf16.msra.mxu0 0
          %1560 = vmatprep.subr.bf16.mxu0 0
          %1561 = vmatpush1.bf16.msra.mxu0 0
          %1562 = vmatprep.subr.bf16.mxu0 0
          %1563 = vmatpush1.bf16.msra.mxu0 0
          %1564 = vmatprep.subr.bf16.mxu0 0
          %1565 = vmatpush1.bf16.msra.mxu0 0
          %1566 = vmatprep.subr.bf16.mxu0 0
          %1567 = vmatpush1.bf16.msra.mxu0 0
          %1568 = vmatprep.subr.bf16.mxu0 0
          %1569 = vmatpush1.bf16.msra.mxu0 0
          %1570 = vmatprep.subr.bf16.mxu0 0
          %1571 = vmatpush1.bf16.msra.mxu0 0
          %1572 = vmatprep.mubr.bf16.mxu0 0
          %1573 = vmatmul.mubr.bf16.gmra.mrb[0].mxu0 %v1524
          %v1574 = vpop.f32.mrb[0].mxu0
          %v1575 = vadd.f32 %v1415, %v1574
          %v1576 = vpop.f32.mrb[0].mxu0
          %v1577 = vpop.f32.mrb[0].mxu0
          %v1578 = vadd.f32 %v1420, %v1577
          %v1579 = vpop.f32.mrb[0].mxu0
          %1580 = vmatprep.mubr.bf16.mxu0 0
          %1581 = vmatmul.mubr.bf16.gmra.mrb[0].mxu0 %v1525
          %v1582 = vpop.f32.mrb[0].mxu0
          %v1583 = vadd.f32 %v1425, %v1582
          %v1584 = vpop.f32.mrb[0].mxu0
          %v1585 = vpop.f32.mrb[0].mxu0
          %v1586 = vadd.f32 %v1430, %v1585
          %v1587 = vpop.f32.mrb[0].mxu0
          %1588 = vmatprep.mubr.bf16.mxu0 0
          %1589 = vmatmul.mubr.bf16.gmra.mrb[0].mxu0 %v1526
          %v1590 = vpop.f32.mrb[0].mxu0
          %v1591 = vadd.f32 %v1435, %v1590
          %v1592 = vpop.f32.mrb[0].mxu0
          %v1593 = vpop.f32.mrb[0].mxu0
          %v1594 = vadd.f32 %v1440, %v1593
          %v1595 = vpop.f32.mrb[0].mxu0
          %1596 = vmatprep.mubr.bf16.mxu0 0
          %1597 = vmatmul.mubr.bf16.gmra.mrb[0].mxu0 %v1527
          %v1598 = vpop.f32.mrb[0].mxu0
          %v1599 = vadd.f32 %v1445, %v1598
          %v1600 = vpop.f32.mrb[0].mxu0
          %v1601 = vpop.f32.mrb[0].mxu0
          %v1602 = vadd.f32 %v1450, %v1601
          %v1603 = vpop.f32.mrb[0].mxu0
          %1604 = vmatprep.mubr.bf16.mxu0 0
          %1605 = vmatmul.mubr.bf16.gmra.mrb[0].mxu0 %v1528
          %v1606 = vpop.f32.mrb[0].mxu0
          %v1607 = vadd.f32 %v1455, %v1606
          %v1608 = vpop.f32.mrb[0].mxu0
          %v1609 = vpop.f32.mrb[0].mxu0
          %v1610 = vadd.f32 %v1460, %v1609
          %v1611 = vpop.f32.mrb[0].mxu0
          %1612 = vmatprep.mubr.bf16.mxu0 0
          %1613 = vmatmul.mubr.bf16.gmra.mrb[0].mxu0 %v1529
          %v1614 = vpop.f32.mrb[0].mxu0
          %v1615 = vadd.f32 %v1465, %v1614
          %v1616 = vpop.f32.mrb[0].mxu0
          %v1617 = vpop.f32.mrb[0].mxu0
          %v1618 = vadd.f32 %v1470, %v1617
          %v1619 = vpop.f32.mrb[0].mxu0
          %1620 = vmatprep.mubr.bf16.mxu0 0
          %1621 = vmatmul.mubr.bf16.gmra.mrb[0].mxu0 %v1530
          %v1622 = vpop.f32.mrb[0].mxu0
          %v1623 = vadd.f32 %v1475, %v1622
          %v1624 = vpop.f32.mrb[0].mxu0
          %v1625 = vpop.f32.mrb[0].mxu0
          %v1626 = vadd.f32 %v1480, %v1625
          %v1627 = vpop.f32.mrb[0].mxu0
          %1628 = vmatprep.mubr.bf16.mxu0 0
          %1629 = vmatmul.mubr.bf16.gmra.mrb[0].mxu0 %v1531
          %v1630 = vpop.f32.mrb[0].mxu0
          %v1631 = vadd.f32 %v1485, %v1630
          %v1632 = vpop.f32.mrb[0].mxu0
          %v1633 = vpop.f32.mrb[0].mxu0
          %v1634 = vadd.f32 %v1490, %v1633
          %v1635 = vpop.f32.mrb[0].mxu0
          %1636 = vdwg.mxu0
          %v1637 = vmax.f32 %v1575, 0.0
          %v1638 = vmax.f32 %v1578, 0.0
          %v1639 = vmax.f32 %v1583, 0.0
          %v1640 = vmax.f32 %v1586, 0.0
          %v1641 = vmax.f32 %v1591, 0.0
          %v1642 = vmax.f32 %v1594, 0.0
          %v1643 = vmax.f32 %v1599, 0.0
          %v1644 = vmax.f32 %v1602, 0.0
          %v1645 = vmax.f32 %v1607, 0.0
          %v1646 = vmax.f32 %v1610, 0.0
          %v1647 = vmax.f32 %v1615, 0.0
          %v1648 = vmax.f32 %v1618, 0.0
          %v1649 = vmax.f32 %v1623, 0.0
          %v1650 = vmax.f32 %v1626, 0.0
          %v1651 = vmax.f32 %v1631, 0.0
          %v1652 = vmax.f32 %v1634, 0.0
          %v1653 = vpack.c.bf16 %v1638, %v1637
          %v1654 = vpack.c.bf16 %v1640, %v1639
          %v1655 = vpack.c.bf16 %v1642, %v1641
          %v1656 = vpack.c.bf16 %v1644, %v1643
          %v1657 = vpack.c.bf16 %v1646, %v1645
          %v1658 = vpack.c.bf16 %v1648, %v1647
          %v1659 = vpack.c.bf16 %v1650, %v1649
          %v1660 = vpack.c.bf16 %v1652, %v1651
          %1661 = vst [vmem:[#allocation2] sm:$0xff] %v1653
          %1662 = vst [vmem:[#allocation2 + $0x8] sm:$0xff] %v1654
          %1663 = vst [vmem:[#allocation2 + $0x10] sm:$0xff] %v1655
          %1664 = vst [vmem:[#allocation2 + $0x18] sm:$0xff] %v1656
          %1665 = vst [vmem:[#allocation2 + $0x20] sm:$0xff] %v1657
          %1666 = vst [vmem:[#allocation2 + $0x28] sm:$0xff] %v1658
          %1667 = vst [vmem:[#allocation2 + $0x30] sm:$0xff] %v1659
          %1668 = vst [vmem:[#allocation2 + $0x38] sm:$0xff] %v1660
          %s1669 = smul.u32 %s29, 24
          %s1670 = smul.addr %s1669, 8
          %s1671 = scalar_lea.vmem [#allocation3], %s1670
          %1672 = vst [vmem:[%s1671] sm:$0xff] %v1653
          %v1673 = vadd.f32 %v1637, 0.0
          %v1674 = vadd.f32 %v1638, 0.0
          %s1675 = sadd.s32 3, %s1669
          %s1676 = smul.addr %s1675, 8
          %s1677 = scalar_lea.vmem [#allocation3], %s1676
          %1678 = vst [vmem:[%s1677] sm:$0xff] %v1654
          %v1679 = vadd.f32 %v1673, %v1639
          %v1680 = vadd.f32 %v1674, %v1640
          %s1681 = sadd.s32 6, %s1669
          %s1682 = smul.addr %s1681, 8
          %s1683 = scalar_lea.vmem [#allocation3], %s1682
          %1684 = vst [vmem:[%s1683] sm:$0xff] %v1655
          %v1685 = vadd.f32 %v1679, %v1641
          %v1686 = vadd.f32 %v1680, %v1642
          %s1687 = sadd.s32 9, %s1669
          %s1688 = smul.addr %s1687, 8
          %s1689 = scalar_lea.vmem [#allocation3], %s1688
          %1690 = vst [vmem:[%s1689] sm:$0xff] %v1656
          %v1691 = vadd.f32 %v1685, %v1643
          %v1692 = vadd.f32 %v1686, %v1644
          %s1693 = sadd.s32 12, %s1669
          %s1694 = smul.addr %s1693, 8
          %s1695 = scalar_lea.vmem [#allocation3], %s1694
          %1696 = vst [vmem:[%s1695] sm:$0xff] %v1657
          %v1697 = vadd.f32 %v1691, %v1645
          %v1698 = vadd.f32 %v1692, %v1646
          %s1699 = sadd.s32 15, %s1669
          %s1700 = smul.addr %s1699, 8
          %s1701 = scalar_lea.vmem [#allocation3], %s1700
          %1702 = vst [vmem:[%s1701] sm:$0xff] %v1658
          %v1703 = vadd.f32 %v1697, %v1647
          %v1704 = vadd.f32 %v1698, %v1648
          %s1705 = sadd.s32 18, %s1669
          %s1706 = smul.addr %s1705, 8
          %s1707 = scalar_lea.vmem [#allocation3], %s1706
          %1708 = vst [vmem:[%s1707] sm:$0xff] %v1659
          %v1709 = vadd.f32 %v1703, %v1649
          %v1710 = vadd.f32 %v1704, %v1650
          %s1711 = sadd.s32 21, %s1669
          %s1712 = smul.addr %s1711, 8
          %s1713 = scalar_lea.vmem [#allocation3], %s1712
          %1714 = vst [vmem:[%s1713] sm:$0xff] %v1660
          %v1715 = vadd.f32 %v1709, %v1651
          %v1716 = vadd.f32 %v1710, %v1652
          %s1717 = scalar_lea.vmem %s3, 64
          %v1718 = vld [vmem:[%s1717] sm:$0xf]
          %v1719 = vld [vmem:[%s1717 + $0x4] sm:$0xf]
          %v1720 = vld [vmem:[%s1717 + $0x8] sm:$0xf]
          %v1721 = vld [vmem:[%s1717 + $0xc] sm:$0xf]
          %v1722 = vld [vmem:[%s1717 + $0x10] sm:$0xf]
          %v1723 = vld [vmem:[%s1717 + $0x14] sm:$0xf]
          %v1724 = vld [vmem:[%s1717 + $0x18] sm:$0xf]
          %v1725 = vld [vmem:[%s1717 + $0x1c] sm:$0xf]
          %v1726 = vld [vmem:[%s1717 + $0x20] sm:$0xf]
          %v1727 = vld [vmem:[%s1717 + $0x24] sm:$0xf]
          %v1728 = vld [vmem:[%s1717 + $0x28] sm:$0xf]
          %v1729 = vld [vmem:[%s1717 + $0x2c] sm:$0xf]
          %v1730 = vld [vmem:[%s1717 + $0x30] sm:$0xf]
          %v1731 = vld [vmem:[%s1717 + $0x34] sm:$0xf]
          %v1732 = vld [vmem:[%s1717 + $0x38] sm:$0xf]
          %v1733 = vld [vmem:[%s1717 + $0x3c] sm:$0xf]
          %v1734 = vld [vmem:[#allocation2] sm:$0xff]
          %v1735 = vld [vmem:[#allocation2 + $0x8] sm:$0xff]
          %v1736 = vld [vmem:[#allocation2 + $0x10] sm:$0xff]
          %v1737 = vld [vmem:[#allocation2 + $0x18] sm:$0xff]
          %v1738 = vld [vmem:[#allocation2 + $0x20] sm:$0xff]
          %v1739 = vld [vmem:[#allocation2 + $0x28] sm:$0xff]
          %v1740 = vld [vmem:[#allocation2 + $0x30] sm:$0xff]
          %v1741 = vld [vmem:[#allocation2 + $0x38] sm:$0xff]
          %s1742 = scalar_lea.vmem %s4, 128
          %v1743 = vld [vmem:[%s1742] sm:$0xff]
          %v1744 = vld [vmem:[%s1742 + $0x8] sm:$0xff]
          %v1745 = vld [vmem:[%s1742 + $0x10] sm:$0xff]
          %v1746 = vld [vmem:[%s1742 + $0x18] sm:$0xff]
          %v1747 = vld [vmem:[%s1742 + $0x20] sm:$0xff]
          %v1748 = vld [vmem:[%s1742 + $0x28] sm:$0xff]
          %v1749 = vld [vmem:[%s1742 + $0x30] sm:$0xff]
          %v1750 = vld [vmem:[%s1742 + $0x38] sm:$0xff]
          %v1751 = vld [vmem:[%s1742 + $0x40] sm:$0xff]
          %v1752 = vld [vmem:[%s1742 + $0x48] sm:$0xff]
          %v1753 = vld [vmem:[%s1742 + $0x50] sm:$0xff]
          %v1754 = vld [vmem:[%s1742 + $0x58] sm:$0xff]
          %v1755 = vld [vmem:[%s1742 + $0x60] sm:$0xff]
          %v1756 = vld [vmem:[%s1742 + $0x68] sm:$0xff]
          %v1757 = vld [vmem:[%s1742 + $0x70] sm:$0xff]
          %v1758 = vld [vmem:[%s1742 + $0x78] sm:$0xff]
          %1760 = vset.pattern.permute.xlu0 0
          %1761 = vperm.xlu0 %1760, %v1743
          %v1762 = vpop.permute.xlu0 %1761
          %1765 = vset.pattern.permute.xlu0 0
          %1766 = vperm.xlu0 %1765, %v1744
          %v1767 = vpop.permute.xlu0 %1766
          %1770 = vset.pattern.permute.xlu0 0
          %1771 = vperm.xlu0 %1770, %v1745
          %v1772 = vpop.permute.xlu0 %1771
          %1775 = vset.pattern.permute.xlu0 0
          %1776 = vperm.xlu0 %1775, %v1746
          %v1777 = vpop.permute.xlu0 %1776
          %1780 = vset.pattern.permute.xlu0 0
          %1781 = vperm.xlu0 %1780, %v1747
          %v1782 = vpop.permute.xlu0 %1781
          %1785 = vset.pattern.permute.xlu0 0
          %1786 = vperm.xlu0 %1785, %v1748
          %v1787 = vpop.permute.xlu0 %1786
          %1790 = vset.pattern.permute.xlu0 0
          %1791 = vperm.xlu0 %1790, %v1749
          %v1792 = vpop.permute.xlu0 %1791
          %1795 = vset.pattern.permute.xlu0 0
          %1796 = vperm.xlu0 %1795, %v1750
          %v1797 = vpop.permute.xlu0 %1796
          %1800 = vset.pattern.permute.xlu0 0
          %1801 = vperm.xlu0 %1800, %v1751
          %v1802 = vpop.permute.xlu0 %1801
          %1805 = vset.pattern.permute.xlu0 0
          %1806 = vperm.xlu0 %1805, %v1752
          %v1807 = vpop.permute.xlu0 %1806
          %1810 = vset.pattern.permute.xlu0 0
          %1811 = vperm.xlu0 %1810, %v1753
          %v1812 = vpop.permute.xlu0 %1811
          %1815 = vset.pattern.permute.xlu0 0
          %1816 = vperm.xlu0 %1815, %v1754
          %v1817 = vpop.permute.xlu0 %1816
          %1820 = vset.pattern.permute.xlu0 0
          %1821 = vperm.xlu0 %1820, %v1755
          %v1822 = vpop.permute.xlu0 %1821
          %1825 = vset.pattern.permute.xlu0 0
          %1826 = vperm.xlu0 %1825, %v1756
          %v1827 = vpop.permute.xlu0 %1826
          %1830 = vset.pattern.permute.xlu0 0
          %1831 = vperm.xlu0 %1830, %v1757
          %v1832 = vpop.permute.xlu0 %1831
          %1835 = vset.pattern.permute.xlu0 0
          %1836 = vperm.xlu0 %1835, %v1758
          %v1837 = vpop.permute.xlu0 %1836
          %v1855 = vunpack.c.l.b16 %v1718
          %v1856 = vunpack.c.l.b16 %v1719
          %v1857 = vunpack.c.l.b16 %v1720
          %v1858 = vunpack.c.l.b16 %v1721
          %v1859 = vunpack.c.l.b16 %v1722
          %v1860 = vunpack.c.l.b16 %v1723
          %v1861 = vunpack.c.l.b16 %v1724
          %v1862 = vunpack.c.l.b16 %v1725
          %v1863 = vunpack.c.l.b16 %v1726
          %v1864 = vunpack.c.l.b16 %v1727
          %v1865 = vunpack.c.l.b16 %v1728
          %v1866 = vunpack.c.l.b16 %v1729
          %v1867 = vunpack.c.l.b16 %v1730
          %v1868 = vunpack.c.l.b16 %v1731
          %v1869 = vunpack.c.l.b16 %v1732
          %v1870 = vunpack.c.l.b16 %v1733
          %v1871 = vpack.c.b16 %v1856, %v1855
          %v1872 = vpack.c.b16 %v1858, %v1857
          %v1873 = vpack.c.b16 %v1860, %v1859
          %v1874 = vpack.c.b16 %v1862, %v1861
          %v1875 = vpack.c.b16 %v1864, %v1863
          %v1876 = vpack.c.b16 %v1866, %v1865
          %v1877 = vpack.c.b16 %v1868, %v1867
          %v1878 = vpack.c.b16 %v1870, %v1869
          %1887 = vmatprep.subr.bf16.mxu0 0
          %1888 = vmatpush1.bf16.msra.mxu0 %v1734
          %1889 = vmatprep.subr.bf16.mxu0 0
          %1890 = vmatpush1.bf16.msra.mxu0 %v1735
          %1891 = vmatprep.subr.bf16.mxu0 0
          %1892 = vmatpush1.bf16.msra.mxu0 %v1736
          %1893 = vmatprep.subr.bf16.mxu0 0
          %1894 = vmatpush1.bf16.msra.mxu0 %v1737
          %1895 = vmatprep.subr.bf16.mxu0 0
          %1896 = vmatpush1.bf16.msra.mxu0 %v1738
          %1897 = vmatprep.subr.bf16.mxu0 0
          %1898 = vmatpush1.bf16.msra.mxu0 %v1739
          %1899 = vmatprep.subr.bf16.mxu0 0
          %1900 = vmatpush1.bf16.msra.mxu0 %v1740
          %1901 = vmatprep.subr.bf16.mxu0 0
          %1902 = vmatpush1.bf16.msra.mxu0 %v1741
          %1903 = vmatprep.subr.bf16.mxu0 0
          %1904 = vmatpush1.bf16.msra.mxu0 0
          %1905 = vmatprep.subr.bf16.mxu0 0
          %1906 = vmatpush1.bf16.msra.mxu0 0
          %1907 = vmatprep.subr.bf16.mxu0 0
          %1908 = vmatpush1.bf16.msra.mxu0 0
          %1909 = vmatprep.subr.bf16.mxu0 0
          %1910 = vmatpush1.bf16.msra.mxu0 0
          %1911 = vmatprep.subr.bf16.mxu0 0
          %1912 = vmatpush1.bf16.msra.mxu0 0
          %1913 = vmatprep.subr.bf16.mxu0 0
          %1914 = vmatpush1.bf16.msra.mxu0 0
          %1915 = vmatprep.subr.bf16.mxu0 0
          %1916 = vmatpush1.bf16.msra.mxu0 0
          %1917 = vmatprep.subr.bf16.mxu0 0
          %1918 = vmatpush1.bf16.msra.mxu0 0
          %1919 = vmatprep.mubr.bf16.mxu0 0
          %1920 = vmatmul.mubr.bf16.gmra.mrb[0].mxu0 %v1871
          %v1921 = vpop.f32.mrb[0].mxu0
          %v1922 = vadd.f32 %v1762, %v1921
          %v1923 = vpop.f32.mrb[0].mxu0
          %v1924 = vpop.f32.mrb[0].mxu0
          %v1925 = vadd.f32 %v1767, %v1924
          %v1926 = vpop.f32.mrb[0].mxu0
          %1927 = vmatprep.mubr.bf16.mxu0 0
          %1928 = vmatmul.mubr.bf16.gmra.mrb[0].mxu0 %v1872
          %v1929 = vpop.f32.mrb[0].mxu0
          %v1930 = vadd.f32 %v1772, %v1929
          %v1931 = vpop.f32.mrb[0].mxu0
          %v1932 = vpop.f32.mrb[0].mxu0
          %v1933 = vadd.f32 %v1777, %v1932
          %v1934 = vpop.f32.mrb[0].mxu0
          %1935 = vmatprep.mubr.bf16.mxu0 0
          %1936 = vmatmul.mubr.bf16.gmra.mrb[0].mxu0 %v1873
          %v1937 = vpop.f32.mrb[0].mxu0
          %v1938 = vadd.f32 %v1782, %v1937
          %v1939 = vpop.f32.mrb[0].mxu0
          %v1940 = vpop.f32.mrb[0].mxu0
          %v1941 = vadd.f32 %v1787, %v1940
          %v1942 = vpop.f32.mrb[0].mxu0
          %1943 = vmatprep.mubr.bf16.mxu0 0
          %1944 = vmatmul.mubr.bf16.gmra.mrb[0].mxu0 %v1874
          %v1945 = vpop.f32.mrb[0].mxu0
          %v1946 = vadd.f32 %v1792, %v1945
          %v1947 = vpop.f32.mrb[0].mxu0
          %v1948 = vpop.f32.mrb[0].mxu0
          %v1949 = vadd.f32 %v1797, %v1948
          %v1950 = vpop.f32.mrb[0].mxu0
          %1951 = vmatprep.mubr.bf16.mxu0 0
          %1952 = vmatmul.mubr.bf16.gmra.mrb[0].mxu0 %v1875
          %v1953 = vpop.f32.mrb[0].mxu0
          %v1954 = vadd.f32 %v1802, %v1953
          %v1955 = vpop.f32.mrb[0].mxu0
          %v1956 = vpop.f32.mrb[0].mxu0
          %v1957 = vadd.f32 %v1807, %v1956
          %v1958 = vpop.f32.mrb[0].mxu0
          %1959 = vmatprep.mubr.bf16.mxu0 0
          %1960 = vmatmul.mubr.bf16.gmra.mrb[0].mxu0 %v1876
          %v1961 = vpop.f32.mrb[0].mxu0
          %v1962 = vadd.f32 %v1812, %v1961
          %v1963 = vpop.f32.mrb[0].mxu0
          %v1964 = vpop.f32.mrb[0].mxu0
          %v1965 = vadd.f32 %v1817, %v1964
          %v1966 = vpop.f32.mrb[0].mxu0
          %1967 = vmatprep.mubr.bf16.mxu0 0
          %1968 = vmatmul.mubr.bf16.gmra.mrb[0].mxu0 %v1877
          %v1969 = vpop.f32.mrb[0].mxu0
          %v1970 = vadd.f32 %v1822, %v1969
          %v1971 = vpop.f32.mrb[0].mxu0
          %v1972 = vpop.f32.mrb[0].mxu0
          %v1973 = vadd.f32 %v1827, %v1972
          %v1974 = vpop.f32.mrb[0].mxu0
          %1975 = vmatprep.mubr.bf16.mxu0 0
          %1976 = vmatmul.mubr.bf16.gmra.mrb[0].mxu0 %v1878
          %v1977 = vpop.f32.mrb[0].mxu0
          %v1978 = vadd.f32 %v1832, %v1977
          %v1979 = vpop.f32.mrb[0].mxu0
          %v1980 = vpop.f32.mrb[0].mxu0
          %v1981 = vadd.f32 %v1837, %v1980
          %v1982 = vpop.f32.mrb[0].mxu0
          %1983 = vdwg.mxu0
          %v1984 = vmax.f32 %v1922, 0.0
          %v1985 = vmax.f32 %v1925, 0.0
          %v1986 = vmax.f32 %v1930, 0.0
          %v1987 = vmax.f32 %v1933, 0.0
          %v1988 = vmax.f32 %v1938, 0.0
          %v1989 = vmax.f32 %v1941, 0.0
          %v1990 = vmax.f32 %v1946, 0.0
          %v1991 = vmax.f32 %v1949, 0.0
          %v1992 = vmax.f32 %v1954, 0.0
          %v1993 = vmax.f32 %v1957, 0.0
          %v1994 = vmax.f32 %v1962, 0.0
          %v1995 = vmax.f32 %v1965, 0.0
          %v1996 = vmax.f32 %v1970, 0.0
          %v1997 = vmax.f32 %v1973, 0.0
          %v1998 = vmax.f32 %v1978, 0.0
          %v1999 = vmax.f32 %v1981, 0.0
          %v2000 = vpack.c.bf16 %v1985, %v1984
          %v2001 = vpack.c.bf16 %v1987, %v1986
          %v2002 = vpack.c.bf16 %v1989, %v1988
          %v2003 = vpack.c.bf16 %v1991, %v1990
          %v2004 = vpack.c.bf16 %v1993, %v1992
          %v2005 = vpack.c.bf16 %v1995, %v1994
          %v2006 = vpack.c.bf16 %v1997, %v1996
          %v2007 = vpack.c.bf16 %v1999, %v1998
          %2008 = vst [vmem:[#allocation2] sm:$0xff] %v2000
          %2009 = vst [vmem:[#allocation2 + $0x8] sm:$0xff] %v2001
          %2010 = vst [vmem:[#allocation2 + $0x10] sm:$0xff] %v2002
          %2011 = vst [vmem:[#allocation2 + $0x18] sm:$0xff] %v2003
          %2012 = vst [vmem:[#allocation2 + $0x20] sm:$0xff] %v2004
          %2013 = vst [vmem:[#allocation2 + $0x28] sm:$0xff] %v2005
          %2014 = vst [vmem:[#allocation2 + $0x30] sm:$0xff] %v2006
          %2015 = vst [vmem:[#allocation2 + $0x38] sm:$0xff] %v2007
          %2016 = vst [vmem:[%s1671 + $0x8] sm:$0xff] %v2000
          %v2017 = vadd.f32 %v1715, %v1984
          %v2018 = vadd.f32 %v1716, %v1985
          %2019 = vst [vmem:[%s1677 + $0x8] sm:$0xff] %v2001
          %v2020 = vadd.f32 %v2017, %v1986
          %v2021 = vadd.f32 %v2018, %v1987
          %2022 = vst [vmem:[%s1683 + $0x8] sm:$0xff] %v2002
          %v2023 = vadd.f32 %v2020, %v1988
          %v2024 = vadd.f32 %v2021, %v1989
          %2025 = vst [vmem:[%s1689 + $0x8] sm:$0xff] %v2003
          %v2026 = vadd.f32 %v2023, %v1990
          %v2027 = vadd.f32 %v2024, %v1991
          %2028 = vst [vmem:[%s1695 + $0x8] sm:$0xff] %v2004
          %v2029 = vadd.f32 %v2026, %v1992
          %v2030 = vadd.f32 %v2027, %v1993
          %2031 = vst [vmem:[%s1701 + $0x8] sm:$0xff] %v2005
          %v2032 = vadd.f32 %v2029, %v1994
          %v2033 = vadd.f32 %v2030, %v1995
          %2034 = vst [vmem:[%s1707 + $0x8] sm:$0xff] %v2006
          %v2035 = vadd.f32 %v2032, %v1996
          %v2036 = vadd.f32 %v2033, %v1997
          %2037 = vst [vmem:[%s1713 + $0x8] sm:$0xff] %v2007
          %v2038 = vadd.f32 %v2035, %v1998
          %v2039 = vadd.f32 %v2036, %v1999
          %s2040 = scalar_lea.vmem %s3, 128
          %v2041 = vld [vmem:[%s2040] sm:$0xf]
          %v2042 = vld [vmem:[%s2040 + $0x4] sm:$0xf]
          %v2043 = vld [vmem:[%s2040 + $0x8] sm:$0xf]
          %v2044 = vld [vmem:[%s2040 + $0xc] sm:$0xf]
          %v2045 = vld [vmem:[%s2040 + $0x10] sm:$0xf]
          %v2046 = vld [vmem:[%s2040 + $0x14] sm:$0xf]
          %v2047 = vld [vmem:[%s2040 + $0x18] sm:$0xf]
          %v2048 = vld [vmem:[%s2040 + $0x1c] sm:$0xf]
          %v2049 = vld [vmem:[%s2040 + $0x20] sm:$0xf]
          %v2050 = vld [vmem:[%s2040 + $0x24] sm:$0xf]
          %v2051 = vld [vmem:[%s2040 + $0x28] sm:$0xf]
          %v2052 = vld [vmem:[%s2040 + $0x2c] sm:$0xf]
          %v2053 = vld [vmem:[%s2040 + $0x30] sm:$0xf]
          %v2054 = vld [vmem:[%s2040 + $0x34] sm:$0xf]
          %v2055 = vld [vmem:[%s2040 + $0x38] sm:$0xf]
          %v2056 = vld [vmem:[%s2040 + $0x3c] sm:$0xf]
          %v2057 = vld [vmem:[#allocation2] sm:$0xff]
          %v2058 = vld [vmem:[#allocation2 + $0x8] sm:$0xff]
          %v2059 = vld [vmem:[#allocation2 + $0x10] sm:$0xff]
          %v2060 = vld [vmem:[#allocation2 + $0x18] sm:$0xff]
          %v2061 = vld [vmem:[#allocation2 + $0x20] sm:$0xff]
          %v2062 = vld [vmem:[#allocation2 + $0x28] sm:$0xff]
          %v2063 = vld [vmem:[#allocation2 + $0x30] sm:$0xff]
          %v2064 = vld [vmem:[#allocation2 + $0x38] sm:$0xff]
          %s2065 = scalar_lea.vmem %s4, 256
          %v2066 = vld [vmem:[%s2065] sm:$0xff]
          %v2067 = vld [vmem:[%s2065 + $0x8] sm:$0xff]
          %v2068 = vld [vmem:[%s2065 + $0x10] sm:$0xff]
          %v2069 = vld [vmem:[%s2065 + $0x18] sm:$0xff]
          %v2070 = vld [vmem:[%s2065 + $0x20] sm:$0xff]
          %v2071 = vld [vmem:[%s2065 + $0x28] sm:$0xff]
          %v2072 = vld [vmem:[%s2065 + $0x30] sm:$0xff]
          %v2073 = vld [vmem:[%s2065 + $0x38] sm:$0xff]
          %v2074 = vld [vmem:[%s2065 + $0x40] sm:$0xff]
          %v2075 = vld [vmem:[%s2065 + $0x48] sm:$0xff]
          %v2076 = vld [vmem:[%s2065 + $0x50] sm:$0xff]
          %v2077 = vld [vmem:[%s2065 + $0x58] sm:$0xff]
          %v2078 = vld [vmem:[%s2065 + $0x60] sm:$0xff]
          %v2079 = vld [vmem:[%s2065 + $0x68] sm:$0xff]
          %v2080 = vld [vmem:[%s2065 + $0x70] sm:$0xff]
          %v2081 = vld [vmem:[%s2065 + $0x78] sm:$0xff]
          %2083 = vset.pattern.permute.xlu0 0
          %2084 = vperm.xlu0 %2083, %v2066
          %v2085 = vpop.permute.xlu0 %2084
          %2088 = vset.pattern.permute.xlu0 0
          %2089 = vperm.xlu0 %2088, %v2067
          %v2090 = vpop.permute.xlu0 %2089
          %2093 = vset.pattern.permute.xlu0 0
          %2094 = vperm.xlu0 %2093, %v2068
          %v2095 = vpop.permute.xlu0 %2094
          %2098 = vset.pattern.permute.xlu0 0
          %2099 = vperm.xlu0 %2098, %v2069
          %v2100 = vpop.permute.xlu0 %2099
          %2103 = vset.pattern.permute.xlu0 0
          %2104 = vperm.xlu0 %2103, %v2070
          %v2105 = vpop.permute.xlu0 %2104
          %2108 = vset.pattern.permute.xlu0 0
          %2109 = vperm.xlu0 %2108, %v2071
          %v2110 = vpop.permute.xlu0 %2109
          %2113 = vset.pattern.permute.xlu0 0
          %2114 = vperm.xlu0 %2113, %v2072
          %v2115 = vpop.permute.xlu0 %2114
          %2118 = vset.pattern.permute.xlu0 0
          %2119 = vperm.xlu0 %2118, %v2073
          %v2120 = vpop.permute.xlu0 %2119
          %2123 = vset.pattern.permute.xlu0 0
          %2124 = vperm.xlu0 %2123, %v2074
          %v2125 = vpop.permute.xlu0 %2124
          %2128 = vset.pattern.permute.xlu0 0
          %2129 = vperm.xlu0 %2128, %v2075
          %v2130 = vpop.permute.xlu0 %2129
          %2133 = vset.pattern.permute.xlu0 0
          %2134 = vperm.xlu0 %2133, %v2076
          %v2135 = vpop.permute.xlu0 %2134
          %2138 = vset.pattern.permute.xlu0 0
          %2139 = vperm.xlu0 %2138, %v2077
          %v2140 = vpop.permute.xlu0 %2139
          %2143 = vset.pattern.permute.xlu0 0
          %2144 = vperm.xlu0 %2143, %v2078
          %v2145 = vpop.permute.xlu0 %2144
          %2148 = vset.pattern.permute.xlu0 0
          %2149 = vperm.xlu0 %2148, %v2079
          %v2150 = vpop.permute.xlu0 %2149
          %2153 = vset.pattern.permute.xlu0 0
          %2154 = vperm.xlu0 %2153, %v2080
          %v2155 = vpop.permute.xlu0 %2154
          %2158 = vset.pattern.permute.xlu0 0
          %2159 = vperm.xlu0 %2158, %v2081
          %v2160 = vpop.permute.xlu0 %2159
          %v2178 = vunpack.c.l.b16 %v2041
          %v2179 = vunpack.c.l.b16 %v2042
          %v2180 = vunpack.c.l.b16 %v2043
          %v2181 = vunpack.c.l.b16 %v2044
          %v2182 = vunpack.c.l.b16 %v2045
          %v2183 = vunpack.c.l.b16 %v2046
          %v2184 = vunpack.c.l.b16 %v2047
          %v2185 = vunpack.c.l.b16 %v2048
          %v2186 = vunpack.c.l.b16 %v2049
          %v2187 = vunpack.c.l.b16 %v2050
          %v2188 = vunpack.c.l.b16 %v2051
          %v2189 = vunpack.c.l.b16 %v2052
          %v2190 = vunpack.c.l.b16 %v2053
          %v2191 = vunpack.c.l.b16 %v2054
          %v2192 = vunpack.c.l.b16 %v2055
          %v2193 = vunpack.c.l.b16 %v2056
          %v2194 = vpack.c.b16 %v2179, %v2178
          %v2195 = vpack.c.b16 %v2181, %v2180
          %v2196 = vpack.c.b16 %v2183, %v2182
          %v2197 = vpack.c.b16 %v2185, %v2184
          %v2198 = vpack.c.b16 %v2187, %v2186
          %v2199 = vpack.c.b16 %v2189, %v2188
          %v2200 = vpack.c.b16 %v2191, %v2190
          %v2201 = vpack.c.b16 %v2193, %v2192
          %2210 = vmatprep.subr.bf16.mxu0 0
          %2211 = vmatpush1.bf16.msra.mxu0 %v2057
          %2212 = vmatprep.subr.bf16.mxu0 0
          %2213 = vmatpush1.bf16.msra.mxu0 %v2058
          %2214 = vmatprep.subr.bf16.mxu0 0
          %2215 = vmatpush1.bf16.msra.mxu0 %v2059
          %2216 = vmatprep.subr.bf16.mxu0 0
          %2217 = vmatpush1.bf16.msra.mxu0 %v2060
          %2218 = vmatprep.subr.bf16.mxu0 0
          %2219 = vmatpush1.bf16.msra.mxu0 %v2061
          %2220 = vmatprep.subr.bf16.mxu0 0
          %2221 = vmatpush1.bf16.msra.mxu0 %v2062
          %2222 = vmatprep.subr.bf16.mxu0 0
          %2223 = vmatpush1.bf16.msra.mxu0 %v2063
          %2224 = vmatprep.subr.bf16.mxu0 0
          %2225 = vmatpush1.bf16.msra.mxu0 %v2064
          %2226 = vmatprep.subr.bf16.mxu0 0
          %2227 = vmatpush1.bf16.msra.mxu0 0
          %2228 = vmatprep.subr.bf16.mxu0 0
          %2229 = vmatpush1.bf16.msra.mxu0 0
          %2230 = vmatprep.subr.bf16.mxu0 0
          %2231 = vmatpush1.bf16.msra.mxu0 0
          %2232 = vmatprep.subr.bf16.mxu0 0
          %2233 = vmatpush1.bf16.msra.mxu0 0
          %2234 = vmatprep.subr.bf16.mxu0 0
          %2235 = vmatpush1.bf16.msra.mxu0 0
          %2236 = vmatprep.subr.bf16.mxu0 0
          %2237 = vmatpush1.bf16.msra.mxu0 0
          %2238 = vmatprep.subr.bf16.mxu0 0
          %2239 = vmatpush1.bf16.msra.mxu0 0
          %2240 = vmatprep.subr.bf16.mxu0 0
          %2241 = vmatpush1.bf16.msra.mxu0 0
          %2242 = vmatprep.mubr.bf16.mxu0 0
          %2243 = vmatmul.mubr.bf16.gmra.mrb[0].mxu0 %v2194
          %v2244 = vpop.f32.mrb[0].mxu0
          %v2245 = vadd.f32 %v2085, %v2244
          %v2246 = vpop.f32.mrb[0].mxu0
          %v2247 = vpop.f32.mrb[0].mxu0
          %v2248 = vadd.f32 %v2090, %v2247
          %v2249 = vpop.f32.mrb[0].mxu0
          %2250 = vmatprep.mubr.bf16.mxu0 0
          %2251 = vmatmul.mubr.bf16.gmra.mrb[0].mxu0 %v2195
          %v2252 = vpop.f32.mrb[0].mxu0
          %v2253 = vadd.f32 %v2095, %v2252
          %v2254 = vpop.f32.mrb[0].mxu0
          %v2255 = vpop.f32.mrb[0].mxu0
          %v2256 = vadd.f32 %v2100, %v2255
          %v2257 = vpop.f32.mrb[0].mxu0
          %2258 = vmatprep.mubr.bf16.mxu0 0
          %2259 = vmatmul.mubr.bf16.gmra.mrb[0].mxu0 %v2196
          %v2260 = vpop.f32.mrb[0].mxu0
          %v2261 = vadd.f32 %v2105, %v2260
          %v2262 = vpop.f32.mrb[0].mxu0
          %v2263 = vpop.f32.mrb[0].mxu0
          %v2264 = vadd.f32 %v2110, %v2263
          %v2265 = vpop.f32.mrb[0].mxu0
          %2266 = vmatprep.mubr.bf16.mxu0 0
          %2267 = vmatmul.mubr.bf16.gmra.mrb[0].mxu0 %v2197
          %v2268 = vpop.f32.mrb[0].mxu0
          %v2269 = vadd.f32 %v2115, %v2268
          %v2270 = vpop.f32.mrb[0].mxu0
          %v2271 = vpop.f32.mrb[0].mxu0
          %v2272 = vadd.f32 %v2120, %v2271
          %v2273 = vpop.f32.mrb[0].mxu0
          %2274 = vmatprep.mubr.bf16.mxu0 0
          %2275 = vmatmul.mubr.bf16.gmra.mrb[0].mxu0 %v2198
          %v2276 = vpop.f32.mrb[0].mxu0
          %v2277 = vadd.f32 %v2125, %v2276
          %v2278 = vpop.f32.mrb[0].mxu0
          %v2279 = vpop.f32.mrb[0].mxu0
          %v2280 = vadd.f32 %v2130, %v2279
          %v2281 = vpop.f32.mrb[0].mxu0
          %2282 = vmatprep.mubr.bf16.mxu0 0
          %2283 = vmatmul.mubr.bf16.gmra.mrb[0].mxu0 %v2199
          %v2284 = vpop.f32.mrb[0].mxu0
          %v2285 = vadd.f32 %v2135, %v2284
          %v2286 = vpop.f32.mrb[0].mxu0
          %v2287 = vpop.f32.mrb[0].mxu0
          %v2288 = vadd.f32 %v2140, %v2287
          %v2289 = vpop.f32.mrb[0].mxu0
          %2290 = vmatprep.mubr.bf16.mxu0 0
          %2291 = vmatmul.mubr.bf16.gmra.mrb[0].mxu0 %v2200
          %v2292 = vpop.f32.mrb[0].mxu0
          %v2293 = vadd.f32 %v2145, %v2292
          %v2294 = vpop.f32.mrb[0].mxu0
          %v2295 = vpop.f32.mrb[0].mxu0
          %v2296 = vadd.f32 %v2150, %v2295
          %v2297 = vpop.f32.mrb[0].mxu0
          %2298 = vmatprep.mubr.bf16.mxu0 0
          %2299 = vmatmul.mubr.bf16.gmra.mrb[0].mxu0 %v2201
          %v2300 = vpop.f32.mrb[0].mxu0
          %v2301 = vadd.f32 %v2155, %v2300
          %v2302 = vpop.f32.mrb[0].mxu0
          %v2303 = vpop.f32.mrb[0].mxu0
          %v2304 = vadd.f32 %v2160, %v2303
          %v2305 = vpop.f32.mrb[0].mxu0
          %2306 = vdwg.mxu0
          %v2307 = vmax.f32 %v2245, 0.0
          %v2308 = vmax.f32 %v2248, 0.0
          %v2309 = vmax.f32 %v2253, 0.0
          %v2310 = vmax.f32 %v2256, 0.0
          %v2311 = vmax.f32 %v2261, 0.0
          %v2312 = vmax.f32 %v2264, 0.0
          %v2313 = vmax.f32 %v2269, 0.0
          %v2314 = vmax.f32 %v2272, 0.0
          %v2315 = vmax.f32 %v2277, 0.0
          %v2316 = vmax.f32 %v2280, 0.0
          %v2317 = vmax.f32 %v2285, 0.0
          %v2318 = vmax.f32 %v2288, 0.0
          %v2319 = vmax.f32 %v2293, 0.0
          %v2320 = vmax.f32 %v2296, 0.0
          %v2321 = vmax.f32 %v2301, 0.0
          %v2322 = vmax.f32 %v2304, 0.0
          %v2323 = vpack.c.bf16 %v2308, %v2307
          %v2324 = vpack.c.bf16 %v2310, %v2309
          %v2325 = vpack.c.bf16 %v2312, %v2311
          %v2326 = vpack.c.bf16 %v2314, %v2313
          %v2327 = vpack.c.bf16 %v2316, %v2315
          %v2328 = vpack.c.bf16 %v2318, %v2317
          %v2329 = vpack.c.bf16 %v2320, %v2319
          %v2330 = vpack.c.bf16 %v2322, %v2321
          %2331 = vst [vmem:[#allocation2] sm:$0xff] %v2323
          %2332 = vst [vmem:[#allocation2 + $0x8] sm:$0xff] %v2324
          %2333 = vst [vmem:[#allocation2 + $0x10] sm:$0xff] %v2325
          %2334 = vst [vmem:[#allocation2 + $0x18] sm:$0xff] %v2326
          %2335 = vst [vmem:[#allocation2 + $0x20] sm:$0xff] %v2327
          %2336 = vst [vmem:[#allocation2 + $0x28] sm:$0xff] %v2328
          %2337 = vst [vmem:[#allocation2 + $0x30] sm:$0xff] %v2329
          %2338 = vst [vmem:[#allocation2 + $0x38] sm:$0xff] %v2330
          %2339 = vst [vmem:[%s1671 + $0x10] sm:$0xff] %v2323
          %v2340 = vadd.f32 %v2038, %v2307
          %v2341 = vadd.f32 %v2039, %v2308
          %2342 = vst [vmem:[%s1677 + $0x10] sm:$0xff] %v2324
          %v2343 = vadd.f32 %v2340, %v2309
          %v2344 = vadd.f32 %v2341, %v2310
          %2345 = vst [vmem:[%s1683 + $0x10] sm:$0xff] %v2325
          %v2346 = vadd.f32 %v2343, %v2311
          %v2347 = vadd.f32 %v2344, %v2312
          %2348 = vst [vmem:[%s1689 + $0x10] sm:$0xff] %v2326
          %v2349 = vadd.f32 %v2346, %v2313
          %v2350 = vadd.f32 %v2347, %v2314
          %2351 = vst [vmem:[%s1695 + $0x10] sm:$0xff] %v2327
          %v2352 = vadd.f32 %v2349, %v2315
          %v2353 = vadd.f32 %v2350, %v2316
          %2354 = vst [vmem:[%s1701 + $0x10] sm:$0xff] %v2328
          %v2355 = vadd.f32 %v2352, %v2317
          %v2356 = vadd.f32 %v2353, %v2318
          %2357 = vst [vmem:[%s1707 + $0x10] sm:$0xff] %v2329
          %v2358 = vadd.f32 %v2355, %v2319
          %v2359 = vadd.f32 %v2356, %v2320
          %2360 = vst [vmem:[%s1713 + $0x10] sm:$0xff] %v2330
          %v2361 = vadd.f32 %v2358, %v2321
          %v2362 = vadd.f32 %v2359, %v2322
          %v2363 = vld [vmem:[#allocation4] sm:$0xff]
          %v2364 = vld [vmem:[#allocation4 + $0x8] sm:$0xff]
          %2365 = vadd.xlane.f32.xlu0 %v2361
          %v2366 = vpop.xlane.xlu0 %2365
          %2367 = vadd.xlane.f32.xlu0 %v2362
          %v2368 = vpop.xlane.xlu0 %2367
          %v2369 = vadd.f32 %v2363, %v2366
          %v2370 = vadd.f32 %v2364, %v2368
          %vm2371 = vcmask 7168
          %2372 = vst.msk [vmem:[#allocation4] sm:$0xff] %vm2371, %v2369
          %2373 = vst.msk [vmem:[#allocation4 + $0x8] sm:$0xff] %vm2371, %v2370
        $region109: #{cptm_bottleneck_forward.1} parent=100 // pred_fallthru
          _
        %p2374 = scmp.eq.s32.totalorder %s28, 1
        // Predicated region
        $region114: #{cptm_bottleneck_forward.1} parent=100 // pred_check
          %p2375 = pneg %p2374
        $region115: #{cptm_bottleneck_forward.1} parent=100 // pred_check_branch
          %2377 = sbr.rel (%p2375) target = $region117
        $region116: #{cptm_bottleneck_forward.1} parent=100 // pred_region
          %p2378 = scmp.eq.s32.totalorder %s29, 0
          // Predicated region
          $region118: #{cptm_bottleneck_forward.1} parent=116 // pred_check
            %p2379 = pneg %p2378
          $region119: #{cptm_bottleneck_forward.1} parent=116 // pred_check_branch
            %2381 = sbr.rel (%p2379) target = $region121
          $region120: #{cptm_bottleneck_forward.1} parent=116 // pred_region
            %v2382 = vld [vmem:[#allocation4] sm:$0xff]
            %v2383 = vld [vmem:[#allocation4 + $0x8] sm:$0xff]
            %v2384 = vmul.f32 %v2382, 0.00016276042
            %v2385 = vmul.f32 %v2383, 0.00016276042
            %v2386 = vlaneseq
            %v2387 = vshrl.u32 %v2386, 7
            %v2388 = vadd.s32 %v2387, 8
            %v2389 = vlaneseq
            %v2390 = vand.u32 %v2389, 127
            %vm2391 = vcmp.eq.s32.totalorder %v2387, %v2390
            %vm2392 = vcmp.eq.s32.totalorder %v2388, %v2390
            %2394 = vset.pattern.permute.xlu0 0
            %2395 = vperm.xlu0 %2394, %v2384
            %v2396 = vpop.permute.xlu0 %2395
            %2399 = vset.pattern.permute.xlu0 0
            %2400 = vperm.xlu0 %2399, %v2385
            %v2401 = vpop.permute.xlu0 %2400
            %v2403 = vsel %vm2391, %v2396, 0.0
            %v2404 = vsel %vm2392, %v2401, 0.0
            %vm2405 = vcmask 130048
            %v2406 = vsel %vm2405, %v2403, 0.0
            %v2407 = vsel %vm2405, %v2404, 0.0
            %v2408 = vadd.f32 %v2406, %v2407
            %v2409 = vrot.slane %v2408, 4
            %v2410 = vadd.f32 %v2408, %v2409
            %v2411 = vrot.slane %v2410, 2
            %v2412 = vadd.f32 %v2410, %v2411
            %v2413 = vrot.slane %v2412, 1
            %v2414 = vadd.f32 %v2412, %v2413
            %v2415 = vld [vmem:[%s5] sm:$0xff]
            %v2416 = vld [vmem:[%s5 + $0x8] sm:$0xff]
            %v2417 = vld [vmem:[%s6] sm:$0x1]
            %v2419 = vsel %vm2405, %v2414, 0
            %2421 = vmatprep.subr.mxu0 0.0
            %2422 = vmatpush1.msra.mxu0 %v2415
            %2423 = vmatprep.subr.mxu0 0.0
            %2424 = vmatpush1.msra.mxu0 %v2416
            %2425 = vmatprep.subr.mxu0 0.0
            %2426 = vmatpush1.msra.mxu0 0.0
            %2427 = vmatprep.subr.mxu0 0.0
            %2428 = vmatpush1.msra.mxu0 0.0
            %2429 = vmatprep.subr.mxu0 0.0
            %2430 = vmatpush1.msra.mxu0 0.0
            %2431 = vmatprep.subr.mxu0 0.0
            %2432 = vmatpush1.msra.mxu0 0.0
            %2433 = vmatprep.subr.mxu0 0.0
            %2434 = vmatpush1.msra.mxu0 0.0
            %2435 = vmatprep.subr.mxu0 0.0
            %2436 = vmatpush1.msra.mxu0 0.0
            %2437 = vmatprep.subr.mxu0 0.0
            %2438 = vmatpush1.msra.mxu0 0.0
            %2439 = vmatprep.subr.mxu0 0.0
            %2440 = vmatpush1.msra.mxu0 0.0
            %2441 = vmatprep.subr.mxu0 0.0
            %2442 = vmatpush1.msra.mxu0 0.0
            %2443 = vmatprep.subr.mxu0 0.0
            %2444 = vmatpush1.msra.mxu0 0.0
            %2445 = vmatprep.subr.mxu0 0.0
            %2446 = vmatpush1.msra.mxu0 0.0
            %2447 = vmatprep.subr.mxu0 0.0
            %2448 = vmatpush1.msra.mxu0 0.0
            %2449 = vmatprep.subr.mxu0 0.0
            %2450 = vmatpush1.msra.mxu0 0.0
            %2451 = vmatprep.subr.mxu0 0.0
            %2452 = vmatpush1.msra.mxu0 0.0
            %2453 = vmatprep.subr.mxu0 0.0
            %2454 = vmatpush1.msra.mxu0 0.0
            %2455 = vmatprep.subr.mxu0 0.0
            %2456 = vmatpush1.msra.mxu0 0.0
            %2457 = vmatprep.subr.mxu0 0.0
            %2458 = vmatpush1.msra.mxu0 0.0
            %2459 = vmatprep.subr.mxu0 0.0
            %2460 = vmatpush1.msra.mxu0 0.0
            %2461 = vmatprep.subr.mxu0 0.0
            %2462 = vmatpush1.msra.mxu0 0.0
            %2463 = vmatprep.subr.mxu0 0.0
            %2464 = vmatpush1.msra.mxu0 0.0
            %2465 = vmatprep.subr.mxu0 0.0
            %2466 = vmatpush1.msra.mxu0 0.0
            %2467 = vmatprep.subr.mxu0 0.0
            %2468 = vmatpush1.msra.mxu0 0.0
            %2469 = vmatprep.subr.mxu0 0.0
            %2470 = vmatpush1.msra.mxu0 0.0
            %2471 = vmatprep.subr.mxu0 0.0
            %2472 = vmatpush1.msra.mxu0 0.0
            %2473 = vmatprep.subr.mxu0 0.0
            %2474 = vmatpush1.msra.mxu0 0.0
            %2475 = vmatprep.subr.mxu0 0.0
            %2476 = vmatpush1.msra.mxu0 0.0
            %2477 = vmatprep.subr.mxu0 0.0
            %2478 = vmatpush1.msra.mxu0 0.0
            %2479 = vmatprep.subr.mxu0 0.0
            %2480 = vmatpush1.msra.mxu0 0.0
            %2481 = vmatprep.subr.mxu0 0.0
            %2482 = vmatpush1.msra.mxu0 0.0
            %2483 = vmatprep.subr.mxu0 0.0
            %2484 = vmatpush1.msra.mxu0 0.0
            %2485 = vmatprep.mubr.f32.mxu0 0.0
            %2486 = vmatmul.mubr.f32.gmra.mrb[0].mxu0 %v2419
            %v2487 = vpop.f32.mrb[0].mxu0
            %v2488 = vadd.f32 %v2417, %v2487
            %v2489 = vpop.f32.mrb[0].mxu0
            %2490 = vdwg.mxu0
            %v2491 = vmax.f32 %v2488, 0.0
            %v2492 = vld [vmem:[%s8] sm:$0x7]
            %v2493 = vld [vmem:[%s7] sm:$0xff]
            %v2494 = vld [vmem:[%s7 + $0x8] sm:$0xff]
            %v2495 = vld [vmem:[%s7 + $0x10] sm:$0xff]
            %v2496 = vld [vmem:[%s7 + $0x18] sm:$0xff]
            %vm2497 = vcmask 261120
            %v2499 = vsel %vm2497, %v2491, 0
            %2501 = vmatprep.subr.mxu0 0.0
            %2502 = vmatpush1.msra.mxu0 %v2493
            %2503 = vmatprep.subr.mxu0 0.0
            %2504 = vmatpush1.msra.mxu0 %v2494
            %2505 = vmatprep.subr.mxu0 0.0
            %2506 = vmatpush1.msra.mxu0 %v2495
            %2507 = vmatprep.subr.mxu0 0.0
            %2508 = vmatpush1.msra.mxu0 %v2496
            %2509 = vmatprep.subr.mxu0 0.0
            %2510 = vmatpush1.msra.mxu0 0.0
            %2511 = vmatprep.subr.mxu0 0.0
            %2512 = vmatpush1.msra.mxu0 0.0
            %2513 = vmatprep.subr.mxu0 0.0
            %2514 = vmatpush1.msra.mxu0 0.0
            %2515 = vmatprep.subr.mxu0 0.0
            %2516 = vmatpush1.msra.mxu0 0.0
            %2517 = vmatprep.subr.mxu0 0.0
            %2518 = vmatpush1.msra.mxu0 0.0
            %2519 = vmatprep.subr.mxu0 0.0
            %2520 = vmatpush1.msra.mxu0 0.0
            %2521 = vmatprep.subr.mxu0 0.0
            %2522 = vmatpush1.msra.mxu0 0.0
            %2523 = vmatprep.subr.mxu0 0.0
            %2524 = vmatpush1.msra.mxu0 0.0
            %2525 = vmatprep.subr.mxu0 0.0
            %2526 = vmatpush1.msra.mxu0 0.0
            %2527 = vmatprep.subr.mxu0 0.0
            %2528 = vmatpush1.msra.mxu0 0.0
            %2529 = vmatprep.subr.mxu0 0.0
            %2530 = vmatpush1.msra.mxu0 0.0
            %2531 = vmatprep.subr.mxu0 0.0
            %2532 = vmatpush1.msra.mxu0 0.0
            %2533 = vmatprep.subr.mxu0 0.0
            %2534 = vmatpush1.msra.mxu0 0.0
            %2535 = vmatprep.subr.mxu0 0.0
            %2536 = vmatpush1.msra.mxu0 0.0
            %2537 = vmatprep.subr.mxu0 0.0
            %2538 = vmatpush1.msra.mxu0 0.0
            %2539 = vmatprep.subr.mxu0 0.0
            %2540 = vmatpush1.msra.mxu0 0.0
            %2541 = vmatprep.subr.mxu0 0.0
            %2542 = vmatpush1.msra.mxu0 0.0
            %2543 = vmatprep.subr.mxu0 0.0
            %2544 = vmatpush1.msra.mxu0 0.0
            %2545 = vmatprep.subr.mxu0 0.0
            %2546 = vmatpush1.msra.mxu0 0.0
            %2547 = vmatprep.subr.mxu0 0.0
            %2548 = vmatpush1.msra.mxu0 0.0
            %2549 = vmatprep.subr.mxu0 0.0
            %2550 = vmatpush1.msra.mxu0 0.0
            %2551 = vmatprep.subr.mxu0 0.0
            %2552 = vmatpush1.msra.mxu0 0.0
            %2553 = vmatprep.subr.mxu0 0.0
            %2554 = vmatpush1.msra.mxu0 0.0
            %2555 = vmatprep.subr.mxu0 0.0
            %2556 = vmatpush1.msra.mxu0 0.0
            %2557 = vmatprep.subr.mxu0 0.0
            %2558 = vmatpush1.msra.mxu0 0.0
            %2559 = vmatprep.subr.mxu0 0.0
            %2560 = vmatpush1.msra.mxu0 0.0
            %2561 = vmatprep.subr.mxu0 0.0
            %2562 = vmatpush1.msra.mxu0 0.0
            %2563 = vmatprep.subr.mxu0 0.0
            %2564 = vmatpush1.msra.mxu0 0.0
            %2565 = vmatprep.mubr.f32.mxu0 0.0
            %2566 = vmatmul.mubr.f32.gmra.mrb[0].mxu0 %v2499
            %v2567 = vpop.f32.mrb[0].mxu0
            %v2568 = vadd.f32 %v2492, %v2567
            %v2569 = vpop.f32.mrb[0].mxu0
            %2570 = vdwg.mxu0
            %s2571 = scalar_lea.vmem %s7, 32
            %v2572 = vld [vmem:[%s2571] sm:$0xff]
            %v2573 = vld [vmem:[%s2571 + $0x8] sm:$0xff]
            %v2574 = vld [vmem:[%s2571 + $0x10] sm:$0xff]
            %v2575 = vld [vmem:[%s2571 + $0x18] sm:$0xff]
            %v2577 = vrot.slane %v2492, 1
            %2579 = vmatprep.subr.mxu0 0.0
            %2580 = vmatpush1.msra.mxu0 %v2572
            %2581 = vmatprep.subr.mxu0 0.0
            %2582 = vmatpush1.msra.mxu0 %v2573
            %2583 = vmatprep.subr.mxu0 0.0
            %2584 = vmatpush1.msra.mxu0 %v2574
            %2585 = vmatprep.subr.mxu0 0.0
            %2586 = vmatpush1.msra.mxu0 %v2575
            %2587 = vmatprep.subr.mxu0 0.0
            %2588 = vmatpush1.msra.mxu0 0.0
            %2589 = vmatprep.subr.mxu0 0.0
            %2590 = vmatpush1.msra.mxu0 0.0
            %2591 = vmatprep.subr.mxu0 0.0
            %2592 = vmatpush1.msra.mxu0 0.0
            %2593 = vmatprep.subr.mxu0 0.0
            %2594 = vmatpush1.msra.mxu0 0.0
            %2595 = vmatprep.subr.mxu0 0.0
            %2596 = vmatpush1.msra.mxu0 0.0
            %2597 = vmatprep.subr.mxu0 0.0
            %2598 = vmatpush1.msra.mxu0 0.0
            %2599 = vmatprep.subr.mxu0 0.0
            %2600 = vmatpush1.msra.mxu0 0.0
            %2601 = vmatprep.subr.mxu0 0.0
            %2602 = vmatpush1.msra.mxu0 0.0
            %2603 = vmatprep.subr.mxu0 0.0
            %2604 = vmatpush1.msra.mxu0 0.0
            %2605 = vmatprep.subr.mxu0 0.0
            %2606 = vmatpush1.msra.mxu0 0.0
            %2607 = vmatprep.subr.mxu0 0.0
            %2608 = vmatpush1.msra.mxu0 0.0
            %2609 = vmatprep.subr.mxu0 0.0
            %2610 = vmatpush1.msra.mxu0 0.0
            %2611 = vmatprep.subr.mxu0 0.0
            %2612 = vmatpush1.msra.mxu0 0.0
            %2613 = vmatprep.subr.mxu0 0.0
            %2614 = vmatpush1.msra.mxu0 0.0
            %2615 = vmatprep.subr.mxu0 0.0
            %2616 = vmatpush1.msra.mxu0 0.0
            %2617 = vmatprep.subr.mxu0 0.0
            %2618 = vmatpush1.msra.mxu0 0.0
            %2619 = vmatprep.subr.mxu0 0.0
            %2620 = vmatpush1.msra.mxu0 0.0
            %2621 = vmatprep.subr.mxu0 0.0
            %2622 = vmatpush1.msra.mxu0 0.0
            %2623 = vmatprep.subr.mxu0 0.0
            %2624 = vmatpush1.msra.mxu0 0.0
            %2625 = vmatprep.subr.mxu0 0.0
            %2626 = vmatpush1.msra.mxu0 0.0
            %2627 = vmatprep.subr.mxu0 0.0
            %2628 = vmatpush1.msra.mxu0 0.0
            %2629 = vmatprep.subr.mxu0 0.0
            %2630 = vmatpush1.msra.mxu0 0.0
            %2631 = vmatprep.subr.mxu0 0.0
            %2632 = vmatpush1.msra.mxu0 0.0
            %2633 = vmatprep.subr.mxu0 0.0
            %2634 = vmatpush1.msra.mxu0 0.0
            %2635 = vmatprep.subr.mxu0 0.0
            %2636 = vmatpush1.msra.mxu0 0.0
            %2637 = vmatprep.subr.mxu0 0.0
            %2638 = vmatpush1.msra.mxu0 0.0
            %2639 = vmatprep.subr.mxu0 0.0
            %2640 = vmatpush1.msra.mxu0 0.0
            %2641 = vmatprep.subr.mxu0 0.0
            %2642 = vmatpush1.msra.mxu0 0.0
            %2643 = vmatprep.mubr.f32.mxu0 0.0
            %2644 = vmatmul.mubr.f32.gmra.mrb[0].mxu0 %v2499
            %v2645 = vpop.f32.mrb[0].mxu0
            %v2646 = vadd.f32 %v2577, %v2645
            %v2647 = vpop.f32.mrb[0].mxu0
            %2648 = vdwg.mxu0
            %s2649 = scalar_lea.vmem %s7, 64
            %v2650 = vld [vmem:[%s2649] sm:$0xff]
            %v2651 = vld [vmem:[%s2649 + $0x8] sm:$0xff]
            %v2652 = vld [vmem:[%s2649 + $0x10] sm:$0xff]
            %v2653 = vld [vmem:[%s2649 + $0x18] sm:$0xff]
            %v2654 = vrot.slane %v2492, 2
            %2656 = vmatprep.subr.mxu0 0.0
            %2657 = vmatpush1.msra.mxu0 %v2650
            %2658 = vmatprep.subr.mxu0 0.0
            %2659 = vmatpush1.msra.mxu0 %v2651
            %2660 = vmatprep.subr.mxu0 0.0
            %2661 = vmatpush1.msra.mxu0 %v2652
            %2662 = vmatprep.subr.mxu0 0.0
            %2663 = vmatpush1.msra.mxu0 %v2653
            %2664 = vmatprep.subr.mxu0 0.0
            %2665 = vmatpush1.msra.mxu0 0.0
            %2666 = vmatprep.subr.mxu0 0.0
            %2667 = vmatpush1.msra.mxu0 0.0
            %2668 = vmatprep.subr.mxu0 0.0
            %2669 = vmatpush1.msra.mxu0 0.0
            %2670 = vmatprep.subr.mxu0 0.0
            %2671 = vmatpush1.msra.mxu0 0.0
            %2672 = vmatprep.subr.mxu0 0.0
            %2673 = vmatpush1.msra.mxu0 0.0
            %2674 = vmatprep.subr.mxu0 0.0
            %2675 = vmatpush1.msra.mxu0 0.0
            %2676 = vmatprep.subr.mxu0 0.0
            %2677 = vmatpush1.msra.mxu0 0.0
            %2678 = vmatprep.subr.mxu0 0.0
            %2679 = vmatpush1.msra.mxu0 0.0
            %2680 = vmatprep.subr.mxu0 0.0
            %2681 = vmatpush1.msra.mxu0 0.0
            %2682 = vmatprep.subr.mxu0 0.0
            %2683 = vmatpush1.msra.mxu0 0.0
            %2684 = vmatprep.subr.mxu0 0.0
            %2685 = vmatpush1.msra.mxu0 0.0
            %2686 = vmatprep.subr.mxu0 0.0
            %2687 = vmatpush1.msra.mxu0 0.0
            %2688 = vmatprep.subr.mxu0 0.0
            %2689 = vmatpush1.msra.mxu0 0.0
            %2690 = vmatprep.subr.mxu0 0.0
            %2691 = vmatpush1.msra.mxu0 0.0
            %2692 = vmatprep.subr.mxu0 0.0
            %2693 = vmatpush1.msra.mxu0 0.0
            %2694 = vmatprep.subr.mxu0 0.0
            %2695 = vmatpush1.msra.mxu0 0.0
            %2696 = vmatprep.subr.mxu0 0.0
            %2697 = vmatpush1.msra.mxu0 0.0
            %2698 = vmatprep.subr.mxu0 0.0
            %2699 = vmatpush1.msra.mxu0 0.0
            %2700 = vmatprep.subr.mxu0 0.0
            %2701 = vmatpush1.msra.mxu0 0.0
            %2702 = vmatprep.subr.mxu0 0.0
            %2703 = vmatpush1.msra.mxu0 0.0
            %2704 = vmatprep.subr.mxu0 0.0
            %2705 = vmatpush1.msra.mxu0 0.0
            %2706 = vmatprep.subr.mxu0 0.0
            %2707 = vmatpush1.msra.mxu0 0.0
            %2708 = vmatprep.subr.mxu0 0.0
            %2709 = vmatpush1.msra.mxu0 0.0
            %2710 = vmatprep.subr.mxu0 0.0
            %2711 = vmatpush1.msra.mxu0 0.0
            %2712 = vmatprep.subr.mxu0 0.0
            %2713 = vmatpush1.msra.mxu0 0.0
            %2714 = vmatprep.subr.mxu0 0.0
            %2715 = vmatpush1.msra.mxu0 0.0
            %2716 = vmatprep.subr.mxu0 0.0
            %2717 = vmatpush1.msra.mxu0 0.0
            %2718 = vmatprep.subr.mxu0 0.0
            %2719 = vmatpush1.msra.mxu0 0.0
            %2720 = vmatprep.mubr.f32.mxu0 0.0
            %2721 = vmatmul.mubr.f32.gmra.mrb[0].mxu0 %v2499
            %v2722 = vpop.f32.mrb[0].mxu0
            %v2723 = vadd.f32 %v2654, %v2722
            %v2724 = vpop.f32.mrb[0].mxu0
            %2725 = vdwg.mxu0
            %v2727 = vrot.slane %v2646, 7
            %v2730 = vrot.slane %v2723, 6
            %vm2732 = vcmask 1040384
            %v2733 = vsel %vm2732, %v2568, %v2727
            %vm2734 = vcmask 1041408
            %v2735 = vsel %vm2734, %v2733, %v2730
            %vm2736 = vcmask 124928
            %v2737 = vsel %vm2736, %v2735, -inf
            %v2738 = vrot.slane %v2737, 4
            %v2739 = vmax.f32 %v2737, %v2738
            %v2740 = vrot.slane %v2739, 2
            %v2741 = vmax.f32 %v2739, %v2740
            %v2742 = vrot.slane %v2741, 1
            %v2743 = vmax.f32 %v2741, %v2742
            %v2744 = vsub.f32 %v2735, %v2743
            %v2745 = vmul.f32 %v2744, 1.442695
            %v2746 = vpow.pop %v2745
            %v2747 = vsel %vm2736, %v2746, 0.0
            %v2748 = vrot.slane %v2747, 4
            %v2749 = vadd.f32 %v2747, %v2748
            %v2750 = vrot.slane %v2749, 2
            %v2751 = vadd.f32 %v2749, %v2750
            %v2752 = vrot.slane %v2751, 1
            %v2753 = vadd.f32 %v2751, %v2752
            %v2754 = vrcp.pop %v2753
            %v2755 = vmul.f32 %v2746, %v2754
            %v2756 = vld [vmem:[%s9] sm:$0xf]
            %v2757 = vld [vmem:[%s9 + $0x4] sm:$0xf]
            %v2758 = vld [vmem:[%s9 + $0x8] sm:$0xf]
            %v2759 = vld [vmem:[%s9 + $0xc] sm:$0xf]
            %v2760 = vld [vmem:[%s9 + $0x10] sm:$0xf]
            %v2761 = vld [vmem:[%s9 + $0x14] sm:$0xf]
            %v2762 = vld [vmem:[%s9 + $0x18] sm:$0xf]
            %v2763 = vld [vmem:[%s9 + $0x1c] sm:$0xf]
            %v2764 = vunpack.c.l.bf16 %v2756
            %v2765 = vunpack.c.l.bf16 %v2757
            %v2766 = vunpack.c.l.bf16 %v2758
            %v2767 = vunpack.c.l.bf16 %v2759
            %v2768 = vunpack.c.l.bf16 %v2760
            %v2769 = vunpack.c.l.bf16 %v2761
            %v2770 = vunpack.c.l.bf16 %v2762
            %v2771 = vunpack.c.l.bf16 %v2763
            %v2772 = vlaneseq
            %v2773 = vshrl.u32 %v2772, 7
            %v2774 = vsub.s32 0, %v2773
            %v2775 = vrot.slane %v2755, %v2774
            %v2776 = vmul.f32 %v2764, %v2775
            %v2777 = vmul.f32 %v2765, %v2775
            %v2778 = vmul.f32 %v2766, %v2775
            %v2779 = vmul.f32 %v2767, %v2775
            %v2780 = vmul.f32 %v2768, %v2775
            %v2781 = vmul.f32 %v2769, %v2775
            %v2782 = vmul.f32 %v2770, %v2775
            %v2783 = vmul.f32 %v2771, %v2775
            %v2784 = vpack.c.bf16 %v2777, %v2776
            %v2785 = vpack.c.bf16 %v2779, %v2778
            %v2786 = vpack.c.bf16 %v2781, %v2780
            %v2787 = vpack.c.bf16 %v2783, %v2782
            %v2788 = vlaneseq
            %v2789 = vshrl.u32 %v2788, 7
            %v2790 = vsub.s32 1, %v2789
            %v2791 = vrot.slane %v2755, %v2790
            %v2792 = vmul.f32 %v2764, %v2791
            %v2793 = vmul.f32 %v2765, %v2791
            %v2794 = vmul.f32 %v2766, %v2791
            %v2795 = vmul.f32 %v2767, %v2791
            %v2796 = vmul.f32 %v2768, %v2791
            %v2797 = vmul.f32 %v2769, %v2791
            %v2798 = vmul.f32 %v2770, %v2791
            %v2799 = vmul.f32 %v2771, %v2791
            %v2800 = vpack.c.bf16 %v2793, %v2792
            %v2801 = vpack.c.bf16 %v2795, %v2794
            %v2802 = vpack.c.bf16 %v2797, %v2796
            %v2803 = vpack.c.bf16 %v2799, %v2798
            %v2804 = vlaneseq
            %v2805 = vshrl.u32 %v2804, 7
            %v2806 = vsub.s32 2, %v2805
            %v2807 = vrot.slane %v2755, %v2806
            %v2808 = vmul.f32 %v2764, %v2807
            %v2809 = vmul.f32 %v2765, %v2807
            %v2810 = vmul.f32 %v2766, %v2807
            %v2811 = vmul.f32 %v2767, %v2807
            %v2812 = vmul.f32 %v2768, %v2807
            %v2813 = vmul.f32 %v2769, %v2807
            %v2814 = vmul.f32 %v2770, %v2807
            %v2815 = vmul.f32 %v2771, %v2807
            %v2816 = vpack.c.bf16 %v2809, %v2808
            %v2817 = vpack.c.bf16 %v2811, %v2810
            %v2818 = vpack.c.bf16 %v2813, %v2812
            %v2819 = vpack.c.bf16 %v2815, %v2814
            %2824 = vrot.lane.b32.xlu0 %v2800, 16
            %v2825 = vpop.permute.xlu0 %2824
            %2826 = vrot.lane.b32.xlu0 %v2801, 16
            %v2827 = vpop.permute.xlu0 %2826
            %2828 = vrot.lane.b32.xlu0 %v2802, 16
            %v2829 = vpop.permute.xlu0 %2828
            %2830 = vrot.lane.b32.xlu0 %v2803, 16
            %v2831 = vpop.permute.xlu0 %2830
            %2836 = vrot.lane.b32.xlu0 %v2816, 32
            %v2837 = vpop.permute.xlu0 %2836
            %2838 = vrot.lane.b32.xlu0 %v2817, 32
            %v2839 = vpop.permute.xlu0 %2838
            %2840 = vrot.lane.b32.xlu0 %v2818, 32
            %v2841 = vpop.permute.xlu0 %2840
            %2842 = vrot.lane.b32.xlu0 %v2819, 32
            %v2843 = vpop.permute.xlu0 %2842
            %v2846 = vsel %vm2405, %v2784, %v2825
            %v2849 = vsel %vm2405, %v2785, %v2827
            %v2852 = vsel %vm2405, %v2786, %v2829
            %v2855 = vsel %vm2405, %v2787, %v2831
            %v2857 = vsel %vm2497, %v2846, %v2837
            %v2860 = vsel %vm2497, %v2849, %v2839
            %v2863 = vsel %vm2497, %v2852, %v2841
            %v2866 = vsel %vm2497, %v2855, %v2843
            %vm2868 = vcmask 392192
            %2869 = vst.msk [vmem:[#allocation5] sm:$0xff] %vm2868, %v2857
            %2870 = vst.msk [vmem:[#allocation5 + $0x8] sm:$0xff] %vm2868, %v2860
            %2871 = vst.msk [vmem:[#allocation5 + $0x10] sm:$0xff] %vm2868, %v2863
            %2872 = vst.msk [vmem:[#allocation5 + $0x18] sm:$0xff] %vm2868, %v2866
          $region121: #{cptm_bottleneck_forward.1} parent=116 // pred_fallthru
            _
          %v2873 = vld [vmem:[%s10] sm:$0xff]
          %v2874 = vld [vmem:[%s10 + $0x8] sm:$0xff]
          %v2875 = vld [vmem:[%s10 + $0x10] sm:$0xff]
          %v2876 = vld [vmem:[%s10 + $0x18] sm:$0xff]
          %v2877 = vld [vmem:[%s10 + $0x20] sm:$0xff]
          %v2878 = vld [vmem:[%s10 + $0x28] sm:$0xff]
          %v2879 = vld [vmem:[%s10 + $0x30] sm:$0xff]
          %v2880 = vld [vmem:[%s10 + $0x38] sm:$0xff]
          %v2881 = vld [vmem:[#allocation5] sm:$0xff]
          %v2882 = vld [vmem:[#allocation5 + $0x8] sm:$0xff]
          %v2883 = vld [vmem:[#allocation5 + $0x10] sm:$0xff]
          %v2884 = vld [vmem:[#allocation5 + $0x18] sm:$0xff]
          %s2885 = smul.u32 %s29, 24
          %s2886 = smul.addr %s2885, 8
          %s2887 = scalar_lea.vmem [#allocation3], %s2886
          %v2888 = vld [vmem:[%s2887] sm:$0xff]
          %v2889 = vld [vmem:[%s2887 + $0x8] sm:$0xff]
          %v2890 = vld [vmem:[%s2887 + $0x10] sm:$0xff]
          %2892 = vset.pattern.permute.xlu0 0
          %2893 = vperm.xlu0 %2892, %v2873
          %v2894 = vpop.permute.xlu0 %2893
          %2897 = vset.pattern.permute.xlu0 0
          %2898 = vperm.xlu0 %2897, %v2874
          %v2899 = vpop.permute.xlu0 %2898
          %2902 = vset.pattern.permute.xlu0 0
          %2903 = vperm.xlu0 %2902, %v2875
          %v2904 = vpop.permute.xlu0 %2903
          %2907 = vset.pattern.permute.xlu0 0
          %2908 = vperm.xlu0 %2907, %v2876
          %v2909 = vpop.permute.xlu0 %2908
          %2912 = vset.pattern.permute.xlu0 0
          %2913 = vperm.xlu0 %2912, %v2877
          %v2914 = vpop.permute.xlu0 %2913
          %2917 = vset.pattern.permute.xlu0 0
          %2918 = vperm.xlu0 %2917, %v2878
          %v2919 = vpop.permute.xlu0 %2918
          %2922 = vset.pattern.permute.xlu0 0
          %2923 = vperm.xlu0 %2922, %v2879
          %v2924 = vpop.permute.xlu0 %2923
          %2927 = vset.pattern.permute.xlu0 0
          %2928 = vperm.xlu0 %2927, %v2880
          %v2929 = vpop.permute.xlu0 %2928
          %vm2931 = vcmask 392192
          %v2933 = vsel %vm2931, %v2881, 0
          %v2936 = vsel %vm2931, %v2882, 0
          %v2939 = vsel %vm2931, %v2883, 0
          %v2942 = vsel %vm2931, %v2884, 0
          %2944 = vmatprep.subr.bf16.mxu0 0
          %2945 = vmatpush1.bf16.msra.mxu0 %v2888
          %2946 = vmatprep.subr.bf16.mxu0 0
          %2947 = vmatpush1.bf16.msra.mxu0 %v2889
          %2948 = vmatprep.subr.bf16.mxu0 0
          %2949 = vmatpush1.bf16.msra.mxu0 %v2890
          %2950 = vmatprep.subr.bf16.mxu0 0
          %2951 = vmatpush1.bf16.msra.mxu0 0
          %2952 = vmatprep.subr.bf16.mxu0 0
          %2953 = vmatpush1.bf16.msra.mxu0 0
          %2954 = vmatprep.subr.bf16.mxu0 0
          %2955 = vmatpush1.bf16.msra.mxu0 0
          %2956 = vmatprep.subr.bf16.mxu0 0
          %2957 = vmatpush1.bf16.msra.mxu0 0
          %2958 = vmatprep.subr.bf16.mxu0 0
          %2959 = vmatpush1.bf16.msra.mxu0 0
          %2960 = vmatprep.subr.bf16.mxu0 0
          %2961 = vmatpush1.bf16.msra.mxu0 0
          %2962 = vmatprep.subr.bf16.mxu0 0
          %2963 = vmatpush1.bf16.msra.mxu0 0
          %2964 = vmatprep.subr.bf16.mxu0 0
          %2965 = vmatpush1.bf16.msra.mxu0 0
          %2966 = vmatprep.subr.bf16.mxu0 0
          %2967 = vmatpush1.bf16.msra.mxu0 0
          %2968 = vmatprep.subr.bf16.mxu0 0
          %2969 = vmatpush1.bf16.msra.mxu0 0
          %2970 = vmatprep.subr.bf16.mxu0 0
          %2971 = vmatpush1.bf16.msra.mxu0 0
          %2972 = vmatprep.subr.bf16.mxu0 0
          %2973 = vmatpush1.bf16.msra.mxu0 0
          %2974 = vmatprep.subr.bf16.mxu0 0
          %2975 = vmatpush1.bf16.msra.mxu0 0
          %2976 = vmatprep.mubr.bf16.mxu0 0
          %2977 = vmatmul.mubr.bf16.gmra.mrb[0].mxu0 %v2933
          %v2978 = vpop.f32.mrb[0].mxu0
          %v2979 = vadd.f32 %v2894, %v2978
          %v2980 = vpop.f32.mrb[0].mxu0
          %v2981 = vpop.f32.mrb[0].mxu0
          %v2982 = vadd.f32 %v2899, %v2981
          %v2983 = vpop.f32.mrb[0].mxu0
          %2984 = vmatprep.mubr.bf16.mxu0 0
          %2985 = vmatmul.mubr.bf16.gmra.mrb[0].mxu0 %v2936
          %v2986 = vpop.f32.mrb[0].mxu0
          %v2987 = vadd.f32 %v2904, %v2986
          %v2988 = vpop.f32.mrb[0].mxu0
          %v2989 = vpop.f32.mrb[0].mxu0
          %v2990 = vadd.f32 %v2909, %v2989
          %v2991 = vpop.f32.mrb[0].mxu0
          %2992 = vmatprep.mubr.bf16.mxu0 0
          %2993 = vmatmul.mubr.bf16.gmra.mrb[0].mxu0 %v2939
          %v2994 = vpop.f32.mrb[0].mxu0
          %v2995 = vadd.f32 %v2914, %v2994
          %v2996 = vpop.f32.mrb[0].mxu0
          %v2997 = vpop.f32.mrb[0].mxu0
          %v2998 = vadd.f32 %v2919, %v2997
          %v2999 = vpop.f32.mrb[0].mxu0
          %3000 = vmatprep.mubr.bf16.mxu0 0
          %3001 = vmatmul.mubr.bf16.gmra.mrb[0].mxu0 %v2942
          %v3002 = vpop.f32.mrb[0].mxu0
          %v3003 = vadd.f32 %v2924, %v3002
          %v3004 = vpop.f32.mrb[0].mxu0
          %v3005 = vpop.f32.mrb[0].mxu0
          %v3006 = vadd.f32 %v2929, %v3005
          %v3007 = vpop.f32.mrb[0].mxu0
          %3008 = vdwg.mxu0
          %v3009 = vmax.f32 %v2979, 0.0
          %v3010 = vmax.f32 %v2982, 0.0
          %v3011 = vmax.f32 %v2987, 0.0
          %v3012 = vmax.f32 %v2990, 0.0
          %v3013 = vmax.f32 %v2995, 0.0
          %v3014 = vmax.f32 %v2998, 0.0
          %v3015 = vmax.f32 %v3003, 0.0
          %v3016 = vmax.f32 %v3006, 0.0
          %v3017 = vpack.c.bf16 %v3010, %v3009
          %v3018 = vpack.c.bf16 %v3012, %v3011
          %v3019 = vpack.c.bf16 %v3014, %v3013
          %v3020 = vpack.c.bf16 %v3016, %v3015
          %v3025 = vunpack.c.l.b16 %v3017
          %v3026 = vunpack.c.h.b16 %v3017
          %v3027 = vunpack.c.l.b16 %v3018
          %v3028 = vunpack.c.h.b16 %v3018
          %v3029 = vunpack.c.l.b16 %v3019
          %v3030 = vunpack.c.h.b16 %v3019
          %v3031 = vunpack.c.l.b16 %v3020
          %v3032 = vunpack.c.h.b16 %v3020
          %v3033 = vpack.c.b16 %v3025, %v3025
          %v3034 = vpack.c.b16 %v3026, %v3026
          %v3035 = vpack.c.b16 %v3027, %v3027
          %v3036 = vpack.c.b16 %v3028, %v3028
          %v3037 = vpack.c.b16 %v3029, %v3029
          %v3038 = vpack.c.b16 %v3030, %v3030
          %v3039 = vpack.c.b16 %v3031, %v3031
          %v3040 = vpack.c.b16 %v3032, %v3032
          %3049 = vst [vmem:[%s709] sm:$0xf] %v3033
          %3050 = vst [vmem:[%s709 + $0x4] sm:$0xf] %v3034
          %3051 = vst [vmem:[%s709 + $0x8] sm:$0xf] %v3035
          %3052 = vst [vmem:[%s709 + $0xc] sm:$0xf] %v3036
          %3053 = vst [vmem:[%s709 + $0x10] sm:$0xf] %v3037
          %3054 = vst [vmem:[%s709 + $0x14] sm:$0xf] %v3038
          %3055 = vst [vmem:[%s709 + $0x18] sm:$0xf] %v3039
          %3056 = vst [vmem:[%s709 + $0x1c] sm:$0xf] %v3040
          %s3057 = sadd.s32 3, %s2885
          %s3058 = smul.addr %s3057, 8
          %s3059 = scalar_lea.vmem [#allocation3], %s3058
          %v3060 = vld [vmem:[%s3059] sm:$0xff]
          %v3061 = vld [vmem:[%s3059 + $0x8] sm:$0xff]
          %v3062 = vld [vmem:[%s3059 + $0x10] sm:$0xff]
          %3063 = vmatprep.subr.bf16.mxu0 0
          %3064 = vmatpush1.bf16.msra.mxu0 %v3060
          %3065 = vmatprep.subr.bf16.mxu0 0
          %3066 = vmatpush1.bf16.msra.mxu0 %v3061
          %3067 = vmatprep.subr.bf16.mxu0 0
          %3068 = vmatpush1.bf16.msra.mxu0 %v3062
          %3069 = vmatprep.subr.bf16.mxu0 0
          %3070 = vmatpush1.bf16.msra.mxu0 0
          %3071 = vmatprep.subr.bf16.mxu0 0
          %3072 = vmatpush1.bf16.msra.mxu0 0
          %3073 = vmatprep.subr.bf16.mxu0 0
          %3074 = vmatpush1.bf16.msra.mxu0 0
          %3075 = vmatprep.subr.bf16.mxu0 0
          %3076 = vmatpush1.bf16.msra.mxu0 0
          %3077 = vmatprep.subr.bf16.mxu0 0
          %3078 = vmatpush1.bf16.msra.mxu0 0
          %3079 = vmatprep.subr.bf16.mxu0 0
          %3080 = vmatpush1.bf16.msra.mxu0 0
          %3081 = vmatprep.subr.bf16.mxu0 0
          %3082 = vmatpush1.bf16.msra.mxu0 0
          %3083 = vmatprep.subr.bf16.mxu0 0
          %3084 = vmatpush1.bf16.msra.mxu0 0
          %3085 = vmatprep.subr.bf16.mxu0 0
          %3086 = vmatpush1.bf16.msra.mxu0 0
          %3087 = vmatprep.subr.bf16.mxu0 0
          %3088 = vmatpush1.bf16.msra.mxu0 0
          %3089 = vmatprep.subr.bf16.mxu0 0
          %3090 = vmatpush1.bf16.msra.mxu0 0
          %3091 = vmatprep.subr.bf16.mxu0 0
          %3092 = vmatpush1.bf16.msra.mxu0 0
          %3093 = vmatprep.subr.bf16.mxu0 0
          %3094 = vmatpush1.bf16.msra.mxu0 0
          %3095 = vmatprep.mubr.bf16.mxu0 0
          %3096 = vmatmul.mubr.bf16.gmra.mrb[0].mxu0 %v2933
          %v3097 = vpop.f32.mrb[0].mxu0
          %v3098 = vadd.f32 %v2894, %v3097
          %v3099 = vpop.f32.mrb[0].mxu0
          %v3100 = vpop.f32.mrb[0].mxu0
          %v3101 = vadd.f32 %v2899, %v3100
          %v3102 = vpop.f32.mrb[0].mxu0
          %3103 = vmatprep.mubr.bf16.mxu0 0
          %3104 = vmatmul.mubr.bf16.gmra.mrb[0].mxu0 %v2936
          %v3105 = vpop.f32.mrb[0].mxu0
          %v3106 = vadd.f32 %v2904, %v3105
          %v3107 = vpop.f32.mrb[0].mxu0
          %v3108 = vpop.f32.mrb[0].mxu0
          %v3109 = vadd.f32 %v2909, %v3108
          %v3110 = vpop.f32.mrb[0].mxu0
          %3111 = vmatprep.mubr.bf16.mxu0 0
          %3112 = vmatmul.mubr.bf16.gmra.mrb[0].mxu0 %v2939
          %v3113 = vpop.f32.mrb[0].mxu0
          %v3114 = vadd.f32 %v2914, %v3113
          %v3115 = vpop.f32.mrb[0].mxu0
          %v3116 = vpop.f32.mrb[0].mxu0
          %v3117 = vadd.f32 %v2919, %v3116
          %v3118 = vpop.f32.mrb[0].mxu0
          %3119 = vmatprep.mubr.bf16.mxu0 0
          %3120 = vmatmul.mubr.bf16.gmra.mrb[0].mxu0 %v2942
          %v3121 = vpop.f32.mrb[0].mxu0
          %v3122 = vadd.f32 %v2924, %v3121
          %v3123 = vpop.f32.mrb[0].mxu0
          %v3124 = vpop.f32.mrb[0].mxu0
          %v3125 = vadd.f32 %v2929, %v3124
          %v3126 = vpop.f32.mrb[0].mxu0
          %3127 = vdwg.mxu0
          %v3128 = vmax.f32 %v3098, 0.0
          %v3129 = vmax.f32 %v3101, 0.0
          %v3130 = vmax.f32 %v3106, 0.0
          %v3131 = vmax.f32 %v3109, 0.0
          %v3132 = vmax.f32 %v3114, 0.0
          %v3133 = vmax.f32 %v3117, 0.0
          %v3134 = vmax.f32 %v3122, 0.0
          %v3135 = vmax.f32 %v3125, 0.0
          %v3136 = vpack.c.bf16 %v3129, %v3128
          %v3137 = vpack.c.bf16 %v3131, %v3130
          %v3138 = vpack.c.bf16 %v3133, %v3132
          %v3139 = vpack.c.bf16 %v3135, %v3134
          %v3144 = vunpack.c.l.b16 %v3136
          %v3145 = vunpack.c.h.b16 %v3136
          %v3146 = vunpack.c.l.b16 %v3137
          %v3147 = vunpack.c.h.b16 %v3137
          %v3148 = vunpack.c.l.b16 %v3138
          %v3149 = vunpack.c.h.b16 %v3138
          %v3150 = vunpack.c.l.b16 %v3139
          %v3151 = vunpack.c.h.b16 %v3139
          %v3152 = vpack.c.b16 %v3144, %v3144
          %v3153 = vpack.c.b16 %v3145, %v3145
          %v3154 = vpack.c.b16 %v3146, %v3146
          %v3155 = vpack.c.b16 %v3147, %v3147
          %v3156 = vpack.c.b16 %v3148, %v3148
          %v3157 = vpack.c.b16 %v3149, %v3149
          %v3158 = vpack.c.b16 %v3150, %v3150
          %v3159 = vpack.c.b16 %v3151, %v3151
          %s3168 = scalar_lea.vmem %s709, 32 [#allocation7]
          %3169 = vst [vmem:[%s3168] sm:$0xf] %v3152
          %3170 = vst [vmem:[%s3168 + $0x4] sm:$0xf] %v3153
          %3171 = vst [vmem:[%s3168 + $0x8] sm:$0xf] %v3154
          %3172 = vst [vmem:[%s3168 + $0xc] sm:$0xf] %v3155
          %3173 = vst [vmem:[%s3168 + $0x10] sm:$0xf] %v3156
          %3174 = vst [vmem:[%s3168 + $0x14] sm:$0xf] %v3157
          %3175 = vst [vmem:[%s3168 + $0x18] sm:$0xf] %v3158
          %3176 = vst [vmem:[%s3168 + $0x1c] sm:$0xf] %v3159
          %s3177 = sadd.s32 6, %s2885
          %s3178 = smul.addr %s3177, 8
          %s3179 = scalar_lea.vmem [#allocation3], %s3178
          %v3180 = vld [vmem:[%s3179] sm:$0xff]
          %v3181 = vld [vmem:[%s3179 + $0x8] sm:$0xff]
          %v3182 = vld [vmem:[%s3179 + $0x10] sm:$0xff]
          %3183 = vmatprep.subr.bf16.mxu0 0
          %3184 = vmatpush1.bf16.msra.mxu0 %v3180
          %3185 = vmatprep.subr.bf16.mxu0 0
          %3186 = vmatpush1.bf16.msra.mxu0 %v3181
          %3187 = vmatprep.subr.bf16.mxu0 0
          %3188 = vmatpush1.bf16.msra.mxu0 %v3182
          %3189 = vmatprep.subr.bf16.mxu0 0
          %3190 = vmatpush1.bf16.msra.mxu0 0
          %3191 = vmatprep.subr.bf16.mxu0 0
          %3192 = vmatpush1.bf16.msra.mxu0 0
          %3193 = vmatprep.subr.bf16.mxu0 0
          %3194 = vmatpush1.bf16.msra.mxu0 0
          %3195 = vmatprep.subr.bf16.mxu0 0
          %3196 = vmatpush1.bf16.msra.mxu0 0
          %3197 = vmatprep.subr.bf16.mxu0 0
          %3198 = vmatpush1.bf16.msra.mxu0 0
          %3199 = vmatprep.subr.bf16.mxu0 0
          %3200 = vmatpush1.bf16.msra.mxu0 0
          %3201 = vmatprep.subr.bf16.mxu0 0
          %3202 = vmatpush1.bf16.msra.mxu0 0
          %3203 = vmatprep.subr.bf16.mxu0 0
          %3204 = vmatpush1.bf16.msra.mxu0 0
          %3205 = vmatprep.subr.bf16.mxu0 0
          %3206 = vmatpush1.bf16.msra.mxu0 0
          %3207 = vmatprep.subr.bf16.mxu0 0
          %3208 = vmatpush1.bf16.msra.mxu0 0
          %3209 = vmatprep.subr.bf16.mxu0 0
          %3210 = vmatpush1.bf16.msra.mxu0 0
          %3211 = vmatprep.subr.bf16.mxu0 0
          %3212 = vmatpush1.bf16.msra.mxu0 0
          %3213 = vmatprep.subr.bf16.mxu0 0
          %3214 = vmatpush1.bf16.msra.mxu0 0
          %3215 = vmatprep.mubr.bf16.mxu0 0
          %3216 = vmatmul.mubr.bf16.gmra.mrb[0].mxu0 %v2933
          %v3217 = vpop.f32.mrb[0].mxu0
          %v3218 = vadd.f32 %v2894, %v3217
          %v3219 = vpop.f32.mrb[0].mxu0
          %v3220 = vpop.f32.mrb[0].mxu0
          %v3221 = vadd.f32 %v2899, %v3220
          %v3222 = vpop.f32.mrb[0].mxu0
          %3223 = vmatprep.mubr.bf16.mxu0 0
          %3224 = vmatmul.mubr.bf16.gmra.mrb[0].mxu0 %v2936
          %v3225 = vpop.f32.mrb[0].mxu0
          %v3226 = vadd.f32 %v2904, %v3225
          %v3227 = vpop.f32.mrb[0].mxu0
          %v3228 = vpop.f32.mrb[0].mxu0
          %v3229 = vadd.f32 %v2909, %v3228
          %v3230 = vpop.f32.mrb[0].mxu0
          %3231 = vmatprep.mubr.bf16.mxu0 0
          %3232 = vmatmul.mubr.bf16.gmra.mrb[0].mxu0 %v2939
          %v3233 = vpop.f32.mrb[0].mxu0
          %v3234 = vadd.f32 %v2914, %v3233
          %v3235 = vpop.f32.mrb[0].mxu0
          %v3236 = vpop.f32.mrb[0].mxu0
          %v3237 = vadd.f32 %v2919, %v3236
          %v3238 = vpop.f32.mrb[0].mxu0
          %3239 = vmatprep.mubr.bf16.mxu0 0
          %3240 = vmatmul.mubr.bf16.gmra.mrb[0].mxu0 %v2942
          %v3241 = vpop.f32.mrb[0].mxu0
          %v3242 = vadd.f32 %v2924, %v3241
          %v3243 = vpop.f32.mrb[0].mxu0
          %v3244 = vpop.f32.mrb[0].mxu0
          %v3245 = vadd.f32 %v2929, %v3244
          %v3246 = vpop.f32.mrb[0].mxu0
          %3247 = vdwg.mxu0
          %v3248 = vmax.f32 %v3218, 0.0
          %v3249 = vmax.f32 %v3221, 0.0
          %v3250 = vmax.f32 %v3226, 0.0
          %v3251 = vmax.f32 %v3229, 0.0
          %v3252 = vmax.f32 %v3234, 0.0
          %v3253 = vmax.f32 %v3237, 0.0
          %v3254 = vmax.f32 %v3242, 0.0
          %v3255 = vmax.f32 %v3245, 0.0
          %v3256 = vpack.c.bf16 %v3249, %v3248
          %v3257 = vpack.c.bf16 %v3251, %v3250
          %v3258 = vpack.c.bf16 %v3253, %v3252
          %v3259 = vpack.c.bf16 %v3255, %v3254
          %v3264 = vunpack.c.l.b16 %v3256
          %v3265 = vunpack.c.h.b16 %v3256
          %v3266 = vunpack.c.l.b16 %v3257
          %v3267 = vunpack.c.h.b16 %v3257
          %v3268 = vunpack.c.l.b16 %v3258
          %v3269 = vunpack.c.h.b16 %v3258
          %v3270 = vunpack.c.l.b16 %v3259
          %v3271 = vunpack.c.h.b16 %v3259
          %v3272 = vpack.c.b16 %v3264, %v3264
          %v3273 = vpack.c.b16 %v3265, %v3265
          %v3274 = vpack.c.b16 %v3266, %v3266
          %v3275 = vpack.c.b16 %v3267, %v3267
          %v3276 = vpack.c.b16 %v3268, %v3268
          %v3277 = vpack.c.b16 %v3269, %v3269
          %v3278 = vpack.c.b16 %v3270, %v3270
          %v3279 = vpack.c.b16 %v3271, %v3271
          %s3288 = scalar_lea.vmem %s709, 64 [#allocation7]
          %3289 = vst [vmem:[%s3288] sm:$0xf] %v3272
          %3290 = vst [vmem:[%s3288 + $0x4] sm:$0xf] %v3273
          %3291 = vst [vmem:[%s3288 + $0x8] sm:$0xf] %v3274
          %3292 = vst [vmem:[%s3288 + $0xc] sm:$0xf] %v3275
          %3293 = vst [vmem:[%s3288 + $0x10] sm:$0xf] %v3276
          %3294 = vst [vmem:[%s3288 + $0x14] sm:$0xf] %v3277
          %3295 = vst [vmem:[%s3288 + $0x18] sm:$0xf] %v3278
          %3296 = vst [vmem:[%s3288 + $0x1c] sm:$0xf] %v3279
          %s3297 = sadd.s32 9, %s2885
          %s3298 = smul.addr %s3297, 8
          %s3299 = scalar_lea.vmem [#allocation3], %s3298
          %v3300 = vld [vmem:[%s3299] sm:$0xff]
          %v3301 = vld [vmem:[%s3299 + $0x8] sm:$0xff]
          %v3302 = vld [vmem:[%s3299 + $0x10] sm:$0xff]
          %3303 = vmatprep.subr.bf16.mxu0 0
          %3304 = vmatpush1.bf16.msra.mxu0 %v3300
          %3305 = vmatprep.subr.bf16.mxu0 0
          %3306 = vmatpush1.bf16.msra.mxu0 %v3301
          %3307 = vmatprep.subr.bf16.mxu0 0
          %3308 = vmatpush1.bf16.msra.mxu0 %v3302
          %3309 = vmatprep.subr.bf16.mxu0 0
          %3310 = vmatpush1.bf16.msra.mxu0 0
          %3311 = vmatprep.subr.bf16.mxu0 0
          %3312 = vmatpush1.bf16.msra.mxu0 0
          %3313 = vmatprep.subr.bf16.mxu0 0
          %3314 = vmatpush1.bf16.msra.mxu0 0
          %3315 = vmatprep.subr.bf16.mxu0 0
          %3316 = vmatpush1.bf16.msra.mxu0 0
          %3317 = vmatprep.subr.bf16.mxu0 0
          %3318 = vmatpush1.bf16.msra.mxu0 0
          %3319 = vmatprep.subr.bf16.mxu0 0
          %3320 = vmatpush1.bf16.msra.mxu0 0
          %3321 = vmatprep.subr.bf16.mxu0 0
          %3322 = vmatpush1.bf16.msra.mxu0 0
          %3323 = vmatprep.subr.bf16.mxu0 0
          %3324 = vmatpush1.bf16.msra.mxu0 0
          %3325 = vmatprep.subr.bf16.mxu0 0
          %3326 = vmatpush1.bf16.msra.mxu0 0
          %3327 = vmatprep.subr.bf16.mxu0 0
          %3328 = vmatpush1.bf16.msra.mxu0 0
          %3329 = vmatprep.subr.bf16.mxu0 0
          %3330 = vmatpush1.bf16.msra.mxu0 0
          %3331 = vmatprep.subr.bf16.mxu0 0
          %3332 = vmatpush1.bf16.msra.mxu0 0
          %3333 = vmatprep.subr.bf16.mxu0 0
          %3334 = vmatpush1.bf16.msra.mxu0 0
          %3335 = vmatprep.mubr.bf16.mxu0 0
          %3336 = vmatmul.mubr.bf16.gmra.mrb[0].mxu0 %v2933
          %v3337 = vpop.f32.mrb[0].mxu0
          %v3338 = vadd.f32 %v2894, %v3337
          %v3339 = vpop.f32.mrb[0].mxu0
          %v3340 = vpop.f32.mrb[0].mxu0
          %v3341 = vadd.f32 %v2899, %v3340
          %v3342 = vpop.f32.mrb[0].mxu0
          %3343 = vmatprep.mubr.bf16.mxu0 0
          %3344 = vmatmul.mubr.bf16.gmra.mrb[0].mxu0 %v2936
          %v3345 = vpop.f32.mrb[0].mxu0
          %v3346 = vadd.f32 %v2904, %v3345
          %v3347 = vpop.f32.mrb[0].mxu0
          %v3348 = vpop.f32.mrb[0].mxu0
          %v3349 = vadd.f32 %v2909, %v3348
          %v3350 = vpop.f32.mrb[0].mxu0
          %3351 = vmatprep.mubr.bf16.mxu0 0
          %3352 = vmatmul.mubr.bf16.gmra.mrb[0].mxu0 %v2939
          %v3353 = vpop.f32.mrb[0].mxu0
          %v3354 = vadd.f32 %v2914, %v3353
          %v3355 = vpop.f32.mrb[0].mxu0
          %v3356 = vpop.f32.mrb[0].mxu0
          %v3357 = vadd.f32 %v2919, %v3356
          %v3358 = vpop.f32.mrb[0].mxu0
          %3359 = vmatprep.mubr.bf16.mxu0 0
          %3360 = vmatmul.mubr.bf16.gmra.mrb[0].mxu0 %v2942
          %v3361 = vpop.f32.mrb[0].mxu0
          %v3362 = vadd.f32 %v2924, %v3361
          %v3363 = vpop.f32.mrb[0].mxu0
          %v3364 = vpop.f32.mrb[0].mxu0
          %v3365 = vadd.f32 %v2929, %v3364
          %v3366 = vpop.f32.mrb[0].mxu0
          %3367 = vdwg.mxu0
          %v3368 = vmax.f32 %v3338, 0.0
          %v3369 = vmax.f32 %v3341, 0.0
          %v3370 = vmax.f32 %v3346, 0.0
          %v3371 = vmax.f32 %v3349, 0.0
          %v3372 = vmax.f32 %v3354, 0.0
          %v3373 = vmax.f32 %v3357, 0.0
          %v3374 = vmax.f32 %v3362, 0.0
          %v3375 = vmax.f32 %v3365, 0.0
          %v3376 = vpack.c.bf16 %v3369, %v3368
          %v3377 = vpack.c.bf16 %v3371, %v3370
          %v3378 = vpack.c.bf16 %v3373, %v3372
          %v3379 = vpack.c.bf16 %v3375, %v3374
          %v3384 = vunpack.c.l.b16 %v3376
          %v3385 = vunpack.c.h.b16 %v3376
          %v3386 = vunpack.c.l.b16 %v3377
          %v3387 = vunpack.c.h.b16 %v3377
          %v3388 = vunpack.c.l.b16 %v3378
          %v3389 = vunpack.c.h.b16 %v3378
          %v3390 = vunpack.c.l.b16 %v3379
          %v3391 = vunpack.c.h.b16 %v3379
          %v3392 = vpack.c.b16 %v3384, %v3384
          %v3393 = vpack.c.b16 %v3385, %v3385
          %v3394 = vpack.c.b16 %v3386, %v3386
          %v3395 = vpack.c.b16 %v3387, %v3387
          %v3396 = vpack.c.b16 %v3388, %v3388
          %v3397 = vpack.c.b16 %v3389, %v3389
          %v3398 = vpack.c.b16 %v3390, %v3390
          %v3399 = vpack.c.b16 %v3391, %v3391
          %s3408 = scalar_lea.vmem %s709, 96 [#allocation7]
          %3409 = vst [vmem:[%s3408] sm:$0xf] %v3392
          %3410 = vst [vmem:[%s3408 + $0x4] sm:$0xf] %v3393
          %3411 = vst [vmem:[%s3408 + $0x8] sm:$0xf] %v3394
          %3412 = vst [vmem:[%s3408 + $0xc] sm:$0xf] %v3395
          %3413 = vst [vmem:[%s3408 + $0x10] sm:$0xf] %v3396
          %3414 = vst [vmem:[%s3408 + $0x14] sm:$0xf] %v3397
          %3415 = vst [vmem:[%s3408 + $0x18] sm:$0xf] %v3398
          %3416 = vst [vmem:[%s3408 + $0x1c] sm:$0xf] %v3399
          %s3417 = sadd.s32 12, %s2885
          %s3418 = smul.addr %s3417, 8
          %s3419 = scalar_lea.vmem [#allocation3], %s3418
          %v3420 = vld [vmem:[%s3419] sm:$0xff]
          %v3421 = vld [vmem:[%s3419 + $0x8] sm:$0xff]
          %v3422 = vld [vmem:[%s3419 + $0x10] sm:$0xff]
          %3423 = vmatprep.subr.bf16.mxu0 0
          %3424 = vmatpush1.bf16.msra.mxu0 %v3420
          %3425 = vmatprep.subr.bf16.mxu0 0
          %3426 = vmatpush1.bf16.msra.mxu0 %v3421
          %3427 = vmatprep.subr.bf16.mxu0 0
          %3428 = vmatpush1.bf16.msra.mxu0 %v3422
          %3429 = vmatprep.subr.bf16.mxu0 0
          %3430 = vmatpush1.bf16.msra.mxu0 0
          %3431 = vmatprep.subr.bf16.mxu0 0
          %3432 = vmatpush1.bf16.msra.mxu0 0
          %3433 = vmatprep.subr.bf16.mxu0 0
          %3434 = vmatpush1.bf16.msra.mxu0 0
          %3435 = vmatprep.subr.bf16.mxu0 0
          %3436 = vmatpush1.bf16.msra.mxu0 0
          %3437 = vmatprep.subr.bf16.mxu0 0
          %3438 = vmatpush1.bf16.msra.mxu0 0
          %3439 = vmatprep.subr.bf16.mxu0 0
          %3440 = vmatpush1.bf16.msra.mxu0 0
          %3441 = vmatprep.subr.bf16.mxu0 0
          %3442 = vmatpush1.bf16.msra.mxu0 0
          %3443 = vmatprep.subr.bf16.mxu0 0
          %3444 = vmatpush1.bf16.msra.mxu0 0
          %3445 = vmatprep.subr.bf16.mxu0 0
          %3446 = vmatpush1.bf16.msra.mxu0 0
          %3447 = vmatprep.subr.bf16.mxu0 0
          %3448 = vmatpush1.bf16.msra.mxu0 0
          %3449 = vmatprep.subr.bf16.mxu0 0
          %3450 = vmatpush1.bf16.msra.mxu0 0
          %3451 = vmatprep.subr.bf16.mxu0 0
          %3452 = vmatpush1.bf16.msra.mxu0 0
          %3453 = vmatprep.subr.bf16.mxu0 0
          %3454 = vmatpush1.bf16.msra.mxu0 0
          %3455 = vmatprep.mubr.bf16.mxu0 0
          %3456 = vmatmul.mubr.bf16.gmra.mrb[0].mxu0 %v2933
          %v3457 = vpop.f32.mrb[0].mxu0
          %v3458 = vadd.f32 %v2894, %v3457
          %v3459 = vpop.f32.mrb[0].mxu0
          %v3460 = vpop.f32.mrb[0].mxu0
          %v3461 = vadd.f32 %v2899, %v3460
          %v3462 = vpop.f32.mrb[0].mxu0
          %3463 = vmatprep.mubr.bf16.mxu0 0
          %3464 = vmatmul.mubr.bf16.gmra.mrb[0].mxu0 %v2936
          %v3465 = vpop.f32.mrb[0].mxu0
          %v3466 = vadd.f32 %v2904, %v3465
          %v3467 = vpop.f32.mrb[0].mxu0
          %v3468 = vpop.f32.mrb[0].mxu0
          %v3469 = vadd.f32 %v2909, %v3468
          %v3470 = vpop.f32.mrb[0].mxu0
          %3471 = vmatprep.mubr.bf16.mxu0 0
          %3472 = vmatmul.mubr.bf16.gmra.mrb[0].mxu0 %v2939
          %v3473 = vpop.f32.mrb[0].mxu0
          %v3474 = vadd.f32 %v2914, %v3473
          %v3475 = vpop.f32.mrb[0].mxu0
          %v3476 = vpop.f32.mrb[0].mxu0
          %v3477 = vadd.f32 %v2919, %v3476
          %v3478 = vpop.f32.mrb[0].mxu0
          %3479 = vmatprep.mubr.bf16.mxu0 0
          %3480 = vmatmul.mubr.bf16.gmra.mrb[0].mxu0 %v2942
          %v3481 = vpop.f32.mrb[0].mxu0
          %v3482 = vadd.f32 %v2924, %v3481
          %v3483 = vpop.f32.mrb[0].mxu0
          %v3484 = vpop.f32.mrb[0].mxu0
          %v3485 = vadd.f32 %v2929, %v3484
          %v3486 = vpop.f32.mrb[0].mxu0
          %3487 = vdwg.mxu0
          %v3488 = vmax.f32 %v3458, 0.0
          %v3489 = vmax.f32 %v3461, 0.0
          %v3490 = vmax.f32 %v3466, 0.0
          %v3491 = vmax.f32 %v3469, 0.0
          %v3492 = vmax.f32 %v3474, 0.0
          %v3493 = vmax.f32 %v3477, 0.0
          %v3494 = vmax.f32 %v3482, 0.0
          %v3495 = vmax.f32 %v3485, 0.0
          %v3496 = vpack.c.bf16 %v3489, %v3488
          %v3497 = vpack.c.bf16 %v3491, %v3490
          %v3498 = vpack.c.bf16 %v3493, %v3492
          %v3499 = vpack.c.bf16 %v3495, %v3494
          %v3504 = vunpack.c.l.b16 %v3496
          %v3505 = vunpack.c.h.b16 %v3496
          %v3506 = vunpack.c.l.b16 %v3497
          %v3507 = vunpack.c.h.b16 %v3497
          %v3508 = vunpack.c.l.b16 %v3498
          %v3509 = vunpack.c.h.b16 %v3498
          %v3510 = vunpack.c.l.b16 %v3499
          %v3511 = vunpack.c.h.b16 %v3499
          %v3512 = vpack.c.b16 %v3504, %v3504
          %v3513 = vpack.c.b16 %v3505, %v3505
          %v3514 = vpack.c.b16 %v3506, %v3506
          %v3515 = vpack.c.b16 %v3507, %v3507
          %v3516 = vpack.c.b16 %v3508, %v3508
          %v3517 = vpack.c.b16 %v3509, %v3509
          %v3518 = vpack.c.b16 %v3510, %v3510
          %v3519 = vpack.c.b16 %v3511, %v3511
          %s3528 = scalar_lea.vmem %s709, 128 [#allocation7]
          %3529 = vst [vmem:[%s3528] sm:$0xf] %v3512
          %3530 = vst [vmem:[%s3528 + $0x4] sm:$0xf] %v3513
          %3531 = vst [vmem:[%s3528 + $0x8] sm:$0xf] %v3514
          %3532 = vst [vmem:[%s3528 + $0xc] sm:$0xf] %v3515
          %3533 = vst [vmem:[%s3528 + $0x10] sm:$0xf] %v3516
          %3534 = vst [vmem:[%s3528 + $0x14] sm:$0xf] %v3517
          %3535 = vst [vmem:[%s3528 + $0x18] sm:$0xf] %v3518
          %3536 = vst [vmem:[%s3528 + $0x1c] sm:$0xf] %v3519
          %s3537 = sadd.s32 15, %s2885
          %s3538 = smul.addr %s3537, 8
          %s3539 = scalar_lea.vmem [#allocation3], %s3538
          %v3540 = vld [vmem:[%s3539] sm:$0xff]
          %v3541 = vld [vmem:[%s3539 + $0x8] sm:$0xff]
          %v3542 = vld [vmem:[%s3539 + $0x10] sm:$0xff]
          %3543 = vmatprep.subr.bf16.mxu0 0
          %3544 = vmatpush1.bf16.msra.mxu0 %v3540
          %3545 = vmatprep.subr.bf16.mxu0 0
          %3546 = vmatpush1.bf16.msra.mxu0 %v3541
          %3547 = vmatprep.subr.bf16.mxu0 0
          %3548 = vmatpush1.bf16.msra.mxu0 %v3542
          %3549 = vmatprep.subr.bf16.mxu0 0
          %3550 = vmatpush1.bf16.msra.mxu0 0
          %3551 = vmatprep.subr.bf16.mxu0 0
          %3552 = vmatpush1.bf16.msra.mxu0 0
          %3553 = vmatprep.subr.bf16.mxu0 0
          %3554 = vmatpush1.bf16.msra.mxu0 0
          %3555 = vmatprep.subr.bf16.mxu0 0
          %3556 = vmatpush1.bf16.msra.mxu0 0
          %3557 = vmatprep.subr.bf16.mxu0 0
          %3558 = vmatpush1.bf16.msra.mxu0 0
          %3559 = vmatprep.subr.bf16.mxu0 0
          %3560 = vmatpush1.bf16.msra.mxu0 0
          %3561 = vmatprep.subr.bf16.mxu0 0
          %3562 = vmatpush1.bf16.msra.mxu0 0
          %3563 = vmatprep.subr.bf16.mxu0 0
          %3564 = vmatpush1.bf16.msra.mxu0 0
          %3565 = vmatprep.subr.bf16.mxu0 0
          %3566 = vmatpush1.bf16.msra.mxu0 0
          %3567 = vmatprep.subr.bf16.mxu0 0
          %3568 = vmatpush1.bf16.msra.mxu0 0
          %3569 = vmatprep.subr.bf16.mxu0 0
          %3570 = vmatpush1.bf16.msra.mxu0 0
          %3571 = vmatprep.subr.bf16.mxu0 0
          %3572 = vmatpush1.bf16.msra.mxu0 0
          %3573 = vmatprep.subr.bf16.mxu0 0
          %3574 = vmatpush1.bf16.msra.mxu0 0
          %3575 = vmatprep.mubr.bf16.mxu0 0
          %3576 = vmatmul.mubr.bf16.gmra.mrb[0].mxu0 %v2933
          %v3577 = vpop.f32.mrb[0].mxu0
          %v3578 = vadd.f32 %v2894, %v3577
          %v3579 = vpop.f32.mrb[0].mxu0
          %v3580 = vpop.f32.mrb[0].mxu0
          %v3581 = vadd.f32 %v2899, %v3580
          %v3582 = vpop.f32.mrb[0].mxu0
          %3583 = vmatprep.mubr.bf16.mxu0 0
          %3584 = vmatmul.mubr.bf16.gmra.mrb[0].mxu0 %v2936
          %v3585 = vpop.f32.mrb[0].mxu0
          %v3586 = vadd.f32 %v2904, %v3585
          %v3587 = vpop.f32.mrb[0].mxu0
          %v3588 = vpop.f32.mrb[0].mxu0
          %v3589 = vadd.f32 %v2909, %v3588
          %v3590 = vpop.f32.mrb[0].mxu0
          %3591 = vmatprep.mubr.bf16.mxu0 0
          %3592 = vmatmul.mubr.bf16.gmra.mrb[0].mxu0 %v2939
          %v3593 = vpop.f32.mrb[0].mxu0
          %v3594 = vadd.f32 %v2914, %v3593
          %v3595 = vpop.f32.mrb[0].mxu0
          %v3596 = vpop.f32.mrb[0].mxu0
          %v3597 = vadd.f32 %v2919, %v3596
          %v3598 = vpop.f32.mrb[0].mxu0
          %3599 = vmatprep.mubr.bf16.mxu0 0
          %3600 = vmatmul.mubr.bf16.gmra.mrb[0].mxu0 %v2942
          %v3601 = vpop.f32.mrb[0].mxu0
          %v3602 = vadd.f32 %v2924, %v3601
          %v3603 = vpop.f32.mrb[0].mxu0
          %v3604 = vpop.f32.mrb[0].mxu0
          %v3605 = vadd.f32 %v2929, %v3604
          %v3606 = vpop.f32.mrb[0].mxu0
          %3607 = vdwg.mxu0
          %v3608 = vmax.f32 %v3578, 0.0
          %v3609 = vmax.f32 %v3581, 0.0
          %v3610 = vmax.f32 %v3586, 0.0
          %v3611 = vmax.f32 %v3589, 0.0
          %v3612 = vmax.f32 %v3594, 0.0
          %v3613 = vmax.f32 %v3597, 0.0
          %v3614 = vmax.f32 %v3602, 0.0
          %v3615 = vmax.f32 %v3605, 0.0
          %v3616 = vpack.c.bf16 %v3609, %v3608
          %v3617 = vpack.c.bf16 %v3611, %v3610
          %v3618 = vpack.c.bf16 %v3613, %v3612
          %v3619 = vpack.c.bf16 %v3615, %v3614
          %v3624 = vunpack.c.l.b16 %v3616
          %v3625 = vunpack.c.h.b16 %v3616
          %v3626 = vunpack.c.l.b16 %v3617
          %v3627 = vunpack.c.h.b16 %v3617
          %v3628 = vunpack.c.l.b16 %v3618
          %v3629 = vunpack.c.h.b16 %v3618
          %v3630 = vunpack.c.l.b16 %v3619
          %v3631 = vunpack.c.h.b16 %v3619
          %v3632 = vpack.c.b16 %v3624, %v3624
          %v3633 = vpack.c.b16 %v3625, %v3625
          %v3634 = vpack.c.b16 %v3626, %v3626
          %v3635 = vpack.c.b16 %v3627, %v3627
          %v3636 = vpack.c.b16 %v3628, %v3628
          %v3637 = vpack.c.b16 %v3629, %v3629
          %v3638 = vpack.c.b16 %v3630, %v3630
          %v3639 = vpack.c.b16 %v3631, %v3631
          %s3648 = scalar_lea.vmem %s709, 160 [#allocation7]
          %3649 = vst [vmem:[%s3648] sm:$0xf] %v3632
          %3650 = vst [vmem:[%s3648 + $0x4] sm:$0xf] %v3633
          %3651 = vst [vmem:[%s3648 + $0x8] sm:$0xf] %v3634
          %3652 = vst [vmem:[%s3648 + $0xc] sm:$0xf] %v3635
          %3653 = vst [vmem:[%s3648 + $0x10] sm:$0xf] %v3636
          %3654 = vst [vmem:[%s3648 + $0x14] sm:$0xf] %v3637
          %3655 = vst [vmem:[%s3648 + $0x18] sm:$0xf] %v3638
          %3656 = vst [vmem:[%s3648 + $0x1c] sm:$0xf] %v3639
          %s3657 = sadd.s32 18, %s2885
          %s3658 = smul.addr %s3657, 8
          %s3659 = scalar_lea.vmem [#allocation3], %s3658
          %v3660 = vld [vmem:[%s3659] sm:$0xff]
          %v3661 = vld [vmem:[%s3659 + $0x8] sm:$0xff]
          %v3662 = vld [vmem:[%s3659 + $0x10] sm:$0xff]
          %3663 = vmatprep.subr.bf16.mxu0 0
          %3664 = vmatpush1.bf16.msra.mxu0 %v3660
          %3665 = vmatprep.subr.bf16.mxu0 0
          %3666 = vmatpush1.bf16.msra.mxu0 %v3661
          %3667 = vmatprep.subr.bf16.mxu0 0
          %3668 = vmatpush1.bf16.msra.mxu0 %v3662
          %3669 = vmatprep.subr.bf16.mxu0 0
          %3670 = vmatpush1.bf16.msra.mxu0 0
          %3671 = vmatprep.subr.bf16.mxu0 0
          %3672 = vmatpush1.bf16.msra.mxu0 0
          %3673 = vmatprep.subr.bf16.mxu0 0
          %3674 = vmatpush1.bf16.msra.mxu0 0
          %3675 = vmatprep.subr.bf16.mxu0 0
          %3676 = vmatpush1.bf16.msra.mxu0 0
          %3677 = vmatprep.subr.bf16.mxu0 0
          %3678 = vmatpush1.bf16.msra.mxu0 0
          %3679 = vmatprep.subr.bf16.mxu0 0
          %3680 = vmatpush1.bf16.msra.mxu0 0
          %3681 = vmatprep.subr.bf16.mxu0 0
          %3682 = vmatpush1.bf16.msra.mxu0 0
          %3683 = vmatprep.subr.bf16.mxu0 0
          %3684 = vmatpush1.bf16.msra.mxu0 0
          %3685 = vmatprep.subr.bf16.mxu0 0
          %3686 = vmatpush1.bf16.msra.mxu0 0
          %3687 = vmatprep.subr.bf16.mxu0 0
          %3688 = vmatpush1.bf16.msra.mxu0 0
          %3689 = vmatprep.subr.bf16.mxu0 0
          %3690 = vmatpush1.bf16.msra.mxu0 0
          %3691 = vmatprep.subr.bf16.mxu0 0
          %3692 = vmatpush1.bf16.msra.mxu0 0
          %3693 = vmatprep.subr.bf16.mxu0 0
          %3694 = vmatpush1.bf16.msra.mxu0 0
          %3695 = vmatprep.mubr.bf16.mxu0 0
          %3696 = vmatmul.mubr.bf16.gmra.mrb[0].mxu0 %v2933
          %v3697 = vpop.f32.mrb[0].mxu0
          %v3698 = vadd.f32 %v2894, %v3697
          %v3699 = vpop.f32.mrb[0].mxu0
          %v3700 = vpop.f32.mrb[0].mxu0
          %v3701 = vadd.f32 %v2899, %v3700
          %v3702 = vpop.f32.mrb[0].mxu0
          %3703 = vmatprep.mubr.bf16.mxu0 0
          %3704 = vmatmul.mubr.bf16.gmra.mrb[0].mxu0 %v2936
          %v3705 = vpop.f32.mrb[0].mxu0
          %v3706 = vadd.f32 %v2904, %v3705
          %v3707 = vpop.f32.mrb[0].mxu0
          %v3708 = vpop.f32.mrb[0].mxu0
          %v3709 = vadd.f32 %v2909, %v3708
          %v3710 = vpop.f32.mrb[0].mxu0
          %3711 = vmatprep.mubr.bf16.mxu0 0
          %3712 = vmatmul.mubr.bf16.gmra.mrb[0].mxu0 %v2939
          %v3713 = vpop.f32.mrb[0].mxu0
          %v3714 = vadd.f32 %v2914, %v3713
          %v3715 = vpop.f32.mrb[0].mxu0
          %v3716 = vpop.f32.mrb[0].mxu0
          %v3717 = vadd.f32 %v2919, %v3716
          %v3718 = vpop.f32.mrb[0].mxu0
          %3719 = vmatprep.mubr.bf16.mxu0 0
          %3720 = vmatmul.mubr.bf16.gmra.mrb[0].mxu0 %v2942
          %v3721 = vpop.f32.mrb[0].mxu0
          %v3722 = vadd.f32 %v2924, %v3721
          %v3723 = vpop.f32.mrb[0].mxu0
          %v3724 = vpop.f32.mrb[0].mxu0
          %v3725 = vadd.f32 %v2929, %v3724
          %v3726 = vpop.f32.mrb[0].mxu0
          %3727 = vdwg.mxu0
          %v3728 = vmax.f32 %v3698, 0.0
          %v3729 = vmax.f32 %v3701, 0.0
          %v3730 = vmax.f32 %v3706, 0.0
          %v3731 = vmax.f32 %v3709, 0.0
          %v3732 = vmax.f32 %v3714, 0.0
          %v3733 = vmax.f32 %v3717, 0.0
          %v3734 = vmax.f32 %v3722, 0.0
          %v3735 = vmax.f32 %v3725, 0.0
          %v3736 = vpack.c.bf16 %v3729, %v3728
          %v3737 = vpack.c.bf16 %v3731, %v3730
          %v3738 = vpack.c.bf16 %v3733, %v3732
          %v3739 = vpack.c.bf16 %v3735, %v3734
          %v3744 = vunpack.c.l.b16 %v3736
          %v3745 = vunpack.c.h.b16 %v3736
          %v3746 = vunpack.c.l.b16 %v3737
          %v3747 = vunpack.c.h.b16 %v3737
          %v3748 = vunpack.c.l.b16 %v3738
          %v3749 = vunpack.c.h.b16 %v3738
          %v3750 = vunpack.c.l.b16 %v3739
          %v3751 = vunpack.c.h.b16 %v3739
          %v3752 = vpack.c.b16 %v3744, %v3744
          %v3753 = vpack.c.b16 %v3745, %v3745
          %v3754 = vpack.c.b16 %v3746, %v3746
          %v3755 = vpack.c.b16 %v3747, %v3747
          %v3756 = vpack.c.b16 %v3748, %v3748
          %v3757 = vpack.c.b16 %v3749, %v3749
          %v3758 = vpack.c.b16 %v3750, %v3750
          %v3759 = vpack.c.b16 %v3751, %v3751
          %s3768 = scalar_lea.vmem %s709, 192 [#allocation7]
          %3769 = vst [vmem:[%s3768] sm:$0xf] %v3752
          %3770 = vst [vmem:[%s3768 + $0x4] sm:$0xf] %v3753
          %3771 = vst [vmem:[%s3768 + $0x8] sm:$0xf] %v3754
          %3772 = vst [vmem:[%s3768 + $0xc] sm:$0xf] %v3755
          %3773 = vst [vmem:[%s3768 + $0x10] sm:$0xf] %v3756
          %3774 = vst [vmem:[%s3768 + $0x14] sm:$0xf] %v3757
          %3775 = vst [vmem:[%s3768 + $0x18] sm:$0xf] %v3758
          %3776 = vst [vmem:[%s3768 + $0x1c] sm:$0xf] %v3759
          %s3777 = sadd.s32 21, %s2885
          %s3778 = smul.addr %s3777, 8
          %s3779 = scalar_lea.vmem [#allocation3], %s3778
          %v3780 = vld [vmem:[%s3779] sm:$0xff]
          %v3781 = vld [vmem:[%s3779 + $0x8] sm:$0xff]
          %v3782 = vld [vmem:[%s3779 + $0x10] sm:$0xff]
          %3783 = vmatprep.subr.bf16.mxu0 0
          %3784 = vmatpush1.bf16.msra.mxu0 %v3780
          %3785 = vmatprep.subr.bf16.mxu0 0
          %3786 = vmatpush1.bf16.msra.mxu0 %v3781
          %3787 = vmatprep.subr.bf16.mxu0 0
          %3788 = vmatpush1.bf16.msra.mxu0 %v3782
          %3789 = vmatprep.subr.bf16.mxu0 0
          %3790 = vmatpush1.bf16.msra.mxu0 0
          %3791 = vmatprep.subr.bf16.mxu0 0
          %3792 = vmatpush1.bf16.msra.mxu0 0
          %3793 = vmatprep.subr.bf16.mxu0 0
          %3794 = vmatpush1.bf16.msra.mxu0 0
          %3795 = vmatprep.subr.bf16.mxu0 0
          %3796 = vmatpush1.bf16.msra.mxu0 0
          %3797 = vmatprep.subr.bf16.mxu0 0
          %3798 = vmatpush1.bf16.msra.mxu0 0
          %3799 = vmatprep.subr.bf16.mxu0 0
          %3800 = vmatpush1.bf16.msra.mxu0 0
          %3801 = vmatprep.subr.bf16.mxu0 0
          %3802 = vmatpush1.bf16.msra.mxu0 0
          %3803 = vmatprep.subr.bf16.mxu0 0
          %3804 = vmatpush1.bf16.msra.mxu0 0
          %3805 = vmatprep.subr.bf16.mxu0 0
          %3806 = vmatpush1.bf16.msra.mxu0 0
          %3807 = vmatprep.subr.bf16.mxu0 0
          %3808 = vmatpush1.bf16.msra.mxu0 0
          %3809 = vmatprep.subr.bf16.mxu0 0
          %3810 = vmatpush1.bf16.msra.mxu0 0
          %3811 = vmatprep.subr.bf16.mxu0 0
          %3812 = vmatpush1.bf16.msra.mxu0 0
          %3813 = vmatprep.subr.bf16.mxu0 0
          %3814 = vmatpush1.bf16.msra.mxu0 0
          %3815 = vmatprep.mubr.bf16.mxu0 0
          %3816 = vmatmul.mubr.bf16.gmra.mrb[0].mxu0 %v2933
          %v3817 = vpop.f32.mrb[0].mxu0
          %v3818 = vadd.f32 %v2894, %v3817
          %v3819 = vpop.f32.mrb[0].mxu0
          %v3820 = vpop.f32.mrb[0].mxu0
          %v3821 = vadd.f32 %v2899, %v3820
          %v3822 = vpop.f32.mrb[0].mxu0
          %3823 = vmatprep.mubr.bf16.mxu0 0
          %3824 = vmatmul.mubr.bf16.gmra.mrb[0].mxu0 %v2936
          %v3825 = vpop.f32.mrb[0].mxu0
          %v3826 = vadd.f32 %v2904, %v3825
          %v3827 = vpop.f32.mrb[0].mxu0
          %v3828 = vpop.f32.mrb[0].mxu0
          %v3829 = vadd.f32 %v2909, %v3828
          %v3830 = vpop.f32.mrb[0].mxu0
          %3831 = vmatprep.mubr.bf16.mxu0 0
          %3832 = vmatmul.mubr.bf16.gmra.mrb[0].mxu0 %v2939
          %v3833 = vpop.f32.mrb[0].mxu0
          %v3834 = vadd.f32 %v2914, %v3833
          %v3835 = vpop.f32.mrb[0].mxu0
          %v3836 = vpop.f32.mrb[0].mxu0
          %v3837 = vadd.f32 %v2919, %v3836
          %v3838 = vpop.f32.mrb[0].mxu0
          %3839 = vmatprep.mubr.bf16.mxu0 0
          %3840 = vmatmul.mubr.bf16.gmra.mrb[0].mxu0 %v2942
          %v3841 = vpop.f32.mrb[0].mxu0
          %v3842 = vadd.f32 %v2924, %v3841
          %v3843 = vpop.f32.mrb[0].mxu0
          %v3844 = vpop.f32.mrb[0].mxu0
          %v3845 = vadd.f32 %v2929, %v3844
          %v3846 = vpop.f32.mrb[0].mxu0
          %3847 = vdwg.mxu0
          %v3848 = vmax.f32 %v3818, 0.0
          %v3849 = vmax.f32 %v3821, 0.0
          %v3850 = vmax.f32 %v3826, 0.0
          %v3851 = vmax.f32 %v3829, 0.0
          %v3852 = vmax.f32 %v3834, 0.0
          %v3853 = vmax.f32 %v3837, 0.0
          %v3854 = vmax.f32 %v3842, 0.0
          %v3855 = vmax.f32 %v3845, 0.0
          %v3856 = vpack.c.bf16 %v3849, %v3848
          %v3857 = vpack.c.bf16 %v3851, %v3850
          %v3858 = vpack.c.bf16 %v3853, %v3852
          %v3859 = vpack.c.bf16 %v3855, %v3854
          %v3864 = vunpack.c.l.b16 %v3856
          %v3865 = vunpack.c.h.b16 %v3856
          %v3866 = vunpack.c.l.b16 %v3857
          %v3867 = vunpack.c.h.b16 %v3857
          %v3868 = vunpack.c.l.b16 %v3858
          %v3869 = vunpack.c.h.b16 %v3858
          %v3870 = vunpack.c.l.b16 %v3859
          %v3871 = vunpack.c.h.b16 %v3859
          %v3872 = vpack.c.b16 %v3864, %v3864
          %v3873 = vpack.c.b16 %v3865, %v3865
          %v3874 = vpack.c.b16 %v3866, %v3866
          %v3875 = vpack.c.b16 %v3867, %v3867
          %v3876 = vpack.c.b16 %v3868, %v3868
          %v3877 = vpack.c.b16 %v3869, %v3869
          %v3878 = vpack.c.b16 %v3870, %v3870
          %v3879 = vpack.c.b16 %v3871, %v3871
          %s3888 = scalar_lea.vmem %s709, 224 [#allocation7]
          %3889 = vst [vmem:[%s3888] sm:$0xf] %v3872
          %3890 = vst [vmem:[%s3888 + $0x4] sm:$0xf] %v3873
          %3891 = vst [vmem:[%s3888 + $0x8] sm:$0xf] %v3874
          %3892 = vst [vmem:[%s3888 + $0xc] sm:$0xf] %v3875
          %3893 = vst [vmem:[%s3888 + $0x10] sm:$0xf] %v3876
          %3894 = vst [vmem:[%s3888 + $0x14] sm:$0xf] %v3877
          %3895 = vst [vmem:[%s3888 + $0x18] sm:$0xf] %v3878
          %3896 = vst [vmem:[%s3888 + $0x1c] sm:$0xf] %v3879
        $region117: #{cptm_bottleneck_forward.1} parent=100 // pred_fallthru
          _
        %s3897 = sand.u32 %s297, 1
        %s3898 = sand.u32 %s297, 1
        %s3899 = smul.addr %s3898, 256
        %s3900 = scalar_lea.vmem [#allocation7], %s3899
        // Predicated region
        $region122: #{cptm_bottleneck_forward.1} parent=100 // pred_check
          %p3901 = pneg %p307
        $region123: #{cptm_bottleneck_forward.1} parent=100 // pred_check_branch
          %3903 = sbr.rel (%p3901) target = $region125
        $region124: #{cptm_bottleneck_forward.1} parent=100 // pred_region
          %s3904 = smul.u32 %s29, %s28
          %s3905 = smul.addr %s27, 128
          %s3906 = sadd.s32 %s3904, %s3905
          %s3907 = smul.addr %s3906, 4
          %s3908 = scalar_lea.vmem %s11, %s3907
          // Predicated region
          $region126: #{cptm_bottleneck_forward.1} parent=124 // pred_check
            _
          $region127: #{cptm_bottleneck_forward.1} parent=124 // pred_check_branch
            %3910 = sbr.rel (0) target = $region129
          $region128: #{cptm_bottleneck_forward.1} parent=124 // pred_region
            // Predicated region
            $region130: #{cptm_bottleneck_forward.1} parent=128 // pred_check
              _
            $region131: #{cptm_bottleneck_forward.1} parent=128 // pred_check_branch
              %3912 = sbr.rel target = $region133
            $region132: #{cptm_bottleneck_forward.1} parent=128 // pred_region
              // Predicated region
              $region145: #{cptm_bottleneck_forward.1} parent=132 // pred_check
                _
              $region146: #{cptm_bottleneck_forward.1} parent=132 // pred_check_branch
                %4053 = sbr.rel (0) target = $region148
              $region147: #{cptm_bottleneck_forward.1} parent=132 // pred_region
                loop: start=0, step=1, limit=1
                $region149: #{cptm_bottleneck_forward.1} parent=147 // loop_pre_header
                  _
                $region150: #{cptm_bottleneck_forward.1} parent=147 // loop_header
                  %s4055 = sphi 0, %s4059
                  %p4056 = scmp.ge.s32.totalorder %s4055, 1
                  %s4060 = sphi %s3900, %s3900
                  %s4061 = sphi %s3908, %s3908
                $region151: #{cptm_bottleneck_forward.1} parent=147 // loop_header_branch
                  %4058 = sbr.rel (%p4056) target = $region155
                $region152: #{cptm_bottleneck_forward.1} parent=147 // loop_body
                  _
                $region153: #{cptm_bottleneck_forward.1} parent=147 // loop_footer
                  %s4059 = sadd.s32 1, %s4055
                $region154: #{cptm_bottleneck_forward.1} parent=147 // loop_footer_branch
                  %4054 = sbr.rel target = $region150
                $region155: #{cptm_bottleneck_forward.1} parent=147 // loop_exit
                  _
                loop: start=0, step=1, limit=1
                $region156: #{cptm_bottleneck_forward.1} parent=147 // loop_pre_header
                  _
                $region157: #{cptm_bottleneck_forward.1} parent=147 // loop_header
                  %s4064 = sphi 0, %s4068
                  %p4065 = scmp.ge.s32.totalorder %s4064, 1
                  %s4069 = sphi %s3900, %s3900
                  %s4070 = sphi %s3908, %s3908
                $region158: #{cptm_bottleneck_forward.1} parent=147 // loop_header_branch
                  %4067 = sbr.rel (%p4065) target = $region162
                $region159: #{cptm_bottleneck_forward.1} parent=147 // loop_body
                  %v4071 = vld [vmem:[%s4069] sm:$0xf]
                  %4072 = vst [vmem:[%s4070] sm:$0xf] %v4071
                  %v4073 = vld [vmem:[%s4069 + $0x4] sm:$0xf]
                  %4074 = vst [vmem:[%s4070 + $0x8] sm:$0xf] %v4073
                  %v4075 = vld [vmem:[%s4069 + $0x8] sm:$0xf]
                  %4076 = vst [vmem:[%s4070 + $0x10] sm:$0xf] %v4075
                  %v4077 = vld [vmem:[%s4069 + $0xc] sm:$0xf]
                  %4078 = vst [vmem:[%s4070 + $0x18] sm:$0xf] %v4077
                  %v4079 = vld [vmem:[%s4069 + $0x10] sm:$0xf]
                  %4080 = vst [vmem:[%s4070 + $0x20] sm:$0xf] %v4079
                  %v4081 = vld [vmem:[%s4069 + $0x14] sm:$0xf]
                  %4082 = vst [vmem:[%s4070 + $0x28] sm:$0xf] %v4081
                  %v4083 = vld [vmem:[%s4069 + $0x18] sm:$0xf]
                  %4084 = vst [vmem:[%s4070 + $0x30] sm:$0xf] %v4083
                  %v4085 = vld [vmem:[%s4069 + $0x1c] sm:$0xf]
                  %4086 = vst [vmem:[%s4070 + $0x38] sm:$0xf] %v4085
                  %v4087 = vld [vmem:[%s4069 + $0x20] sm:$0xf]
                  %4088 = vst [vmem:[%s4070 + $0x40] sm:$0xf] %v4087
                  %v4089 = vld [vmem:[%s4069 + $0x24] sm:$0xf]
                  %4090 = vst [vmem:[%s4070 + $0x48] sm:$0xf] %v4089
                  %v4091 = vld [vmem:[%s4069 + $0x28] sm:$0xf]
                  %4092 = vst [vmem:[%s4070 + $0x50] sm:$0xf] %v4091
                  %v4093 = vld [vmem:[%s4069 + $0x2c] sm:$0xf]
                  %4094 = vst [vmem:[%s4070 + $0x58] sm:$0xf] %v4093
                  %v4095 = vld [vmem:[%s4069 + $0x30] sm:$0xf]
                  %4096 = vst [vmem:[%s4070 + $0x60] sm:$0xf] %v4095
                  %v4097 = vld [vmem:[%s4069 + $0x34] sm:$0xf]
                  %4098 = vst [vmem:[%s4070 + $0x68] sm:$0xf] %v4097
                  %v4099 = vld [vmem:[%s4069 + $0x38] sm:$0xf]
                  %4100 = vst [vmem:[%s4070 + $0x70] sm:$0xf] %v4099
                  %v4101 = vld [vmem:[%s4069 + $0x3c] sm:$0xf]
                  %4102 = vst [vmem:[%s4070 + $0x78] sm:$0xf] %v4101
                  %v4103 = vld [vmem:[%s4069 + $0x40] sm:$0xf]
                  %4104 = vst [vmem:[%s4070 + $0x80] sm:$0xf] %v4103
                  %v4105 = vld [vmem:[%s4069 + $0x44] sm:$0xf]
                  %4106 = vst [vmem:[%s4070 + $0x88] sm:$0xf] %v4105
                  %v4107 = vld [vmem:[%s4069 + $0x48] sm:$0xf]
                  %4108 = vst [vmem:[%s4070 + $0x90] sm:$0xf] %v4107
                  %v4109 = vld [vmem:[%s4069 + $0x4c] sm:$0xf]
                  %4110 = vst [vmem:[%s4070 + $0x98] sm:$0xf] %v4109
                  %v4111 = vld [vmem:[%s4069 + $0x50] sm:$0xf]
                  %4112 = vst [vmem:[%s4070 + $0xa0] sm:$0xf] %v4111
                  %v4113 = vld [vmem:[%s4069 + $0x54] sm:$0xf]
                  %4114 = vst [vmem:[%s4070 + $0xa8] sm:$0xf] %v4113
                  %v4115 = vld [vmem:[%s4069 + $0x58] sm:$0xf]
                  %4116 = vst [vmem:[%s4070 + $0xb0] sm:$0xf] %v4115
                  %v4117 = vld [vmem:[%s4069 + $0x5c] sm:$0xf]
                  %4118 = vst [vmem:[%s4070 + $0xb8] sm:$0xf] %v4117
                  %v4119 = vld [vmem:[%s4069 + $0x60] sm:$0xf]
                  %4120 = vst [vmem:[%s4070 + $0xc0] sm:$0xf] %v4119
                  %v4121 = vld [vmem:[%s4069 + $0x64] sm:$0xf]
                  %4122 = vst [vmem:[%s4070 + $0xc8] sm:$0xf] %v4121
                  %v4123 = vld [vmem:[%s4069 + $0x68] sm:$0xf]
                  %4124 = vst [vmem:[%s4070 + $0xd0] sm:$0xf] %v4123
                  %v4125 = vld [vmem:[%s4069 + $0x6c] sm:$0xf]
                  %4126 = vst [vmem:[%s4070 + $0xd8] sm:$0xf] %v4125
                  %v4127 = vld [vmem:[%s4069 + $0x70] sm:$0xf]
                  %4128 = vst [vmem:[%s4070 + $0xe0] sm:$0xf] %v4127
                  %v4129 = vld [vmem:[%s4069 + $0x74] sm:$0xf]
                  %4130 = vst [vmem:[%s4070 + $0xe8] sm:$0xf] %v4129
                  %v4131 = vld [vmem:[%s4069 + $0x78] sm:$0xf]
                  %4132 = vst [vmem:[%s4070 + $0xf0] sm:$0xf] %v4131
                  %v4133 = vld [vmem:[%s4069 + $0x7c] sm:$0xf]
                  %4134 = vst [vmem:[%s4070 + $0xf8] sm:$0xf] %v4133
                  %v4135 = vld [vmem:[%s4069 + $0x80] sm:$0xf]
                  %4136 = vst [vmem:[%s4070 + $0x100] sm:$0xf] %v4135
                  %v4137 = vld [vmem:[%s4069 + $0x84] sm:$0xf]
                  %4138 = vst [vmem:[%s4070 + $0x108] sm:$0xf] %v4137
                  %v4139 = vld [vmem:[%s4069 + $0x88] sm:$0xf]
                  %4140 = vst [vmem:[%s4070 + $0x110] sm:$0xf] %v4139
                  %v4141 = vld [vmem:[%s4069 + $0x8c] sm:$0xf]
                  %4142 = vst [vmem:[%s4070 + $0x118] sm:$0xf] %v4141
                  %v4143 = vld [vmem:[%s4069 + $0x90] sm:$0xf]
                  %4144 = vst [vmem:[%s4070 + $0x120] sm:$0xf] %v4143
                  %v4145 = vld [vmem:[%s4069 + $0x94] sm:$0xf]
                  %4146 = vst [vmem:[%s4070 + $0x128] sm:$0xf] %v4145
                  %v4147 = vld [vmem:[%s4069 + $0x98] sm:$0xf]
                  %4148 = vst [vmem:[%s4070 + $0x130] sm:$0xf] %v4147
                  %v4149 = vld [vmem:[%s4069 + $0x9c] sm:$0xf]
                  %4150 = vst [vmem:[%s4070 + $0x138] sm:$0xf] %v4149
                  %v4151 = vld [vmem:[%s4069 + $0xa0] sm:$0xf]
                  %4152 = vst [vmem:[%s4070 + $0x140] sm:$0xf] %v4151
                  %v4153 = vld [vmem:[%s4069 + $0xa4] sm:$0xf]
                  %4154 = vst [vmem:[%s4070 + $0x148] sm:$0xf] %v4153
                  %v4155 = vld [vmem:[%s4069 + $0xa8] sm:$0xf]
                  %4156 = vst [vmem:[%s4070 + $0x150] sm:$0xf] %v4155
                  %v4157 = vld [vmem:[%s4069 + $0xac] sm:$0xf]
                  %4158 = vst [vmem:[%s4070 + $0x158] sm:$0xf] %v4157
                  %v4159 = vld [vmem:[%s4069 + $0xb0] sm:$0xf]
                  %4160 = vst [vmem:[%s4070 + $0x160] sm:$0xf] %v4159
                  %v4161 = vld [vmem:[%s4069 + $0xb4] sm:$0xf]
                  %4162 = vst [vmem:[%s4070 + $0x168] sm:$0xf] %v4161
                  %v4163 = vld [vmem:[%s4069 + $0xb8] sm:$0xf]
                  %4164 = vst [vmem:[%s4070 + $0x170] sm:$0xf] %v4163
                  %v4165 = vld [vmem:[%s4069 + $0xbc] sm:$0xf]
                  %4166 = vst [vmem:[%s4070 + $0x178] sm:$0xf] %v4165
                  %v4167 = vld [vmem:[%s4069 + $0xc0] sm:$0xf]
                  %4168 = vst [vmem:[%s4070 + $0x180] sm:$0xf] %v4167
                  %v4169 = vld [vmem:[%s4069 + $0xc4] sm:$0xf]
                  %4170 = vst [vmem:[%s4070 + $0x188] sm:$0xf] %v4169
                  %v4171 = vld [vmem:[%s4069 + $0xc8] sm:$0xf]
                  %4172 = vst [vmem:[%s4070 + $0x190] sm:$0xf] %v4171
                  %v4173 = vld [vmem:[%s4069 + $0xcc] sm:$0xf]
                  %4174 = vst [vmem:[%s4070 + $0x198] sm:$0xf] %v4173
                  %v4175 = vld [vmem:[%s4069 + $0xd0] sm:$0xf]
                  %4176 = vst [vmem:[%s4070 + $0x1a0] sm:$0xf] %v4175
                  %v4177 = vld [vmem:[%s4069 + $0xd4] sm:$0xf]
                  %4178 = vst [vmem:[%s4070 + $0x1a8] sm:$0xf] %v4177
                  %v4179 = vld [vmem:[%s4069 + $0xd8] sm:$0xf]
                  %4180 = vst [vmem:[%s4070 + $0x1b0] sm:$0xf] %v4179
                  %v4181 = vld [vmem:[%s4069 + $0xdc] sm:$0xf]
                  %4182 = vst [vmem:[%s4070 + $0x1b8] sm:$0xf] %v4181
                  %v4183 = vld [vmem:[%s4069 + $0xe0] sm:$0xf]
                  %4184 = vst [vmem:[%s4070 + $0x1c0] sm:$0xf] %v4183
                  %v4185 = vld [vmem:[%s4069 + $0xe4] sm:$0xf]
                  %4186 = vst [vmem:[%s4070 + $0x1c8] sm:$0xf] %v4185
                  %v4187 = vld [vmem:[%s4069 + $0xe8] sm:$0xf]
                  %4188 = vst [vmem:[%s4070 + $0x1d0] sm:$0xf] %v4187
                  %v4189 = vld [vmem:[%s4069 + $0xec] sm:$0xf]
                  %4190 = vst [vmem:[%s4070 + $0x1d8] sm:$0xf] %v4189
                  %v4191 = vld [vmem:[%s4069 + $0xf0] sm:$0xf]
                  %4192 = vst [vmem:[%s4070 + $0x1e0] sm:$0xf] %v4191
                  %v4193 = vld [vmem:[%s4069 + $0xf4] sm:$0xf]
                  %4194 = vst [vmem:[%s4070 + $0x1e8] sm:$0xf] %v4193
                  %v4195 = vld [vmem:[%s4069 + $0xf8] sm:$0xf]
                  %4196 = vst [vmem:[%s4070 + $0x1f0] sm:$0xf] %v4195
                  %v4197 = vld [vmem:[%s4069 + $0xfc] sm:$0xf]
                  %4198 = vst [vmem:[%s4070 + $0x1f8] sm:$0xf] %v4197
                $region160: #{cptm_bottleneck_forward.1} parent=147 // loop_footer
                  %s4068 = sadd.s32 1, %s4064
                $region161: #{cptm_bottleneck_forward.1} parent=147 // loop_footer_branch
                  %4063 = sbr.rel target = $region157
                $region162: #{cptm_bottleneck_forward.1} parent=147 // loop_exit
                  _
              $region148: #{cptm_bottleneck_forward.1} parent=132 // pred_fallthru
                _
            $region133: #{cptm_bottleneck_forward.1} parent=128 // pred_fallthru
              _
            // Predicated region
            $region134: #{cptm_bottleneck_forward.1} parent=128 // pred_check
              _
            $region135: #{cptm_bottleneck_forward.1} parent=128 // pred_check_branch
              %3914 = sbr.rel (0) target = $region137
            $region136: #{cptm_bottleneck_forward.1} parent=128 // pred_region
              loop: start=0, step=1, limit=1
              $region138: #{cptm_bottleneck_forward.1} parent=136 // loop_pre_header
                _
              $region139: #{cptm_bottleneck_forward.1} parent=136 // loop_header
                %s3917 = sphi 0, %s3921
                %p3918 = scmp.ge.s32.totalorder %s3917, 1
                %s3922 = sphi %s3900, %s3900
                %s3923 = sphi %s3908, %s3908
              $region140: #{cptm_bottleneck_forward.1} parent=136 // loop_header_branch
                %3920 = sbr.rel (%p3918) target = $region144
              $region141: #{cptm_bottleneck_forward.1} parent=136 // loop_body
                %v3924 = vld [vmem:[%s3922] sm:$0xf]
                %3925 = vst [vmem:[%s3923] sm:$0xf] %v3924
                %v3926 = vld [vmem:[%s3922 + $0x4] sm:$0xf]
                %3927 = vst [vmem:[%s3923 + $0x8] sm:$0xf] %v3926
                %v3928 = vld [vmem:[%s3922 + $0x8] sm:$0xf]
                %3929 = vst [vmem:[%s3923 + $0x10] sm:$0xf] %v3928
                %v3930 = vld [vmem:[%s3922 + $0xc] sm:$0xf]
                %3931 = vst [vmem:[%s3923 + $0x18] sm:$0xf] %v3930
                %v3932 = vld [vmem:[%s3922 + $0x10] sm:$0xf]
                %3933 = vst [vmem:[%s3923 + $0x20] sm:$0xf] %v3932
                %v3934 = vld [vmem:[%s3922 + $0x14] sm:$0xf]
                %3935 = vst [vmem:[%s3923 + $0x28] sm:$0xf] %v3934
                %v3936 = vld [vmem:[%s3922 + $0x18] sm:$0xf]
                %3937 = vst [vmem:[%s3923 + $0x30] sm:$0xf] %v3936
                %v3938 = vld [vmem:[%s3922 + $0x1c] sm:$0xf]
                %3939 = vst [vmem:[%s3923 + $0x38] sm:$0xf] %v3938
                %v3940 = vld [vmem:[%s3922 + $0x20] sm:$0xf]
                %3941 = vst [vmem:[%s3923 + $0x40] sm:$0xf] %v3940
                %v3942 = vld [vmem:[%s3922 + $0x24] sm:$0xf]
                %3943 = vst [vmem:[%s3923 + $0x48] sm:$0xf] %v3942
                %v3944 = vld [vmem:[%s3922 + $0x28] sm:$0xf]
                %3945 = vst [vmem:[%s3923 + $0x50] sm:$0xf] %v3944
                %v3946 = vld [vmem:[%s3922 + $0x2c] sm:$0xf]
                %3947 = vst [vmem:[%s3923 + $0x58] sm:$0xf] %v3946
                %v3948 = vld [vmem:[%s3922 + $0x30] sm:$0xf]
                %3949 = vst [vmem:[%s3923 + $0x60] sm:$0xf] %v3948
                %v3950 = vld [vmem:[%s3922 + $0x34] sm:$0xf]
                %3951 = vst [vmem:[%s3923 + $0x68] sm:$0xf] %v3950
                %v3952 = vld [vmem:[%s3922 + $0x38] sm:$0xf]
                %3953 = vst [vmem:[%s3923 + $0x70] sm:$0xf] %v3952
                %v3954 = vld [vmem:[%s3922 + $0x3c] sm:$0xf]
                %3955 = vst [vmem:[%s3923 + $0x78] sm:$0xf] %v3954
                %v3956 = vld [vmem:[%s3922 + $0x40] sm:$0xf]
                %3957 = vst [vmem:[%s3923 + $0x80] sm:$0xf] %v3956
                %v3958 = vld [vmem:[%s3922 + $0x44] sm:$0xf]
                %3959 = vst [vmem:[%s3923 + $0x88] sm:$0xf] %v3958
                %v3960 = vld [vmem:[%s3922 + $0x48] sm:$0xf]
                %3961 = vst [vmem:[%s3923 + $0x90] sm:$0xf] %v3960
                %v3962 = vld [vmem:[%s3922 + $0x4c] sm:$0xf]
                %3963 = vst [vmem:[%s3923 + $0x98] sm:$0xf] %v3962
                %v3964 = vld [vmem:[%s3922 + $0x50] sm:$0xf]
                %3965 = vst [vmem:[%s3923 + $0xa0] sm:$0xf] %v3964
                %v3966 = vld [vmem:[%s3922 + $0x54] sm:$0xf]
                %3967 = vst [vmem:[%s3923 + $0xa8] sm:$0xf] %v3966
                %v3968 = vld [vmem:[%s3922 + $0x58] sm:$0xf]
                %3969 = vst [vmem:[%s3923 + $0xb0] sm:$0xf] %v3968
                %v3970 = vld [vmem:[%s3922 + $0x5c] sm:$0xf]
                %3971 = vst [vmem:[%s3923 + $0xb8] sm:$0xf] %v3970
                %v3972 = vld [vmem:[%s3922 + $0x60] sm:$0xf]
                %3973 = vst [vmem:[%s3923 + $0xc0] sm:$0xf] %v3972
                %v3974 = vld [vmem:[%s3922 + $0x64] sm:$0xf]
                %3975 = vst [vmem:[%s3923 + $0xc8] sm:$0xf] %v3974
                %v3976 = vld [vmem:[%s3922 + $0x68] sm:$0xf]
                %3977 = vst [vmem:[%s3923 + $0xd0] sm:$0xf] %v3976
                %v3978 = vld [vmem:[%s3922 + $0x6c] sm:$0xf]
                %3979 = vst [vmem:[%s3923 + $0xd8] sm:$0xf] %v3978
                %v3980 = vld [vmem:[%s3922 + $0x70] sm:$0xf]
                %3981 = vst [vmem:[%s3923 + $0xe0] sm:$0xf] %v3980
                %v3982 = vld [vmem:[%s3922 + $0x74] sm:$0xf]
                %3983 = vst [vmem:[%s3923 + $0xe8] sm:$0xf] %v3982
                %v3984 = vld [vmem:[%s3922 + $0x78] sm:$0xf]
                %3985 = vst [vmem:[%s3923 + $0xf0] sm:$0xf] %v3984
                %v3986 = vld [vmem:[%s3922 + $0x7c] sm:$0xf]
                %3987 = vst [vmem:[%s3923 + $0xf8] sm:$0xf] %v3986
                %v3988 = vld [vmem:[%s3922 + $0x80] sm:$0xf]
                %3989 = vst [vmem:[%s3923 + $0x100] sm:$0xf] %v3988
                %v3990 = vld [vmem:[%s3922 + $0x84] sm:$0xf]
                %3991 = vst [vmem:[%s3923 + $0x108] sm:$0xf] %v3990
                %v3992 = vld [vmem:[%s3922 + $0x88] sm:$0xf]
                %3993 = vst [vmem:[%s3923 + $0x110] sm:$0xf] %v3992
                %v3994 = vld [vmem:[%s3922 + $0x8c] sm:$0xf]
                %3995 = vst [vmem:[%s3923 + $0x118] sm:$0xf] %v3994
                %v3996 = vld [vmem:[%s3922 + $0x90] sm:$0xf]
                %3997 = vst [vmem:[%s3923 + $0x120] sm:$0xf] %v3996
                %v3998 = vld [vmem:[%s3922 + $0x94] sm:$0xf]
                %3999 = vst [vmem:[%s3923 + $0x128] sm:$0xf] %v3998
                %v4000 = vld [vmem:[%s3922 + $0x98] sm:$0xf]
                %4001 = vst [vmem:[%s3923 + $0x130] sm:$0xf] %v4000
                %v4002 = vld [vmem:[%s3922 + $0x9c] sm:$0xf]
                %4003 = vst [vmem:[%s3923 + $0x138] sm:$0xf] %v4002
                %v4004 = vld [vmem:[%s3922 + $0xa0] sm:$0xf]
                %4005 = vst [vmem:[%s3923 + $0x140] sm:$0xf] %v4004
                %v4006 = vld [vmem:[%s3922 + $0xa4] sm:$0xf]
                %4007 = vst [vmem:[%s3923 + $0x148] sm:$0xf] %v4006
                %v4008 = vld [vmem:[%s3922 + $0xa8] sm:$0xf]
                %4009 = vst [vmem:[%s3923 + $0x150] sm:$0xf] %v4008
                %v4010 = vld [vmem:[%s3922 + $0xac] sm:$0xf]
                %4011 = vst [vmem:[%s3923 + $0x158] sm:$0xf] %v4010
                %v4012 = vld [vmem:[%s3922 + $0xb0] sm:$0xf]
                %4013 = vst [vmem:[%s3923 + $0x160] sm:$0xf] %v4012
                %v4014 = vld [vmem:[%s3922 + $0xb4] sm:$0xf]
                %4015 = vst [vmem:[%s3923 + $0x168] sm:$0xf] %v4014
                %v4016 = vld [vmem:[%s3922 + $0xb8] sm:$0xf]
                %4017 = vst [vmem:[%s3923 + $0x170] sm:$0xf] %v4016
                %v4018 = vld [vmem:[%s3922 + $0xbc] sm:$0xf]
                %4019 = vst [vmem:[%s3923 + $0x178] sm:$0xf] %v4018
                %v4020 = vld [vmem:[%s3922 + $0xc0] sm:$0xf]
                %4021 = vst [vmem:[%s3923 + $0x180] sm:$0xf] %v4020
                %v4022 = vld [vmem:[%s3922 + $0xc4] sm:$0xf]
                %4023 = vst [vmem:[%s3923 + $0x188] sm:$0xf] %v4022
                %v4024 = vld [vmem:[%s3922 + $0xc8] sm:$0xf]
                %4025 = vst [vmem:[%s3923 + $0x190] sm:$0xf] %v4024
                %v4026 = vld [vmem:[%s3922 + $0xcc] sm:$0xf]
                %4027 = vst [vmem:[%s3923 + $0x198] sm:$0xf] %v4026
                %v4028 = vld [vmem:[%s3922 + $0xd0] sm:$0xf]
                %4029 = vst [vmem:[%s3923 + $0x1a0] sm:$0xf] %v4028
                %v4030 = vld [vmem:[%s3922 + $0xd4] sm:$0xf]
                %4031 = vst [vmem:[%s3923 + $0x1a8] sm:$0xf] %v4030
                %v4032 = vld [vmem:[%s3922 + $0xd8] sm:$0xf]
                %4033 = vst [vmem:[%s3923 + $0x1b0] sm:$0xf] %v4032
                %v4034 = vld [vmem:[%s3922 + $0xdc] sm:$0xf]
                %4035 = vst [vmem:[%s3923 + $0x1b8] sm:$0xf] %v4034
                %v4036 = vld [vmem:[%s3922 + $0xe0] sm:$0xf]
                %4037 = vst [vmem:[%s3923 + $0x1c0] sm:$0xf] %v4036
                %v4038 = vld [vmem:[%s3922 + $0xe4] sm:$0xf]
                %4039 = vst [vmem:[%s3923 + $0x1c8] sm:$0xf] %v4038
                %v4040 = vld [vmem:[%s3922 + $0xe8] sm:$0xf]
                %4041 = vst [vmem:[%s3923 + $0x1d0] sm:$0xf] %v4040
                %v4042 = vld [vmem:[%s3922 + $0xec] sm:$0xf]
                %4043 = vst [vmem:[%s3923 + $0x1d8] sm:$0xf] %v4042
                %v4044 = vld [vmem:[%s3922 + $0xf0] sm:$0xf]
                %4045 = vst [vmem:[%s3923 + $0x1e0] sm:$0xf] %v4044
                %v4046 = vld [vmem:[%s3922 + $0xf4] sm:$0xf]
                %4047 = vst [vmem:[%s3923 + $0x1e8] sm:$0xf] %v4046
                %v4048 = vld [vmem:[%s3922 + $0xf8] sm:$0xf]
                %4049 = vst [vmem:[%s3923 + $0x1f0] sm:$0xf] %v4048
                %v4050 = vld [vmem:[%s3922 + $0xfc] sm:$0xf]
                %4051 = vst [vmem:[%s3923 + $0x1f8] sm:$0xf] %v4050
              $region142: #{cptm_bottleneck_forward.1} parent=136 // loop_footer
                %s3921 = sadd.s32 1, %s3917
              $region143: #{cptm_bottleneck_forward.1} parent=136 // loop_footer_branch
                %3916 = sbr.rel target = $region139
              $region144: #{cptm_bottleneck_forward.1} parent=136 // loop_exit
                _
            $region137: #{cptm_bottleneck_forward.1} parent=128 // pred_fallthru
              _
          $region129: #{cptm_bottleneck_forward.1} parent=124 // pred_fallthru
            _
          %4199 = vnop
        $region125: #{cptm_bottleneck_forward.1} parent=100 // pred_fallthru
          _
      $region101: #{cptm_bottleneck_forward.1} parent=5 // pred_fallthru
        _
      %p4200 = scmp.le.s32.totalorder 2, %s17
      // Predicated region
      $region163: #{cptm_bottleneck_forward.1} parent=5 // pred_check
        %p4201 = pneg %p4200
      $region164: #{cptm_bottleneck_forward.1} parent=5 // pred_check_branch
        %4203 = sbr.rel (%p4201) target = $region166
      $region165: #{cptm_bottleneck_forward.1} parent=5 // pred_region
        %s4204 = ssub.s32 %s17, 2
        // Predicated region
        $region167: #{cptm_bottleneck_forward.1} parent=165 // pred_check
          %p4205 = pneg %p313
        $region168: #{cptm_bottleneck_forward.1} parent=165 // pred_check_branch
          %4207 = sbr.rel (%p4205) target = $region170
        $region169: #{cptm_bottleneck_forward.1} parent=165 // pred_region
          %s4208 = sand.u32 %s298, 1
          %s4209 = sand.u32 %s298, 1
          %s4210 = smul.addr %s4209, 256
          %s4211 = scalar_lea.vmem [#allocation7], %s4210
        $region170: #{cptm_bottleneck_forward.1} parent=165 // pred_fallthru
          _
      $region166: #{cptm_bottleneck_forward.1} parent=5 // pred_fallthru
        _
    $region6: #{cptm_bottleneck_forward.1} parent=1 // loop_footer
      %s21 = sadd.s32 1, %s17
    $region7: #{cptm_bottleneck_forward.1} parent=1 // loop_footer_branch
      %16 = sbr.rel target = $region3
    $region8: #{cptm_bottleneck_forward.1} parent=1 // loop_exit
      _

</llo_original>
